<compile_context>
chip_gen: v6e
topology: v6e:2x2x1
jax: 0.10.0
libtpu: 0.0.40
codegen_flags: <defaults>
</compile_context>

<pallas_src>
import functools

import jax
import jax.numpy as jnp
from jax.experimental import pallas as pl
from jax.experimental.pallas import tpu as pltpu


def _conv4x4_kernel(*refs, n_ph, n_dy, ow, relu_slope):
    """One batch element: out = LeakyReLU(conv4x4(x) * scale + shift).

    refs = (*phase_refs, w_ref, scale_ref, shift_ref, o_ref)
      phase_refs[p]: (1, PH*OW, n_tap*Cin)   column-im2col'd phase p (rows flattened)
      w_ref:         (n_ph, n_dy, n_tap*Cin, Cout) packed weights per (phase, row-shift)
      scale_ref/shift_ref: (1, Cout)         folded conv-bias / BatchNorm affine
      o_ref:         (1, OH*OW, Cout)        lane-dense (channels-last) output
    """
    phase_refs = refs[:n_ph]
    w_ref, scale_ref, shift_ref, o_ref = refs[n_ph:]
    _, p_out, c_out = o_ref.shape

    acc = jnp.zeros((p_out, c_out), jnp.float32)
    for p in range(n_ph):
        for dy in range(n_dy):
            # Contiguous static slice on the sublane dim: rows [dy*OW, dy*OW + OH*OW).
            lhs = phase_refs[p][0, dy * ow:dy * ow + p_out, :]
            acc = acc + jnp.dot(lhs, w_ref[p, dy],
                                preferred_element_type=jnp.float32)

    y = acc * scale_ref[...] + shift_ref[...]
    if relu_slope is not None:
        y = jnp.where(y >= 0.0, y, relu_slope * y)
    o_ref[0] = y.astype(o_ref.dtype)


def _build_phases(x_nhwc, stride, oh, ow, n_tap):
    """Zero-pad by 1, split into stride*stride phases, column-im2col, flatten rows."""
    n, _, _, c_in = x_nhwc.shape
    xp = jnp.pad(x_nhwc, ((0, 0), (1, 1), (1, 1), (0, 0)))
    ph_rows = oh + n_tap - 1
    phases = []
    for py in range(stride):
        for px in range(stride):
            ph = xp[:, py:py + stride * ph_rows:stride, px::stride, :]
            cols = [ph[:, :, dx:dx + ow, :] for dx in range(n_tap)]
            cc = jnp.concatenate(cols, axis=-1)            # (N, PH, OW, n_tap*Cin)
            phases.append(cc.reshape(n, ph_rows * ow, n_tap * c_in))
    return phases


def _pack_weights(w_oihw, stride):
    """(Cout, Cin, 4, 4) OIHW -> (s*s, n_tap, n_tap*Cin, Cout) per (phase, row-shift)."""
    c_out, c_in, kh, kw = w_oihw.shape
    n_tap = -(-kh // stride)
    w_hwio = jnp.transpose(w_oihw, (2, 3, 1, 0))           # (KH, KW, Cin, Cout)
    blocks = []
    for py in range(stride):
        for px in range(stride):
            per_dy = []
            for dy in range(n_tap):
                per_dx = []
                for dx in range(n_tap):
                    ky, kx = stride * dy + py, stride * dx + px
                    if ky < kh and kx < kw:
                        per_dx.append(w_hwio[ky, kx])
                    else:
                        per_dx.append(jnp.zeros((c_in, c_out), w_hwio.dtype))
                per_dy.append(jnp.concatenate(per_dx, axis=0))   # (n_tap*Cin, Cout)
            blocks.append(jnp.stack(per_dy, axis=0))             # (n_tap, n_tap*Cin, Cout)
    return jnp.stack(blocks, axis=0)                             # (s*s, n_tap, ., Cout)


def conv4x4_layer(x_nhwc, w_oihw, scale, shift, *, stride, relu_slope):
    """Conv2d(k=4, pad=1, stride) + per-channel affine + optional LeakyReLU, via Pallas."""
    n, h, w, c_in = x_nhwc.shape
    c_out = w_oihw.shape[0]
    oh = (h + 2 - 4) // stride + 1
    ow = (w + 2 - 4) // stride + 1
    n_tap = -(-4 // stride)            # taps per axis per phase: 2 (s=2) / 4 (s=1)
    n_ph = stride * stride
    ph_rows = oh + n_tap - 1
    p_out = oh * ow
    k_dim = n_tap * c_in

    phases = _build_phases(x_nhwc, stride, oh, ow, n_tap)
    w_packed = _pack_weights(w_oihw, stride)

    kernel = functools.partial(_conv4x4_kernel, n_ph=n_ph, n_dy=n_tap, ow=ow,
                               relu_slope=relu_slope)

    itemsize = jnp.dtype(x_nhwc.dtype).itemsize
    flops = 2 * n * p_out * c_out * 16 * c_in
    bytes_accessed = int(sum(p.size for p in phases) * itemsize
                         + w_packed.size * jnp.dtype(w_packed.dtype).itemsize
                         + n * p_out * c_out * itemsize)
    cost = pl.CostEstimate(flops=flops, transcendentals=0,
                           bytes_accessed=bytes_accessed)

    in_specs = (
        [pl.BlockSpec((1, ph_rows * ow, k_dim), lambda i: (i, 0, 0))
         for _ in range(n_ph)]
        + [pl.BlockSpec(w_packed.shape, lambda i: (0, 0, 0, 0)),
           pl.BlockSpec((1, c_out), lambda i: (0, 0)),
           pl.BlockSpec((1, c_out), lambda i: (0, 0))]
    )

    out = pl.pallas_call(
        kernel,
        out_shape=jax.ShapeDtypeStruct((n, p_out, c_out), x_nhwc.dtype),
        grid_spec=pltpu.PrefetchScalarGridSpec(
            num_scalar_prefetch=0,
            grid=(n,),
            in_specs=in_specs,
            out_specs=pl.BlockSpec((1, p_out, c_out), lambda i: (i, 0, 0)),
        ),
        compiler_params=pltpu.CompilerParams(
            dimension_semantics=("parallel",),
            vmem_limit_bytes=32 * 1024 * 1024,
        ),
        cost_estimate=cost,
    )(*phases, w_packed, scale.reshape(1, c_out), shift.reshape(1, c_out))
    return out.reshape(n, oh, ow, c_out)


def init_nlayer_discriminator(key, input_nc=3, ndf=8, n_layers=3):
    """Parameters mirroring NLayerDiscriminator(input_nc, ndf, n_layers, BatchNorm2d, no_antialias=True).

    BatchNorm2d is applied in inference mode: gamma/beta/running stats are folded into a
    per-channel (scale, shift).  use_bias=False on BN-normalized convs, as in the PyTorch module.
    """
    # TODO(synk): training-mode BatchNorm (batch statistics over N,H,W) is not computed
    # in-kernel; inference-mode folded affine is used instead.
    keys = iter(jax.random.split(key, 64))

    def conv_w(cin, cout):
        std = (2.0 / (cin * 4 * 4)) ** 0.5
        return std * jax.random.normal(next(keys), (cout, cin, 4, 4), jnp.float32)

    def bn_affine(cout):
        gamma = 1.0 + 0.1 * jax.random.normal(next(keys), (cout,), jnp.float32)
        beta = 0.1 * jax.random.normal(next(keys), (cout,), jnp.float32)
        mean = 0.1 * jax.random.normal(next(keys), (cout,), jnp.float32)
        var = jax.random.uniform(next(keys), (cout,), jnp.float32, 0.5, 1.5)
        scale = gamma / jnp.sqrt(var + 1e-5)
        return scale, beta - mean * scale

    layers = []
    # conv(input_nc -> ndf, stride 2, bias=True) + LeakyReLU(0.2)
    b = 0.1 * jax.random.normal(next(keys), (ndf,), jnp.float32)
    layers.append(dict(w=conv_w(input_nc, ndf), scale=jnp.ones((ndf,), jnp.float32),
                       shift=b, stride=2, relu=True))

    nf_mult = 1
    for n_blk in range(1, n_layers):
        nf_prev, nf_mult = nf_mult, min(2 ** n_blk, 8)
        cin, cout = ndf * nf_prev, ndf * nf_mult
        scale, shift = bn_affine(cout)
        layers.append(dict(w=conv_w(cin, cout), scale=scale, shift=shift,
                           stride=2, relu=True))

    nf_prev, nf_mult = nf_mult, min(2 ** n_layers, 8)
    cin, cout = ndf * nf_prev, ndf * nf_mult
    scale, shift = bn_affine(cout)
    layers.append(dict(w=conv_w(cin, cout), scale=scale, shift=shift,
                       stride=1, relu=True))

    # conv(ndf*nf_mult -> 1, stride 1, bias=True), no activation (PatchGAN logits)
    b = 0.1 * jax.random.normal(next(keys), (1,), jnp.float32)
    layers.append(dict(w=conv_w(ndf * nf_mult, 1), scale=jnp.ones((1,), jnp.float32),
                       shift=b, stride=1, relu=False))
    return layers


def nlayer_discriminator(x_nchw, layers):
    """Pallas forward: NCHW input -> NCHW PatchGAN logit map."""
    y = jnp.transpose(x_nchw, (0, 2, 3, 1))        # NHWC: channels on the lane dim
    for lyr in layers:
        y = conv4x4_layer(y, lyr["w"], lyr["scale"], lyr["shift"],
                          stride=lyr["stride"],
                          relu_slope=0.2 if lyr["relu"] else None)
    return jnp.transpose(y, (0, 3, 1, 2))


def nlayer_discriminator_ref(x_nchw, layers):
    """Pure-JAX reference mirroring the PyTorch module."""
    y = x_nchw
    for lyr in layers:
        y = jax.lax.conv_general_dilated(
            y, lyr["w"], window_strides=(lyr["stride"],) * 2,
            padding=((1, 1), (1, 1)),
            dimension_numbers=("NCHW", "OIHW", "NCHW"),
            precision=jax.lax.Precision.HIGHEST)
        y = y * lyr["scale"].reshape(1, -1, 1, 1) + lyr["shift"].reshape(1, -1, 1, 1)
        if lyr["relu"]:
            y = jnp.where(y >= 0.0, y, 0.2 * y)
    return y


if __name__ == "__main__":
    key = jax.random.PRNGKey(0)
    k_params, k_x = jax.random.split(key)

    N, C, H, W = 2, 3, 32, 32          # small PatchGAN input
    ndf, n_layers = 8, 3
    layers = init_nlayer_discriminator(k_params, input_nc=C, ndf=ndf, n_layers=n_layers)
    x = jax.random.normal(k_x, (N, C, H, W), jnp.float32)

    out = jax.block_until_ready(nlayer_discriminator(x, layers))
    ref = nlayer_discriminator_ref(x, layers)

    # 32 -> 16 -> 8 -> 4 -> 3 -> 2 spatial, 1 output channel.
    assert out.shape == ref.shape == (N, 1, 2, 2), (out.shape, ref.shape)
    # Loose-ish bound covers possible MXU precision-mode differences between the
    # in-kernel f32 matmuls and XLA's conv; semantic bugs would give O(1) error.
    rel_err = float(jnp.max(jnp.abs(out - ref)) / (jnp.max(jnp.abs(ref)) + 1e-8))
    assert rel_err < 1e-2, f"rel_err={rel_err}"
    print("KERNEL_OK")
</pallas_src>

<mosaic_0001>
module attributes {stable_mosaic.version = 11 : i64} {
  func.func @_conv4x4_kernel(%arg0: i32, %arg1: memref<1x272x6xf32, #tpu.memory_space<vmem>>, %arg2: memref<1x272x6xf32, #tpu.memory_space<vmem>>, %arg3: memref<1x272x6xf32, #tpu.memory_space<vmem>>, %arg4: memref<1x272x6xf32, #tpu.memory_space<vmem>>, %arg5: memref<4x2x6x8xf32, #tpu.memory_space<vmem>>, %arg6: memref<1x8xf32, #tpu.memory_space<vmem>>, %arg7: memref<1x8xf32, #tpu.memory_space<vmem>>, %arg8: memref<1x256x8xf32, #tpu.memory_space<vmem>>) attributes {dimension_semantics = [#tpu.dimension_semantics<parallel>], iteration_bounds = array<i64: 2>, scalar_prefetch = 0 : i64, scratch_operands = 0 : i64, tpu.core_type = #tpu.core_type<tc>, window_params = [{transform_indices = @transform_0, window_bounds = array<i64: 1, 272, 6>}, {transform_indices = @transform_1, window_bounds = array<i64: 1, 272, 6>}, {transform_indices = @transform_2, window_bounds = array<i64: 1, 272, 6>}, {transform_indices = @transform_3, window_bounds = array<i64: 1, 272, 6>}, {pipeline_mode = #tpu.pipeline_mode<synchronous>, transform_indices = @transform_4, window_bounds = array<i64: 4, 2, 6, 8>}, {pipeline_mode = #tpu.pipeline_mode<synchronous>, transform_indices = @transform_5, window_bounds = array<i64: 1, 8>}, {pipeline_mode = #tpu.pipeline_mode<synchronous>, transform_indices = @transform_6, window_bounds = array<i64: 1, 8>}, {transform_indices = @transform_7, window_bounds = array<i64: 1, 256, 8>}]} {
    %cst = arith.constant 0.000000e+00 : f32
    %0 = vector.broadcast %cst : f32 to vector<256x8xf32>
    %c0 = arith.constant 0 : index
    %c0_0 = arith.constant 0 : index
    %c0_1 = arith.constant 0 : index
    %1 = vector.load %arg1[%c0, %c0_0, %c0_1] : memref<1x272x6xf32, #tpu.memory_space<vmem>>, vector<1x256x6xf32>
    %2 = vector.shape_cast %1 : vector<1x256x6xf32> to vector<256x6xf32>
    %c0_2 = arith.constant 0 : index
    %c0_3 = arith.constant 0 : index
    %c0_4 = arith.constant 0 : index
    %c0_5 = arith.constant 0 : index
    %3 = vector.load %arg5[%c0_2, %c0_3, %c0_4, %c0_5] : memref<4x2x6x8xf32, #tpu.memory_space<vmem>>, vector<1x1x6x8xf32>
    %4 = vector.shape_cast %3 : vector<1x1x6x8xf32> to vector<6x8xf32>
    %cst_6 = arith.constant dense<0.000000e+00> : vector<256x8xf32>
    %5 = tpu.matmul %2, %4, %cst_6 {dimension_numbers = #tpu.dot_dimension_numbers<[1], [0], [0], [1], [0, 0, 1, 1], [], []>} : vector<256x6xf32>, vector<6x8xf32>, vector<256x8xf32> -> vector<256x8xf32>
    %6 = arith.addf %0, %5 : vector<256x8xf32>
    %c0_7 = arith.constant 0 : index
    %c16 = arith.constant 16 : index
    %c0_8 = arith.constant 0 : index
    %7 = vector.load %arg1[%c0_7, %c16, %c0_8] : memref<1x272x6xf32, #tpu.memory_space<vmem>>, vector<1x256x6xf32>
    %8 = vector.shape_cast %7 : vector<1x256x6xf32> to vector<256x6xf32>
    %c0_9 = arith.constant 0 : index
    %c1 = arith.constant 1 : index
    %c0_10 = arith.constant 0 : index
    %c0_11 = arith.constant 0 : index
    %9 = vector.load %arg5[%c0_9, %c1, %c0_10, %c0_11] : memref<4x2x6x8xf32, #tpu.memory_space<vmem>>, vector<1x1x6x8xf32>
    %10 = vector.shape_cast %9 : vector<1x1x6x8xf32> to vector<6x8xf32>
    %cst_12 = arith.constant dense<0.000000e+00> : vector<256x8xf32>
    %11 = tpu.matmul %8, %10, %cst_12 {dimension_numbers = #tpu.dot_dimension_numbers<[1], [0], [0], [1], [0, 0, 1, 1], [], []>} : vector<256x6xf32>, vector<6x8xf32>, vector<256x8xf32> -> vector<256x8xf32>
    %12 = arith.addf %6, %11 : vector<256x8xf32>
    %c0_13 = arith.constant 0 : index
    %c0_14 = arith.constant 0 : index
    %c0_15 = arith.constant 0 : index
    %13 = vector.load %arg2[%c0_13, %c0_14, %c0_15] : memref<1x272x6xf32, #tpu.memory_space<vmem>>, vector<1x256x6xf32>
    %14 = vector.shape_cast %13 : vector<1x256x6xf32> to vector<256x6xf32>
    %c1_16 = arith.constant 1 : index
    %c0_17 = arith.constant 0 : index
    %c0_18 = arith.constant 0 : index
    %c0_19 = arith.constant 0 : index
    %15 = vector.load %arg5[%c1_16, %c0_17, %c0_18, %c0_19] : memref<4x2x6x8xf32, #tpu.memory_space<vmem>>, vector<1x1x6x8xf32>
    %16 = vector.shape_cast %15 : vector<1x1x6x8xf32> to vector<6x8xf32>
    %cst_20 = arith.constant dense<0.000000e+00> : vector<256x8xf32>
    %17 = tpu.matmul %14, %16, %cst_20 {dimension_numbers = #tpu.dot_dimension_numbers<[1], [0], [0], [1], [0, 0, 1, 1], [], []>} : vector<256x6xf32>, vector<6x8xf32>, vector<256x8xf32> -> vector<256x8xf32>
    %18 = arith.addf %12, %17 : vector<256x8xf32>
    %c0_21 = arith.constant 0 : index
    %c16_22 = arith.constant 16 : index
    %c0_23 = arith.constant 0 : index
    %19 = vector.load %arg2[%c0_21, %c16_22, %c0_23] : memref<1x272x6xf32, #tpu.memory_space<vmem>>, vector<1x256x6xf32>
    %20 = vector.shape_cast %19 : vector<1x256x6xf32> to vector<256x6xf32>
    %c1_24 = arith.constant 1 : index
    %c1_25 = arith.constant 1 : index
    %c0_26 = arith.constant 0 : index
    %c0_27 = arith.constant 0 : index
    %21 = vector.load %arg5[%c1_24, %c1_25, %c0_26, %c0_27] : memref<4x2x6x8xf32, #tpu.memory_space<vmem>>, vector<1x1x6x8xf32>
    %22 = vector.shape_cast %21 : vector<1x1x6x8xf32> to vector<6x8xf32>
    %cst_28 = arith.constant dense<0.000000e+00> : vector<256x8xf32>
    %23 = tpu.matmul %20, %22, %cst_28 {dimension_numbers = #tpu.dot_dimension_numbers<[1], [0], [0], [1], [0, 0, 1, 1], [], []>} : vector<256x6xf32>, vector<6x8xf32>, vector<256x8xf32> -> vector<256x8xf32>
    %24 = arith.addf %18, %23 : vector<256x8xf32>
    %c0_29 = arith.constant 0 : index
    %c0_30 = arith.constant 0 : index
    %c0_31 = arith.constant 0 : index
    %25 = vector.load %arg3[%c0_29, %c0_30, %c0_31] : memref<1x272x6xf32, #tpu.memory_space<vmem>>, vector<1x256x6xf32>
    %26 = vector.shape_cast %25 : vector<1x256x6xf32> to vector<256x6xf32>
    %c2 = arith.constant 2 : index
    %c0_32 = arith.constant 0 : index
    %c0_33 = arith.constant 0 : index
    %c0_34 = arith.constant 0 : index
    %27 = vector.load %arg5[%c2, %c0_32, %c0_33, %c0_34] : memref<4x2x6x8xf32, #tpu.memory_space<vmem>>, vector<1x1x6x8xf32>
    %28 = vector.shape_cast %27 : vector<1x1x6x8xf32> to vector<6x8xf32>
    %cst_35 = arith.constant dense<0.000000e+00> : vector<256x8xf32>
    %29 = tpu.matmul %26, %28, %cst_35 {dimension_numbers = #tpu.dot_dimension_numbers<[1], [0], [0], [1], [0, 0, 1, 1], [], []>} : vector<256x6xf32>, vector<6x8xf32>, vector<256x8xf32> -> vector<256x8xf32>
    %30 = arith.addf %24, %29 : vector<256x8xf32>
    %c0_36 = arith.constant 0 : index
    %c16_37 = arith.constant 16 : index
    %c0_38 = arith.constant 0 : index
    %31 = vector.load %arg3[%c0_36, %c16_37, %c0_38] : memref<1x272x6xf32, #tpu.memory_space<vmem>>, vector<1x256x6xf32>
    %32 = vector.shape_cast %31 : vector<1x256x6xf32> to vector<256x6xf32>
    %c2_39 = arith.constant 2 : index
    %c1_40 = arith.constant 1 : index
    %c0_41 = arith.constant 0 : index
    %c0_42 = arith.constant 0 : index
    %33 = vector.load %arg5[%c2_39, %c1_40, %c0_41, %c0_42] : memref<4x2x6x8xf32, #tpu.memory_space<vmem>>, vector<1x1x6x8xf32>
    %34 = vector.shape_cast %33 : vector<1x1x6x8xf32> to vector<6x8xf32>
    %cst_43 = arith.constant dense<0.000000e+00> : vector<256x8xf32>
    %35 = tpu.matmul %32, %34, %cst_43 {dimension_numbers = #tpu.dot_dimension_numbers<[1], [0], [0], [1], [0, 0, 1, 1], [], []>} : vector<256x6xf32>, vector<6x8xf32>, vector<256x8xf32> -> vector<256x8xf32>
    %36 = arith.addf %30, %35 : vector<256x8xf32>
    %c0_44 = arith.constant 0 : index
    %c0_45 = arith.constant 0 : index
    %c0_46 = arith.constant 0 : index
    %37 = vector.load %arg4[%c0_44, %c0_45, %c0_46] : memref<1x272x6xf32, #tpu.memory_space<vmem>>, vector<1x256x6xf32>
    %38 = vector.shape_cast %37 : vector<1x256x6xf32> to vector<256x6xf32>
    %c3 = arith.constant 3 : index
    %c0_47 = arith.constant 0 : index
    %c0_48 = arith.constant 0 : index
    %c0_49 = arith.constant 0 : index
    %39 = vector.load %arg5[%c3, %c0_47, %c0_48, %c0_49] : memref<4x2x6x8xf32, #tpu.memory_space<vmem>>, vector<1x1x6x8xf32>
    %40 = vector.shape_cast %39 : vector<1x1x6x8xf32> to vector<6x8xf32>
    %cst_50 = arith.constant dense<0.000000e+00> : vector<256x8xf32>
    %41 = tpu.matmul %38, %40, %cst_50 {dimension_numbers = #tpu.dot_dimension_numbers<[1], [0], [0], [1], [0, 0, 1, 1], [], []>} : vector<256x6xf32>, vector<6x8xf32>, vector<256x8xf32> -> vector<256x8xf32>
    %42 = arith.addf %36, %41 : vector<256x8xf32>
    %c0_51 = arith.constant 0 : index
    %c16_52 = arith.constant 16 : index
    %c0_53 = arith.constant 0 : index
    %43 = vector.load %arg4[%c0_51, %c16_52, %c0_53] : memref<1x272x6xf32, #tpu.memory_space<vmem>>, vector<1x256x6xf32>
    %44 = vector.shape_cast %43 : vector<1x256x6xf32> to vector<256x6xf32>
    %c3_54 = arith.constant 3 : index
    %c1_55 = arith.constant 1 : index
    %c0_56 = arith.constant 0 : index
    %c0_57 = arith.constant 0 : index
    %45 = vector.load %arg5[%c3_54, %c1_55, %c0_56, %c0_57] : memref<4x2x6x8xf32, #tpu.memory_space<vmem>>, vector<1x1x6x8xf32>
    %46 = vector.shape_cast %45 : vector<1x1x6x8xf32> to vector<6x8xf32>
    %cst_58 = arith.constant dense<0.000000e+00> : vector<256x8xf32>
    %47 = tpu.matmul %44, %46, %cst_58 {dimension_numbers = #tpu.dot_dimension_numbers<[1], [0], [0], [1], [0, 0, 1, 1], [], []>} : vector<256x6xf32>, vector<6x8xf32>, vector<256x8xf32> -> vector<256x8xf32>
    %48 = arith.addf %42, %47 : vector<256x8xf32>
    %c0_59 = arith.constant 0 : index
    %c0_60 = arith.constant 0 : index
    %49 = vector.load %arg6[%c0_59, %c0_60] : memref<1x8xf32, #tpu.memory_space<vmem>>, vector<1x8xf32>
    %50 = vector.broadcast %49 : vector<1x8xf32> to vector<256x8xf32>
    %51 = arith.mulf %48, %50 : vector<256x8xf32>
    %c0_61 = arith.constant 0 : index
    %c0_62 = arith.constant 0 : index
    %52 = vector.load %arg7[%c0_61, %c0_62] : memref<1x8xf32, #tpu.memory_space<vmem>>, vector<1x8xf32>
    %53 = vector.broadcast %52 : vector<1x8xf32> to vector<256x8xf32>
    %54 = arith.addf %51, %53 : vector<256x8xf32>
    %cst_63 = arith.constant 0.000000e+00 : f32
    %55 = vector.broadcast %cst_63 : f32 to vector<256x8xf32>
    %56 = arith.cmpf oge, %54, %55 : vector<256x8xf32>
    %cst_64 = arith.constant 2.000000e-01 : f32
    %57 = vector.broadcast %cst_64 : f32 to vector<256x8xf32>
    %58 = arith.mulf %57, %54 : vector<256x8xf32>
    %59 = arith.select %56, %54, %58 : vector<256x8xi1>, vector<256x8xf32>
    %c0_65 = arith.constant 0 : index
    %c0_66 = arith.constant 0 : index
    %c0_67 = arith.constant 0 : index
    %60 = vector.load %arg8[%c0_65, %c0_66, %c0_67] : memref<1x256x8xf32, #tpu.memory_space<vmem>>, vector<1x256x8xf32>
    %61 = vector.shape_cast %60 : vector<1x256x8xf32> to vector<256x8xf32>
    %62 = vector.shape_cast %59 : vector<256x8xf32> to vector<1x256x8xf32>
    tpu.vector_store %arg8[%c0_65, %c0_66, %c0_67], %62 {strides = array<i32>} : memref<1x256x8xf32, #tpu.memory_space<vmem>>, vector<1x256x8xf32>,
    return
  }
  func.func @transform_0(%arg0: i32) -> (i32, i32, i32) {
    %c0_i32 = arith.constant 0 : i32
    %c0_i32_0 = arith.constant 0 : i32
    %c0_i32_1 = arith.constant 0 : i32
    return %arg0, %c0_i32, %c0_i32_0 : i32, i32, i32
  }
  func.func @transform_1(%arg0: i32) -> (i32, i32, i32) {
    %c0_i32 = arith.constant 0 : i32
    %c0_i32_0 = arith.constant 0 : i32
    %c0_i32_1 = arith.constant 0 : i32
    return %arg0, %c0_i32, %c0_i32_0 : i32, i32, i32
  }
  func.func @transform_2(%arg0: i32) -> (i32, i32, i32) {
    %c0_i32 = arith.constant 0 : i32
    %c0_i32_0 = arith.constant 0 : i32
    %c0_i32_1 = arith.constant 0 : i32
    return %arg0, %c0_i32, %c0_i32_0 : i32, i32, i32
  }
  func.func @transform_3(%arg0: i32) -> (i32, i32, i32) {
    %c0_i32 = arith.constant 0 : i32
    %c0_i32_0 = arith.constant 0 : i32
    %c0_i32_1 = arith.constant 0 : i32
    return %arg0, %c0_i32, %c0_i32_0 : i32, i32, i32
  }
  func.func @transform_4(%arg0: i32) -> (i32, i32, i32, i32) {
    %c0_i32 = arith.constant 0 : i32
    %c0_i32_0 = arith.constant 0 : i32
    %c0_i32_1 = arith.constant 0 : i32
    %c0_i32_2 = arith.constant 0 : i32
    %c0_i32_3 = arith.constant 0 : i32
    return %c0_i32, %c0_i32_0, %c0_i32_1, %c0_i32_2 : i32, i32, i32, i32
  }
  func.func @transform_5(%arg0: i32) -> (i32, i32) {
    %c0_i32 = arith.constant 0 : i32
    %c0_i32_0 = arith.constant 0 : i32
    %c0_i32_1 = arith.constant 0 : i32
    return %c0_i32, %c0_i32_0 : i32, i32
  }
  func.func @transform_6(%arg0: i32) -> (i32, i32) {
    %c0_i32 = arith.constant 0 : i32
    %c0_i32_0 = arith.constant 0 : i32
    %c0_i32_1 = arith.constant 0 : i32
    return %c0_i32, %c0_i32_0 : i32, i32
  }
  func.func @transform_7(%arg0: i32) -> (i32, i32, i32) {
    %c0_i32 = arith.constant 0 : i32
    %c0_i32_0 = arith.constant 0 : i32
    %c0_i32_1 = arith.constant 0 : i32
    return %arg0, %c0_i32, %c0_i32_0 : i32, i32, i32
  }
}

</mosaic_0001>

<llo_original>
// kernel: tpu_custom_call.1
$region0: #{tpu_custom_call.1}
  #allocation0 [shape = 'u32[]', space=smem, size = 0x4, offset = 0x4, fixed_abs, tag = 'smem constant byte address 0x4 - core index']
  #allocation1 [shape = 'u32[144,128]{1,0:T(1,128)}', space=vmem, size = 0x12000, scoped, tag = 'internal scratch']
  %s0 = inlined_call_operand.vmem [shape: f32[2,272,6], index: 0, kind: input, shape index: {}]
  %s1 = inlined_call_operand.vmem [shape: f32[2,272,6], index: 1, kind: input, shape index: {}]
  %s2 = inlined_call_operand.vmem [shape: f32[2,272,6], index: 2, kind: input, shape index: {}]
  %s3 = inlined_call_operand.vmem [shape: f32[2,272,6], index: 3, kind: input, shape index: {}]
  %s4 = inlined_call_operand.vmem [shape: f32[4,2,6,8], index: 4, kind: input, shape index: {}]
  %s5 = inlined_call_operand.vmem [shape: f32[1,8], index: 5, kind: input, shape index: {}]
  %s6 = inlined_call_operand.vmem [shape: f32[1,8], index: 6, kind: input, shape index: {}]
  %s7 = inlined_call_operand.vmem [shape: f32[2,256,8], index: 7, kind: output, shape index: {}]
  %s8 = sld [smem:[#allocation0]]
  $region61: #{tpu_custom_call.1} parent=0
    _
  %s10 = ssub.s32 1, %s8
  %s11 = scalar_select 0, %s10, %s8
  loop: start=0, step=1, limit=4
  $region2: #{tpu_custom_call.1} parent=0 // loop_pre_header
    _
  $region3: #{tpu_custom_call.1} parent=0 // loop_header
    %s13 = sphi 0, %s17
    %p14 = scmp.ge.s32.totalorder %s13, 4
    %s23 = sphi 0, %s25
    %s26 = sphi 0, %s23
    %s27 = sphi 0, %s26
    %s43 = sphi 0, %s27
    %s49 = sphi 0, %s51
    %s52 = sphi 0, %s49
    %s53 = sphi 0, %s52
    %s69 = sphi 0, %s53
    %s75 = sphi 0, %s77
    %s78 = sphi 0, %s75
    %s79 = sphi 0, %s78
    %s95 = sphi 0, %s79
    %s101 = sphi 0, %s103
    %s104 = sphi 0, %s101
    %s105 = sphi 0, %s104
    %s121 = sphi 0, %s105
    %s125 = sphi 0, %s125
    %s127 = sphi 0, %s125
    %s128 = sphi 0, %s127
    %s142 = sphi 0, %s128
    %s146 = sphi 0, %s146
    %s148 = sphi 0, %s146
    %s149 = sphi 0, %s148
    %s163 = sphi 0, %s149
    %s167 = sphi 0, %s167
    %s169 = sphi 0, %s167
    %s170 = sphi 0, %s169
    %s184 = sphi 0, %s170
    %s190 = sphi 0, %s192
    %s193 = sphi 0, %s190
    %s194 = sphi 0, %s193
    %s210 = sphi 0, %s194
  $region4: #{tpu_custom_call.1} parent=0 // loop_header_branch
    %16 = sbr.rel (%p14) target = $region8
  $region5: #{tpu_custom_call.1} parent=0 // loop_body
    %s18 = ssub.s32 %s13, 1
    %s19 = ssub.s32 %s13, 2
    %s20 = sadd.s32 %s13, 1
    %s21 = ssub.s32 %s13, %s20
    %p22 = scmp.eq.s32.totalorder %s21, 0
    %s24 = sadd.s32 %s23, 1
    %s25 = scalar_select %p22, %s23, %s24
    %p28 = pneg %p22
    %p29 = scmp.eq.s32.totalorder %s13, 1
    %p30 = por %p28, %p29
    %p31 = scmp.ne.s32.totalorder %s23, %s26
    %p32 = scmp.eq.s32.totalorder %s13, 0
    %p33 = por %p31, %p32
    %p34 = scmp.ne.s32.totalorder %s23, %s26
    %p35 = scmp.eq.s32.totalorder %s18, 1
    %p36 = por %p34, %p35
    %p37 = scmp.ne.s32.totalorder %s26, %s27
    %p38 = scmp.eq.s32.totalorder %s18, 0
    %p39 = por %p37, %p38
    %p40 = scmp.ne.s32.totalorder %s26, %s27
    %p41 = scmp.eq.s32.totalorder %s19, 1
    %p42 = por %p40, %p41
    %p44 = scmp.ne.s32.totalorder %s27, %s43
    %p45 = scmp.eq.s32.totalorder %s19, 0
    %p46 = por %p44, %p45
    %s47 = ssub.s32 %s13, %s20
    %p48 = scmp.eq.s32.totalorder %s47, 0
    %s50 = sadd.s32 %s49, 1
    %s51 = scalar_select %p48, %s49, %s50
    %p54 = pneg %p48
    %p55 = scmp.eq.s32.totalorder %s13, 1
    %p56 = por %p54, %p55
    %p57 = scmp.ne.s32.totalorder %s49, %s52
    %p58 = scmp.eq.s32.totalorder %s13, 0
    %p59 = por %p57, %p58
    %p60 = scmp.ne.s32.totalorder %s49, %s52
    %p61 = scmp.eq.s32.totalorder %s18, 1
    %p62 = por %p60, %p61
    %p63 = scmp.ne.s32.totalorder %s52, %s53
    %p64 = scmp.eq.s32.totalorder %s18, 0
    %p65 = por %p63, %p64
    %p66 = scmp.ne.s32.totalorder %s52, %s53
    %p67 = scmp.eq.s32.totalorder %s19, 1
    %p68 = por %p66, %p67
    %p70 = scmp.ne.s32.totalorder %s53, %s69
    %p71 = scmp.eq.s32.totalorder %s19, 0
    %p72 = por %p70, %p71
    %s73 = ssub.s32 %s13, %s20
    %p74 = scmp.eq.s32.totalorder %s73, 0
    %s76 = sadd.s32 %s75, 1
    %s77 = scalar_select %p74, %s75, %s76
    %p80 = pneg %p74
    %p81 = scmp.eq.s32.totalorder %s13, 1
    %p82 = por %p80, %p81
    %p83 = scmp.ne.s32.totalorder %s75, %s78
    %p84 = scmp.eq.s32.totalorder %s13, 0
    %p85 = por %p83, %p84
    %p86 = scmp.ne.s32.totalorder %s75, %s78
    %p87 = scmp.eq.s32.totalorder %s18, 1
    %p88 = por %p86, %p87
    %p89 = scmp.ne.s32.totalorder %s78, %s79
    %p90 = scmp.eq.s32.totalorder %s18, 0
    %p91 = por %p89, %p90
    %p92 = scmp.ne.s32.totalorder %s78, %s79
    %p93 = scmp.eq.s32.totalorder %s19, 1
    %p94 = por %p92, %p93
    %p96 = scmp.ne.s32.totalorder %s79, %s95
    %p97 = scmp.eq.s32.totalorder %s19, 0
    %p98 = por %p96, %p97
    %s99 = ssub.s32 %s13, %s20
    %p100 = scmp.eq.s32.totalorder %s99, 0
    %s102 = sadd.s32 %s101, 1
    %s103 = scalar_select %p100, %s101, %s102
    %p106 = pneg %p100
    %p107 = scmp.eq.s32.totalorder %s13, 1
    %p108 = por %p106, %p107
    %p109 = scmp.ne.s32.totalorder %s101, %s104
    %p110 = scmp.eq.s32.totalorder %s13, 0
    %p111 = por %p109, %p110
    %p112 = scmp.ne.s32.totalorder %s101, %s104
    %p113 = scmp.eq.s32.totalorder %s18, 1
    %p114 = por %p112, %p113
    %p115 = scmp.ne.s32.totalorder %s104, %s105
    %p116 = scmp.eq.s32.totalorder %s18, 0
    %p117 = por %p115, %p116
    %p118 = scmp.ne.s32.totalorder %s104, %s105
    %p119 = scmp.eq.s32.totalorder %s19, 1
    %p120 = por %p118, %p119
    %p122 = scmp.ne.s32.totalorder %s105, %s121
    %p123 = scmp.eq.s32.totalorder %s19, 0
    %p124 = por %p122, %p123
    %s126 = sadd.s32 %s125, 1
    %p129 = scmp.eq.s32.totalorder %s13, 1
    %p130 = scmp.ne.s32.totalorder %s125, %s127
    %p131 = scmp.eq.s32.totalorder %s13, 0
    %p132 = por %p130, %p131
    %p133 = scmp.ne.s32.totalorder %s125, %s127
    %p134 = scmp.eq.s32.totalorder %s18, 1
    %p135 = por %p133, %p134
    %p136 = scmp.ne.s32.totalorder %s127, %s128
    %p137 = scmp.eq.s32.totalorder %s18, 0
    %p138 = por %p136, %p137
    %p139 = scmp.ne.s32.totalorder %s127, %s128
    %p140 = scmp.eq.s32.totalorder %s19, 1
    %p141 = por %p139, %p140
    %p143 = scmp.ne.s32.totalorder %s128, %s142
    %p144 = scmp.eq.s32.totalorder %s19, 0
    %p145 = por %p143, %p144
    %s147 = sadd.s32 %s146, 1
    %p150 = scmp.eq.s32.totalorder %s13, 1
    %p151 = scmp.ne.s32.totalorder %s146, %s148
    %p152 = scmp.eq.s32.totalorder %s13, 0
    %p153 = por %p151, %p152
    %p154 = scmp.ne.s32.totalorder %s146, %s148
    %p155 = scmp.eq.s32.totalorder %s18, 1
    %p156 = por %p154, %p155
    %p157 = scmp.ne.s32.totalorder %s148, %s149
    %p158 = scmp.eq.s32.totalorder %s18, 0
    %p159 = por %p157, %p158
    %p160 = scmp.ne.s32.totalorder %s148, %s149
    %p161 = scmp.eq.s32.totalorder %s19, 1
    %p162 = por %p160, %p161
    %p164 = scmp.ne.s32.totalorder %s149, %s163
    %p165 = scmp.eq.s32.totalorder %s19, 0
    %p166 = por %p164, %p165
    %s168 = sadd.s32 %s167, 1
    %p171 = scmp.eq.s32.totalorder %s13, 1
    %p172 = scmp.ne.s32.totalorder %s167, %s169
    %p173 = scmp.eq.s32.totalorder %s13, 0
    %p174 = por %p172, %p173
    %p175 = scmp.ne.s32.totalorder %s167, %s169
    %p176 = scmp.eq.s32.totalorder %s18, 1
    %p177 = por %p175, %p176
    %p178 = scmp.ne.s32.totalorder %s169, %s170
    %p179 = scmp.eq.s32.totalorder %s18, 0
    %p180 = por %p178, %p179
    %p181 = scmp.ne.s32.totalorder %s169, %s170
    %p182 = scmp.eq.s32.totalorder %s19, 1
    %p183 = por %p181, %p182
    %p185 = scmp.ne.s32.totalorder %s170, %s184
    %p186 = scmp.eq.s32.totalorder %s19, 0
    %p187 = por %p185, %p186
    %s188 = ssub.s32 %s13, %s20
    %p189 = scmp.eq.s32.totalorder %s188, 0
    %s191 = sadd.s32 %s190, 1
    %s192 = scalar_select %p189, %s190, %s191
    %p195 = pneg %p189
    %p196 = scmp.eq.s32.totalorder %s13, 1
    %p197 = por %p195, %p196
    %p198 = scmp.ne.s32.totalorder %s190, %s193
    %p199 = scmp.eq.s32.totalorder %s13, 0
    %p200 = por %p198, %p199
    %p201 = scmp.ne.s32.totalorder %s190, %s193
    %p202 = scmp.eq.s32.totalorder %s18, 1
    %p203 = por %p201, %p202
    %p204 = scmp.ne.s32.totalorder %s193, %s194
    %p205 = scmp.eq.s32.totalorder %s18, 0
    %p206 = por %p204, %p205
    %p207 = scmp.ne.s32.totalorder %s193, %s194
    %p208 = scmp.eq.s32.totalorder %s19, 1
    %p209 = por %p207, %p208
    %p211 = scmp.ne.s32.totalorder %s194, %s210
    %p212 = scmp.eq.s32.totalorder %s19, 0
    %p213 = por %p211, %p212
    %p214 = scmp.le.s32.totalorder 1, %s13
    %p215 = scmp.lt.s32.totalorder %s13, 3
    %p216 = pnand %p214, %p215
    %p217 = pneg %p216
    // Predicated region
    $region9: #{tpu_custom_call.1} parent=5 // pred_check
      _
    $region10: #{tpu_custom_call.1} parent=5 // pred_check_branch
      %219 = sbr.rel (%p216) target = $region12
    $region11: #{tpu_custom_call.1} parent=5 // pred_region
      %s220 = ssub.s32 %s13, 1
      // Predicated region
      $region13: #{tpu_custom_call.1} parent=11 // pred_check
        %p221 = pneg %p138
      $region14: #{tpu_custom_call.1} parent=11 // pred_check_branch
        %223 = sbr.rel (%p221) target = $region16
      $region15: #{tpu_custom_call.1} parent=11 // pred_region
        _
      $region16: #{tpu_custom_call.1} parent=11 // pred_fallthru
        _
      // Predicated region
      $region17: #{tpu_custom_call.1} parent=11 // pred_check
        %p224 = pneg %p159
      $region18: #{tpu_custom_call.1} parent=11 // pred_check_branch
        %226 = sbr.rel (%p224) target = $region20
      $region19: #{tpu_custom_call.1} parent=11 // pred_region
        _
      $region20: #{tpu_custom_call.1} parent=11 // pred_fallthru
        _
      // Predicated region
      $region21: #{tpu_custom_call.1} parent=11 // pred_check
        %p227 = pneg %p180
      $region22: #{tpu_custom_call.1} parent=11 // pred_check_branch
        %229 = sbr.rel (%p227) target = $region24
      $region23: #{tpu_custom_call.1} parent=11 // pred_region
        _
      $region24: #{tpu_custom_call.1} parent=11 // pred_fallthru
        _
    $region12: #{tpu_custom_call.1} parent=5 // pred_fallthru
      _
    %p230 = scmp.lt.s32.totalorder %s13, 2
    // Predicated region
    $region25: #{tpu_custom_call.1} parent=5 // pred_check
      %p231 = pneg %p230
    $region26: #{tpu_custom_call.1} parent=5 // pred_check_branch
      %233 = sbr.rel (%p231) target = $region28
    $region27: #{tpu_custom_call.1} parent=5 // pred_region
      // Predicated region
      $region29: #{tpu_custom_call.1} parent=27 // pred_check
        %p234 = pneg %p33
      $region30: #{tpu_custom_call.1} parent=27 // pred_check_branch
        %236 = sbr.rel (%p234) target = $region32
      $region31: #{tpu_custom_call.1} parent=27 // pred_region
        %p237 = scmp.lt.s32.totalorder %s13, 1
        %s238 = scalar_select %p237, %s13, 1
        %s239 = smul.addr %s238, 34
        %s240 = smul.addr %s239, 8
        %s241 = scalar_lea.vmem %s0, %s240
      $region32: #{tpu_custom_call.1} parent=27 // pred_fallthru
        _
      // Predicated region
      $region33: #{tpu_custom_call.1} parent=27 // pred_check
        %p242 = pneg %p59
      $region34: #{tpu_custom_call.1} parent=27 // pred_check_branch
        %244 = sbr.rel (%p242) target = $region36
      $region35: #{tpu_custom_call.1} parent=27 // pred_region
        %p245 = scmp.lt.s32.totalorder %s13, 1
        %s246 = scalar_select %p245, %s13, 1
        %s247 = smul.addr %s246, 34
        %s248 = smul.addr %s247, 8
        %s249 = scalar_lea.vmem %s1, %s248
      $region36: #{tpu_custom_call.1} parent=27 // pred_fallthru
        _
      // Predicated region
      $region37: #{tpu_custom_call.1} parent=27 // pred_check
        %p250 = pneg %p85
      $region38: #{tpu_custom_call.1} parent=27 // pred_check_branch
        %252 = sbr.rel (%p250) target = $region40
      $region39: #{tpu_custom_call.1} parent=27 // pred_region
        %p253 = scmp.lt.s32.totalorder %s13, 1
        %s254 = scalar_select %p253, %s13, 1
        %s255 = smul.addr %s254, 34
        %s256 = smul.addr %s255, 8
        %s257 = scalar_lea.vmem %s2, %s256
      $region40: #{tpu_custom_call.1} parent=27 // pred_fallthru
        _
      // Predicated region
      $region41: #{tpu_custom_call.1} parent=27 // pred_check
        %p258 = pneg %p111
      $region42: #{tpu_custom_call.1} parent=27 // pred_check_branch
        %260 = sbr.rel (%p258) target = $region44
      $region43: #{tpu_custom_call.1} parent=27 // pred_region
        %p261 = scmp.lt.s32.totalorder %s13, 1
        %s262 = scalar_select %p261, %s13, 1
        %s263 = smul.addr %s262, 34
        %s264 = smul.addr %s263, 8
        %s265 = scalar_lea.vmem %s3, %s264
      $region44: #{tpu_custom_call.1} parent=27 // pred_fallthru
        _
    $region28: #{tpu_custom_call.1} parent=5 // pred_fallthru
      _
    %p266 = scmp.le.s32.totalorder 1, %s13
    %p267 = scmp.lt.s32.totalorder %s13, 3
    %p268 = pnand %p266, %p267
    %p269 = pneg %p268
    // Predicated region
    $region45: #{tpu_custom_call.1} parent=5 // pred_check
      _
    $region46: #{tpu_custom_call.1} parent=5 // pred_check_branch
      %271 = sbr.rel (%p268) target = $region48
    $region47: #{tpu_custom_call.1} parent=5 // pred_region
      %s272 = ssub.s32 %s13, 1
      %p273 = scmp.lt.s32.totalorder %s18, 1
      %s274 = scalar_select %p273, %s18, 1
      %s275 = smul.addr %s274, 34
      %s276 = smul.addr %s275, 8
      %s277 = scalar_lea.vmem %s0, %s276
      %p278 = pneg %p39
      %p279 = pneg %p36
      %p280 = scmp.lt.s32.totalorder %s18, 1
      %s281 = scalar_select %p280, %s18, 1
      %s282 = smul.addr %s281, 34
      %s283 = smul.addr %s282, 8
      %s284 = scalar_lea.vmem %s1, %s283
      %p285 = pneg %p65
      %p286 = pneg %p62
      %p287 = scmp.lt.s32.totalorder %s18, 1
      %s288 = scalar_select %p287, %s18, 1
      %s289 = smul.addr %s288, 34
      %s290 = smul.addr %s289, 8
      %s291 = scalar_lea.vmem %s2, %s290
      %p292 = pneg %p91
      %p293 = pneg %p88
      %p294 = scmp.lt.s32.totalorder %s18, 1
      %s295 = scalar_select %p294, %s18, 1
      %s296 = smul.addr %s295, 34
      %s297 = smul.addr %s296, 8
      %s298 = scalar_lea.vmem %s3, %s297
      %p299 = pneg %p117
      %p300 = pneg %p114
      %p301 = pneg %p138
      %p302 = pneg %p135
      %p303 = pneg %p159
      %p304 = pneg %p156
      %p305 = pneg %p180
      %p306 = pneg %p177
      %p307 = pneg %p206
      %p308 = pneg %p203
      %p309 = scmp.lt.s32.totalorder %s18, 1
      %s310 = scalar_select %p309, %s18, 1
      %s311 = smul.addr %s310, 32
      %s312 = smul.addr %s311, 8
      %s313 = scalar_lea.vmem %s7, %s312
      %p314 = scmp.lt.s32.totalorder %s18, 1
      %s315 = scalar_select %p314, %s18, 1
      %s316 = smul.addr %s315, 34
      %s317 = smul.addr %s316, 8
      %s318 = scalar_lea.vmem %s0, %s317
      %p319 = scmp.lt.s32.totalorder %s18, 1
      %s320 = scalar_select %p319, %s18, 1
      %s321 = smul.addr %s320, 34
      %s322 = smul.addr %s321, 8
      %s323 = scalar_lea.vmem %s1, %s322
      %p324 = scmp.lt.s32.totalorder %s18, 1
      %s325 = scalar_select %p324, %s18, 1
      %s326 = smul.addr %s325, 34
      %s327 = smul.addr %s326, 8
      %s328 = scalar_lea.vmem %s2, %s327
      %p329 = scmp.lt.s32.totalorder %s18, 1
      %s330 = scalar_select %p329, %s18, 1
      %s331 = smul.addr %s330, 34
      %s332 = smul.addr %s331, 8
      %s333 = scalar_lea.vmem %s3, %s332
      %p334 = scmp.lt.s32.totalorder %s18, 1
      %s335 = scalar_select %p334, %s18, 1
      %s336 = smul.addr %s335, 32
      %s337 = smul.addr %s336, 8
      %s338 = scalar_lea.vmem %s7, %s337
      %v339 = vld [vmem:[%s318] sm:$0xff]
      %v340 = vld [vmem:[%s318 + $0x8] sm:$0xff]
      %v341 = vld [vmem:[%s318 + $0x10] sm:$0xff]
      %v342 = vld [vmem:[%s318 + $0x18] sm:$0xff]
      %v343 = vld [vmem:[%s318 + $0x20] sm:$0xff]
      %v344 = vld [vmem:[%s318 + $0x28] sm:$0xff]
      %v345 = vld [vmem:[%s318 + $0x30] sm:$0xff]
      %v346 = vld [vmem:[%s318 + $0x38] sm:$0xff]
      %v347 = vld [vmem:[%s318 + $0x40] sm:$0xff]
      %v348 = vld [vmem:[%s318 + $0x48] sm:$0xff]
      %v349 = vld [vmem:[%s318 + $0x50] sm:$0xff]
      %v350 = vld [vmem:[%s318 + $0x58] sm:$0xff]
      %v351 = vld [vmem:[%s318 + $0x60] sm:$0xff]
      %v352 = vld [vmem:[%s318 + $0x68] sm:$0xff]
      %v353 = vld [vmem:[%s318 + $0x70] sm:$0xff]
      %v354 = vld [vmem:[%s318 + $0x78] sm:$0xff]
      %v355 = vld [vmem:[%s318 + $0x80] sm:$0xff]
      %v356 = vld [vmem:[%s318 + $0x88] sm:$0xff]
      %v357 = vld [vmem:[%s318 + $0x90] sm:$0xff]
      %v358 = vld [vmem:[%s318 + $0x98] sm:$0xff]
      %v359 = vld [vmem:[%s318 + $0xa0] sm:$0xff]
      %v360 = vld [vmem:[%s318 + $0xa8] sm:$0xff]
      %v361 = vld [vmem:[%s318 + $0xb0] sm:$0xff]
      %v362 = vld [vmem:[%s318 + $0xb8] sm:$0xff]
      %v363 = vld [vmem:[%s318 + $0xc0] sm:$0xff]
      %v364 = vld [vmem:[%s318 + $0xc8] sm:$0xff]
      %v365 = vld [vmem:[%s318 + $0xd0] sm:$0xff]
      %v366 = vld [vmem:[%s318 + $0xd8] sm:$0xff]
      %v367 = vld [vmem:[%s318 + $0xe0] sm:$0xff]
      %v368 = vld [vmem:[%s318 + $0xe8] sm:$0xff]
      %v369 = vld [vmem:[%s318 + $0xf0] sm:$0xff]
      %v370 = vld [vmem:[%s318 + $0xf8] sm:$0xff]
      %v371 = vld [vmem:[%s4] sm:$0x3f]
      %v372 = vld [vmem:[%s318 + $0x100] sm:$0xff]
      %v373 = vld [vmem:[%s318 + $0x108] sm:$0xff]
      %s374 = scalar_lea.vmem %s4, 8
      %v375 = vld [vmem:[%s374] sm:$0x3f]
      %vm376 = vcmask 48128
      %v378 = vsel %vm376, %v341, 0
      %v381 = vsel %vm376, %v342, 0
      %v384 = vsel %vm376, %v343, 0
      %v387 = vsel %vm376, %v344, 0
      %v390 = vsel %vm376, %v345, 0
      %v393 = vsel %vm376, %v346, 0
      %v396 = vsel %vm376, %v347, 0
      %v399 = vsel %vm376, %v348, 0
      %v402 = vsel %vm376, %v349, 0
      %v405 = vsel %vm376, %v350, 0
      %v408 = vsel %vm376, %v351, 0
      %v411 = vsel %vm376, %v352, 0
      %v414 = vsel %vm376, %v353, 0
      %v417 = vsel %vm376, %v354, 0
      %v420 = vsel %vm376, %v355, 0
      %v423 = vsel %vm376, %v356, 0
      %v426 = vsel %vm376, %v357, 0
      %v429 = vsel %vm376, %v358, 0
      %v432 = vsel %vm376, %v359, 0
      %v435 = vsel %vm376, %v360, 0
      %v438 = vsel %vm376, %v361, 0
      %v441 = vsel %vm376, %v362, 0
      %v444 = vsel %vm376, %v363, 0
      %v447 = vsel %vm376, %v364, 0
      %v450 = vsel %vm376, %v365, 0
      %v453 = vsel %vm376, %v366, 0
      %v456 = vsel %vm376, %v367, 0
      %v459 = vsel %vm376, %v368, 0
      %v462 = vsel %vm376, %v369, 0
      %v465 = vsel %vm376, %v370, 0
      %v468 = vsel %vm376, %v372, 0
      %v471 = vsel %vm376, %v373, 0
      %vm473 = vcmask 1045504
      %v475 = vsel %vm473, %v375, 0
      %477 = vmatprep.subr.mxu0 0.0
      %478 = vmatpush1.msra.mxu0 0.0
      %479 = vmatprep.subr.mxu0 0.0
      %480 = vmatpush1.msra.mxu0 0.0
      %481 = vmatprep.subr.mxu0 0.0
      %482 = vmatpush1.msra.mxu0 0.0
      %483 = vmatprep.subr.mxu0 0.0
      %484 = vmatpush1.msra.mxu0 0.0
      %485 = vmatprep.subr.mxu0 0.0
      %486 = vmatpush1.msra.mxu0 0.0
      %487 = vmatprep.subr.mxu0 0.0
      %488 = vmatpush1.msra.mxu0 0.0
      %489 = vmatprep.subr.mxu0 0.0
      %490 = vmatpush1.msra.mxu0 0.0
      %491 = vmatprep.subr.mxu0 0.0
      %492 = vmatpush1.msra.mxu0 0.0
      %493 = vmatprep.subr.mxu0 0.0
      %494 = vmatpush1.msra.mxu0 0.0
      %495 = vmatprep.subr.mxu0 0.0
      %496 = vmatpush1.msra.mxu0 0.0
      %497 = vmatprep.subr.mxu0 0.0
      %498 = vmatpush1.msra.mxu0 0.0
      %499 = vmatprep.subr.mxu0 0.0
      %500 = vmatpush1.msra.mxu0 0.0
      %501 = vmatprep.subr.mxu0 0.0
      %502 = vmatpush1.msra.mxu0 0.0
      %503 = vmatprep.subr.mxu0 0.0
      %504 = vmatpush1.msra.mxu0 0.0
      %505 = vmatprep.subr.mxu0 0.0
      %506 = vmatpush1.msra.mxu0 0.0
      %507 = vmatprep.subr.mxu0 0.0
      %508 = vmatpush1.msra.mxu0 %v475
      %509 = vmatprep.subr.mxu0 0.0
      %510 = vmatpush2.msra.mxu0 0.0
      %511 = vmatprep.subr.mxu0 0.0
      %512 = vmatpush2.msra.mxu0 0.0
      %513 = vmatprep.subr.mxu0 0.0
      %514 = vmatpush2.msra.mxu0 0.0
      %515 = vmatprep.subr.mxu0 0.0
      %516 = vmatpush2.msra.mxu0 0.0
      %517 = vmatprep.subr.mxu0 0.0
      %518 = vmatpush2.msra.mxu0 0.0
      %519 = vmatprep.subr.mxu0 0.0
      %520 = vmatpush2.msra.mxu0 0.0
      %521 = vmatprep.subr.mxu0 0.0
      %522 = vmatpush2.msra.mxu0 0.0
      %523 = vmatprep.subr.mxu0 0.0
      %524 = vmatpush2.msra.mxu0 0.0
      %525 = vmatprep.subr.mxu0 0.0
      %526 = vmatpush2.msra.mxu0 0.0
      %527 = vmatprep.subr.mxu0 0.0
      %528 = vmatpush2.msra.mxu0 0.0
      %529 = vmatprep.subr.mxu0 0.0
      %530 = vmatpush2.msra.mxu0 0.0
      %531 = vmatprep.subr.mxu0 0.0
      %532 = vmatpush2.msra.mxu0 0.0
      %533 = vmatprep.subr.mxu0 0.0
      %534 = vmatpush2.msra.mxu0 0.0
      %535 = vmatprep.subr.mxu0 0.0
      %536 = vmatpush2.msra.mxu0 0.0
      %537 = vmatprep.subr.mxu0 0.0
      %538 = vmatpush2.msra.mxu0 0.0
      %539 = vmatprep.subr.mxu0 0.0
      %540 = vmatpush2.msra.mxu0 0.0
      %541 = vmatprep.mubr.f32.mxu0 0.0
      %542 = vmatmul.mubr.f32.gmra.mxu0 %v378
      %v543 = vpop.f32.mrf.mxu0
      %v544 = vadd.f32 0.0, %v543
      %v545 = vpop.f32.mrf.mxu0
      %546 = vmatprep.mubr.f32.mxu0 0.0
      %547 = vmatmul.mubr.f32.gmra.mxu0 %v381
      %v548 = vpop.f32.mrf.mxu0
      %v549 = vadd.f32 0.0, %v548
      %v550 = vpop.f32.mrf.mxu0
      %551 = vmatprep.mubr.f32.mxu0 0.0
      %552 = vmatmul.mubr.f32.gmra.mxu0 %v384
      %v553 = vpop.f32.mrf.mxu0
      %v554 = vadd.f32 0.0, %v553
      %v555 = vpop.f32.mrf.mxu0
      %556 = vmatprep.mubr.f32.mxu0 0.0
      %557 = vmatmul.mubr.f32.gmra.mxu0 %v387
      %v558 = vpop.f32.mrf.mxu0
      %v559 = vadd.f32 0.0, %v558
      %v560 = vpop.f32.mrf.mxu0
      %561 = vmatprep.mubr.f32.mxu0 0.0
      %562 = vmatmul.mubr.f32.gmra.mxu0 %v390
      %v563 = vpop.f32.mrf.mxu0
      %v564 = vadd.f32 0.0, %v563
      %v565 = vpop.f32.mrf.mxu0
      %566 = vmatprep.mubr.f32.mxu0 0.0
      %567 = vmatmul.mubr.f32.gmra.mxu0 %v393
      %v568 = vpop.f32.mrf.mxu0
      %v569 = vadd.f32 0.0, %v568
      %v570 = vpop.f32.mrf.mxu0
      %571 = vmatprep.mubr.f32.mxu0 0.0
      %572 = vmatmul.mubr.f32.gmra.mxu0 %v396
      %v573 = vpop.f32.mrf.mxu0
      %v574 = vadd.f32 0.0, %v573
      %v575 = vpop.f32.mrf.mxu0
      %576 = vmatprep.mubr.f32.mxu0 0.0
      %577 = vmatmul.mubr.f32.gmra.mxu0 %v399
      %v578 = vpop.f32.mrf.mxu0
      %v579 = vadd.f32 0.0, %v578
      %v580 = vpop.f32.mrf.mxu0
      %581 = vmatprep.mubr.f32.mxu0 0.0
      %582 = vmatmul.mubr.f32.gmra.mxu0 %v402
      %v583 = vpop.f32.mrf.mxu0
      %v584 = vadd.f32 0.0, %v583
      %v585 = vpop.f32.mrf.mxu0
      %586 = vmatprep.mubr.f32.mxu0 0.0
      %587 = vmatmul.mubr.f32.gmra.mxu0 %v405
      %v588 = vpop.f32.mrf.mxu0
      %v589 = vadd.f32 0.0, %v588
      %v590 = vpop.f32.mrf.mxu0
      %591 = vmatprep.mubr.f32.mxu0 0.0
      %592 = vmatmul.mubr.f32.gmra.mxu0 %v408
      %v593 = vpop.f32.mrf.mxu0
      %v594 = vadd.f32 0.0, %v593
      %v595 = vpop.f32.mrf.mxu0
      %596 = vmatprep.mubr.f32.mxu0 0.0
      %597 = vmatmul.mubr.f32.gmra.mxu0 %v411
      %v598 = vpop.f32.mrf.mxu0
      %v599 = vadd.f32 0.0, %v598
      %v600 = vpop.f32.mrf.mxu0
      %601 = vmatprep.mubr.f32.mxu0 0.0
      %602 = vmatmul.mubr.f32.gmra.mxu0 %v414
      %v603 = vpop.f32.mrf.mxu0
      %v604 = vadd.f32 0.0, %v603
      %v605 = vpop.f32.mrf.mxu0
      %606 = vmatprep.mubr.f32.mxu0 0.0
      %607 = vmatmul.mubr.f32.gmra.mxu0 %v417
      %v608 = vpop.f32.mrf.mxu0
      %v609 = vadd.f32 0.0, %v608
      %v610 = vpop.f32.mrf.mxu0
      %611 = vmatprep.mubr.f32.mxu0 0.0
      %612 = vmatmul.mubr.f32.gmra.mxu0 %v420
      %v613 = vpop.f32.mrf.mxu0
      %v614 = vadd.f32 0.0, %v613
      %v615 = vpop.f32.mrf.mxu0
      %616 = vmatprep.mubr.f32.mxu0 0.0
      %617 = vmatmul.mubr.f32.gmra.mxu0 %v423
      %v618 = vpop.f32.mrf.mxu0
      %v619 = vadd.f32 0.0, %v618
      %v620 = vpop.f32.mrf.mxu0
      %621 = vmatprep.mubr.f32.mxu0 0.0
      %622 = vmatmul.mubr.f32.gmra.mxu0 %v426
      %v623 = vpop.f32.mrf.mxu0
      %v624 = vadd.f32 0.0, %v623
      %v625 = vpop.f32.mrf.mxu0
      %626 = vmatprep.mubr.f32.mxu0 0.0
      %627 = vmatmul.mubr.f32.gmra.mxu0 %v429
      %v628 = vpop.f32.mrf.mxu0
      %v629 = vadd.f32 0.0, %v628
      %v630 = vpop.f32.mrf.mxu0
      %631 = vmatprep.mubr.f32.mxu0 0.0
      %632 = vmatmul.mubr.f32.gmra.mxu0 %v432
      %v633 = vpop.f32.mrf.mxu0
      %v634 = vadd.f32 0.0, %v633
      %v635 = vpop.f32.mrf.mxu0
      %636 = vmatprep.mubr.f32.mxu0 0.0
      %637 = vmatmul.mubr.f32.gmra.mxu0 %v435
      %v638 = vpop.f32.mrf.mxu0
      %v639 = vadd.f32 0.0, %v638
      %v640 = vpop.f32.mrf.mxu0
      %641 = vmatprep.mubr.f32.mxu0 0.0
      %642 = vmatmul.mubr.f32.gmra.mxu0 %v438
      %v643 = vpop.f32.mrf.mxu0
      %v644 = vadd.f32 0.0, %v643
      %v645 = vpop.f32.mrf.mxu0
      %646 = vmatprep.mubr.f32.mxu0 0.0
      %647 = vmatmul.mubr.f32.gmra.mxu0 %v441
      %v648 = vpop.f32.mrf.mxu0
      %v649 = vadd.f32 0.0, %v648
      %v650 = vpop.f32.mrf.mxu0
      %651 = vmatprep.mubr.f32.mxu0 0.0
      %652 = vmatmul.mubr.f32.gmra.mxu0 %v444
      %v653 = vpop.f32.mrf.mxu0
      %v654 = vadd.f32 0.0, %v653
      %v655 = vpop.f32.mrf.mxu0
      %656 = vmatprep.mubr.f32.mxu0 0.0
      %657 = vmatmul.mubr.f32.gmra.mxu0 %v447
      %v658 = vpop.f32.mrf.mxu0
      %v659 = vadd.f32 0.0, %v658
      %v660 = vpop.f32.mrf.mxu0
      %661 = vmatprep.mubr.f32.mxu0 0.0
      %662 = vmatmul.mubr.f32.gmra.mxu0 %v450
      %v663 = vpop.f32.mrf.mxu0
      %v664 = vadd.f32 0.0, %v663
      %v665 = vpop.f32.mrf.mxu0
      %666 = vmatprep.mubr.f32.mxu0 0.0
      %667 = vmatmul.mubr.f32.gmra.mxu0 %v453
      %v668 = vpop.f32.mrf.mxu0
      %v669 = vadd.f32 0.0, %v668
      %v670 = vpop.f32.mrf.mxu0
      %671 = vmatprep.mubr.f32.mxu0 0.0
      %672 = vmatmul.mubr.f32.gmra.mxu0 %v456
      %v673 = vpop.f32.mrf.mxu0
      %v674 = vadd.f32 0.0, %v673
      %v675 = vpop.f32.mrf.mxu0
      %676 = vmatprep.mubr.f32.mxu0 0.0
      %677 = vmatmul.mubr.f32.gmra.mxu0 %v459
      %v678 = vpop.f32.mrf.mxu0
      %v679 = vadd.f32 0.0, %v678
      %v680 = vpop.f32.mrf.mxu0
      %681 = vmatprep.mubr.f32.mxu0 0.0
      %682 = vmatmul.mubr.f32.gmra.mxu0 %v462
      %v683 = vpop.f32.mrf.mxu0
      %v684 = vadd.f32 0.0, %v683
      %v685 = vpop.f32.mrf.mxu0
      %686 = vmatprep.mubr.f32.mxu0 0.0
      %687 = vmatmul.mubr.f32.gmra.mxu0 %v465
      %v688 = vpop.f32.mrf.mxu0
      %v689 = vadd.f32 0.0, %v688
      %v690 = vpop.f32.mrf.mxu0
      %691 = vmatprep.mubr.f32.mxu0 0.0
      %692 = vmatmul.mubr.f32.gmra.mxu0 %v468
      %v693 = vpop.f32.mrf.mxu0
      %v694 = vadd.f32 0.0, %v693
      %v695 = vpop.f32.mrf.mxu0
      %696 = vmatprep.mubr.f32.mxu0 0.0
      %697 = vmatmul.mubr.f32.gmra.mxu0 %v471
      %v698 = vpop.f32.mrf.mxu0
      %v699 = vadd.f32 0.0, %v698
      %v700 = vpop.f32.mrf.mxu0
      %701 = vdwg.mxu0
      %v703 = vsel %vm376, %v339, 0
      %v706 = vsel %vm376, %v340, 0
      %v709 = vsel %vm473, %v371, 0
      %711 = vmatprep.subr.mxu0 0.0
      %712 = vmatpush1.msra.mxu0 0.0
      %713 = vmatprep.subr.mxu0 0.0
      %714 = vmatpush1.msra.mxu0 0.0
      %715 = vmatprep.subr.mxu0 0.0
      %716 = vmatpush1.msra.mxu0 0.0
      %717 = vmatprep.subr.mxu0 0.0
      %718 = vmatpush1.msra.mxu0 0.0
      %719 = vmatprep.subr.mxu0 0.0
      %720 = vmatpush1.msra.mxu0 0.0
      %721 = vmatprep.subr.mxu0 0.0
      %722 = vmatpush1.msra.mxu0 0.0
      %723 = vmatprep.subr.mxu0 0.0
      %724 = vmatpush1.msra.mxu0 0.0
      %725 = vmatprep.subr.mxu0 0.0
      %726 = vmatpush1.msra.mxu0 0.0
      %727 = vmatprep.subr.mxu0 0.0
      %728 = vmatpush1.msra.mxu0 0.0
      %729 = vmatprep.subr.mxu0 0.0
      %730 = vmatpush1.msra.mxu0 0.0
      %731 = vmatprep.subr.mxu0 0.0
      %732 = vmatpush1.msra.mxu0 0.0
      %733 = vmatprep.subr.mxu0 0.0
      %734 = vmatpush1.msra.mxu0 0.0
      %735 = vmatprep.subr.mxu0 0.0
      %736 = vmatpush1.msra.mxu0 0.0
      %737 = vmatprep.subr.mxu0 0.0
      %738 = vmatpush1.msra.mxu0 0.0
      %739 = vmatprep.subr.mxu0 0.0
      %740 = vmatpush1.msra.mxu0 0.0
      %741 = vmatprep.subr.mxu0 0.0
      %742 = vmatpush1.msra.mxu0 %v709
      %743 = vmatprep.subr.mxu0 0.0
      %744 = vmatpush2.msra.mxu0 0.0
      %745 = vmatprep.subr.mxu0 0.0
      %746 = vmatpush2.msra.mxu0 0.0
      %747 = vmatprep.subr.mxu0 0.0
      %748 = vmatpush2.msra.mxu0 0.0
      %749 = vmatprep.subr.mxu0 0.0
      %750 = vmatpush2.msra.mxu0 0.0
      %751 = vmatprep.subr.mxu0 0.0
      %752 = vmatpush2.msra.mxu0 0.0
      %753 = vmatprep.subr.mxu0 0.0
      %754 = vmatpush2.msra.mxu0 0.0
      %755 = vmatprep.subr.mxu0 0.0
      %756 = vmatpush2.msra.mxu0 0.0
      %757 = vmatprep.subr.mxu0 0.0
      %758 = vmatpush2.msra.mxu0 0.0
      %759 = vmatprep.subr.mxu0 0.0
      %760 = vmatpush2.msra.mxu0 0.0
      %761 = vmatprep.subr.mxu0 0.0
      %762 = vmatpush2.msra.mxu0 0.0
      %763 = vmatprep.subr.mxu0 0.0
      %764 = vmatpush2.msra.mxu0 0.0
      %765 = vmatprep.subr.mxu0 0.0
      %766 = vmatpush2.msra.mxu0 0.0
      %767 = vmatprep.subr.mxu0 0.0
      %768 = vmatpush2.msra.mxu0 0.0
      %769 = vmatprep.subr.mxu0 0.0
      %770 = vmatpush2.msra.mxu0 0.0
      %771 = vmatprep.subr.mxu0 0.0
      %772 = vmatpush2.msra.mxu0 0.0
      %773 = vmatprep.subr.mxu0 0.0
      %774 = vmatpush2.msra.mxu0 0.0
      %775 = vmatprep.mubr.f32.mxu0 0.0
      %776 = vmatmul.mubr.f32.gmra.mxu0 %v703
      %v777 = vpop.f32.mrf.mxu0
      %v778 = vadd.f32 %v544, %v777
      %v779 = vpop.f32.mrf.mxu0
      %780 = vmatprep.mubr.f32.mxu0 0.0
      %781 = vmatmul.mubr.f32.gmra.mxu0 %v706
      %v782 = vpop.f32.mrf.mxu0
      %v783 = vadd.f32 %v549, %v782
      %v784 = vpop.f32.mrf.mxu0
      %785 = vmatprep.mubr.f32.mxu0 0.0
      %786 = vmatmul.mubr.f32.gmra.mxu0 %v378
      %v787 = vpop.f32.mrf.mxu0
      %v788 = vadd.f32 %v554, %v787
      %v789 = vpop.f32.mrf.mxu0
      %790 = vmatprep.mubr.f32.mxu0 0.0
      %791 = vmatmul.mubr.f32.gmra.mxu0 %v381
      %v792 = vpop.f32.mrf.mxu0
      %v793 = vadd.f32 %v559, %v792
      %v794 = vpop.f32.mrf.mxu0
      %795 = vmatprep.mubr.f32.mxu0 0.0
      %796 = vmatmul.mubr.f32.gmra.mxu0 %v384
      %v797 = vpop.f32.mrf.mxu0
      %v798 = vadd.f32 %v564, %v797
      %v799 = vpop.f32.mrf.mxu0
      %800 = vmatprep.mubr.f32.mxu0 0.0
      %801 = vmatmul.mubr.f32.gmra.mxu0 %v387
      %v802 = vpop.f32.mrf.mxu0
      %v803 = vadd.f32 %v569, %v802
      %v804 = vpop.f32.mrf.mxu0
      %805 = vmatprep.mubr.f32.mxu0 0.0
      %806 = vmatmul.mubr.f32.gmra.mxu0 %v390
      %v807 = vpop.f32.mrf.mxu0
      %v808 = vadd.f32 %v574, %v807
      %v809 = vpop.f32.mrf.mxu0
      %810 = vmatprep.mubr.f32.mxu0 0.0
      %811 = vmatmul.mubr.f32.gmra.mxu0 %v393
      %v812 = vpop.f32.mrf.mxu0
      %v813 = vadd.f32 %v579, %v812
      %v814 = vpop.f32.mrf.mxu0
      %815 = vmatprep.mubr.f32.mxu0 0.0
      %816 = vmatmul.mubr.f32.gmra.mxu0 %v396
      %v817 = vpop.f32.mrf.mxu0
      %v818 = vadd.f32 %v584, %v817
      %v819 = vpop.f32.mrf.mxu0
      %820 = vmatprep.mubr.f32.mxu0 0.0
      %821 = vmatmul.mubr.f32.gmra.mxu0 %v399
      %v822 = vpop.f32.mrf.mxu0
      %v823 = vadd.f32 %v589, %v822
      %v824 = vpop.f32.mrf.mxu0
      %825 = vmatprep.mubr.f32.mxu0 0.0
      %826 = vmatmul.mubr.f32.gmra.mxu0 %v402
      %v827 = vpop.f32.mrf.mxu0
      %v828 = vadd.f32 %v594, %v827
      %v829 = vpop.f32.mrf.mxu0
      %830 = vmatprep.mubr.f32.mxu0 0.0
      %831 = vmatmul.mubr.f32.gmra.mxu0 %v405
      %v832 = vpop.f32.mrf.mxu0
      %v833 = vadd.f32 %v599, %v832
      %v834 = vpop.f32.mrf.mxu0
      %835 = vmatprep.mubr.f32.mxu0 0.0
      %836 = vmatmul.mubr.f32.gmra.mxu0 %v408
      %v837 = vpop.f32.mrf.mxu0
      %v838 = vadd.f32 %v604, %v837
      %v839 = vpop.f32.mrf.mxu0
      %840 = vmatprep.mubr.f32.mxu0 0.0
      %841 = vmatmul.mubr.f32.gmra.mxu0 %v411
      %v842 = vpop.f32.mrf.mxu0
      %v843 = vadd.f32 %v609, %v842
      %v844 = vpop.f32.mrf.mxu0
      %845 = vmatprep.mubr.f32.mxu0 0.0
      %846 = vmatmul.mubr.f32.gmra.mxu0 %v414
      %v847 = vpop.f32.mrf.mxu0
      %v848 = vadd.f32 %v614, %v847
      %v849 = vpop.f32.mrf.mxu0
      %850 = vmatprep.mubr.f32.mxu0 0.0
      %851 = vmatmul.mubr.f32.gmra.mxu0 %v417
      %v852 = vpop.f32.mrf.mxu0
      %v853 = vadd.f32 %v619, %v852
      %v854 = vpop.f32.mrf.mxu0
      %855 = vmatprep.mubr.f32.mxu0 0.0
      %856 = vmatmul.mubr.f32.gmra.mxu0 %v420
      %v857 = vpop.f32.mrf.mxu0
      %v858 = vadd.f32 %v624, %v857
      %v859 = vpop.f32.mrf.mxu0
      %860 = vmatprep.mubr.f32.mxu0 0.0
      %861 = vmatmul.mubr.f32.gmra.mxu0 %v423
      %v862 = vpop.f32.mrf.mxu0
      %v863 = vadd.f32 %v629, %v862
      %v864 = vpop.f32.mrf.mxu0
      %865 = vmatprep.mubr.f32.mxu0 0.0
      %866 = vmatmul.mubr.f32.gmra.mxu0 %v426
      %v867 = vpop.f32.mrf.mxu0
      %v868 = vadd.f32 %v634, %v867
      %v869 = vpop.f32.mrf.mxu0
      %870 = vmatprep.mubr.f32.mxu0 0.0
      %871 = vmatmul.mubr.f32.gmra.mxu0 %v429
      %v872 = vpop.f32.mrf.mxu0
      %v873 = vadd.f32 %v639, %v872
      %v874 = vpop.f32.mrf.mxu0
      %875 = vmatprep.mubr.f32.mxu0 0.0
      %876 = vmatmul.mubr.f32.gmra.mxu0 %v432
      %v877 = vpop.f32.mrf.mxu0
      %v878 = vadd.f32 %v644, %v877
      %v879 = vpop.f32.mrf.mxu0
      %880 = vmatprep.mubr.f32.mxu0 0.0
      %881 = vmatmul.mubr.f32.gmra.mxu0 %v435
      %v882 = vpop.f32.mrf.mxu0
      %v883 = vadd.f32 %v649, %v882
      %v884 = vpop.f32.mrf.mxu0
      %885 = vmatprep.mubr.f32.mxu0 0.0
      %886 = vmatmul.mubr.f32.gmra.mxu0 %v438
      %v887 = vpop.f32.mrf.mxu0
      %v888 = vadd.f32 %v654, %v887
      %v889 = vpop.f32.mrf.mxu0
      %890 = vmatprep.mubr.f32.mxu0 0.0
      %891 = vmatmul.mubr.f32.gmra.mxu0 %v441
      %v892 = vpop.f32.mrf.mxu0
      %v893 = vadd.f32 %v659, %v892
      %v894 = vpop.f32.mrf.mxu0
      %895 = vmatprep.mubr.f32.mxu0 0.0
      %896 = vmatmul.mubr.f32.gmra.mxu0 %v444
      %v897 = vpop.f32.mrf.mxu0
      %v898 = vadd.f32 %v664, %v897
      %v899 = vpop.f32.mrf.mxu0
      %900 = vmatprep.mubr.f32.mxu0 0.0
      %901 = vmatmul.mubr.f32.gmra.mxu0 %v447
      %v902 = vpop.f32.mrf.mxu0
      %v903 = vadd.f32 %v669, %v902
      %v904 = vpop.f32.mrf.mxu0
      %905 = vmatprep.mubr.f32.mxu0 0.0
      %906 = vmatmul.mubr.f32.gmra.mxu0 %v450
      %v907 = vpop.f32.mrf.mxu0
      %v908 = vadd.f32 %v674, %v907
      %v909 = vpop.f32.mrf.mxu0
      %910 = vmatprep.mubr.f32.mxu0 0.0
      %911 = vmatmul.mubr.f32.gmra.mxu0 %v453
      %v912 = vpop.f32.mrf.mxu0
      %v913 = vadd.f32 %v679, %v912
      %v914 = vpop.f32.mrf.mxu0
      %915 = vmatprep.mubr.f32.mxu0 0.0
      %916 = vmatmul.mubr.f32.gmra.mxu0 %v456
      %v917 = vpop.f32.mrf.mxu0
      %v918 = vadd.f32 %v684, %v917
      %v919 = vpop.f32.mrf.mxu0
      %920 = vmatprep.mubr.f32.mxu0 0.0
      %921 = vmatmul.mubr.f32.gmra.mxu0 %v459
      %v922 = vpop.f32.mrf.mxu0
      %v923 = vadd.f32 %v689, %v922
      %v924 = vpop.f32.mrf.mxu0
      %925 = vmatprep.mubr.f32.mxu0 0.0
      %926 = vmatmul.mubr.f32.gmra.mxu0 %v462
      %v927 = vpop.f32.mrf.mxu0
      %v928 = vadd.f32 %v694, %v927
      %v929 = vpop.f32.mrf.mxu0
      %930 = vmatprep.mubr.f32.mxu0 0.0
      %931 = vmatmul.mubr.f32.gmra.mxu0 %v465
      %v932 = vpop.f32.mrf.mxu0
      %v933 = vadd.f32 %v699, %v932
      %v934 = vpop.f32.mrf.mxu0
      %935 = vdwg.mxu0
      %v936 = vld [vmem:[%s323] sm:$0xff]
      %v937 = vld [vmem:[%s323 + $0x8] sm:$0xff]
      %v938 = vld [vmem:[%s323 + $0x10] sm:$0xff]
      %v939 = vld [vmem:[%s323 + $0x18] sm:$0xff]
      %v940 = vld [vmem:[%s323 + $0x20] sm:$0xff]
      %v941 = vld [vmem:[%s323 + $0x28] sm:$0xff]
      %v942 = vld [vmem:[%s323 + $0x30] sm:$0xff]
      %v943 = vld [vmem:[%s323 + $0x38] sm:$0xff]
      %v944 = vld [vmem:[%s323 + $0x40] sm:$0xff]
      %v945 = vld [vmem:[%s323 + $0x48] sm:$0xff]
      %v946 = vld [vmem:[%s323 + $0x50] sm:$0xff]
      %v947 = vld [vmem:[%s323 + $0x58] sm:$0xff]
      %v948 = vld [vmem:[%s323 + $0x60] sm:$0xff]
      %v949 = vld [vmem:[%s323 + $0x68] sm:$0xff]
      %v950 = vld [vmem:[%s323 + $0x70] sm:$0xff]
      %v951 = vld [vmem:[%s323 + $0x78] sm:$0xff]
      %v952 = vld [vmem:[%s323 + $0x80] sm:$0xff]
      %v953 = vld [vmem:[%s323 + $0x88] sm:$0xff]
      %v954 = vld [vmem:[%s323 + $0x90] sm:$0xff]
      %v955 = vld [vmem:[%s323 + $0x98] sm:$0xff]
      %v956 = vld [vmem:[%s323 + $0xa0] sm:$0xff]
      %v957 = vld [vmem:[%s323 + $0xa8] sm:$0xff]
      %v958 = vld [vmem:[%s323 + $0xb0] sm:$0xff]
      %v959 = vld [vmem:[%s323 + $0xb8] sm:$0xff]
      %v960 = vld [vmem:[%s323 + $0xc0] sm:$0xff]
      %v961 = vld [vmem:[%s323 + $0xc8] sm:$0xff]
      %v962 = vld [vmem:[%s323 + $0xd0] sm:$0xff]
      %v963 = vld [vmem:[%s323 + $0xd8] sm:$0xff]
      %v964 = vld [vmem:[%s323 + $0xe0] sm:$0xff]
      %v965 = vld [vmem:[%s323 + $0xe8] sm:$0xff]
      %v966 = vld [vmem:[%s323 + $0xf0] sm:$0xff]
      %v967 = vld [vmem:[%s323 + $0xf8] sm:$0xff]
      %s968 = scalar_lea.vmem %s4, 16
      %v969 = vld [vmem:[%s968] sm:$0x3f]
      %v971 = vsel %vm376, %v936, 0
      %v974 = vsel %vm376, %v937, 0
      %v977 = vsel %vm376, %v938, 0
      %v980 = vsel %vm376, %v939, 0
      %v983 = vsel %vm376, %v940, 0
      %v986 = vsel %vm376, %v941, 0
      %v989 = vsel %vm376, %v942, 0
      %v992 = vsel %vm376, %v943, 0
      %v995 = vsel %vm376, %v944, 0
      %v998 = vsel %vm376, %v945, 0
      %v1001 = vsel %vm376, %v946, 0
      %v1004 = vsel %vm376, %v947, 0
      %v1007 = vsel %vm376, %v948, 0
      %v1010 = vsel %vm376, %v949, 0
      %v1013 = vsel %vm376, %v950, 0
      %v1016 = vsel %vm376, %v951, 0
      %v1019 = vsel %vm376, %v952, 0
      %v1022 = vsel %vm376, %v953, 0
      %v1025 = vsel %vm376, %v954, 0
      %v1028 = vsel %vm376, %v955, 0
      %v1031 = vsel %vm376, %v956, 0
      %v1034 = vsel %vm376, %v957, 0
      %v1037 = vsel %vm376, %v958, 0
      %v1040 = vsel %vm376, %v959, 0
      %v1043 = vsel %vm376, %v960, 0
      %v1046 = vsel %vm376, %v961, 0
      %v1049 = vsel %vm376, %v962, 0
      %v1052 = vsel %vm376, %v963, 0
      %v1055 = vsel %vm376, %v964, 0
      %v1058 = vsel %vm376, %v965, 0
      %v1061 = vsel %vm376, %v966, 0
      %v1064 = vsel %vm376, %v967, 0
      %v1067 = vsel %vm473, %v969, 0
      %1069 = vmatprep.subr.mxu0 0.0
      %1070 = vmatpush1.msra.mxu0 0.0
      %1071 = vmatprep.subr.mxu0 0.0
      %1072 = vmatpush1.msra.mxu0 0.0
      %1073 = vmatprep.subr.mxu0 0.0
      %1074 = vmatpush1.msra.mxu0 0.0
      %1075 = vmatprep.subr.mxu0 0.0
      %1076 = vmatpush1.msra.mxu0 0.0
      %1077 = vmatprep.subr.mxu0 0.0
      %1078 = vmatpush1.msra.mxu0 0.0
      %1079 = vmatprep.subr.mxu0 0.0
      %1080 = vmatpush1.msra.mxu0 0.0
      %1081 = vmatprep.subr.mxu0 0.0
      %1082 = vmatpush1.msra.mxu0 0.0
      %1083 = vmatprep.subr.mxu0 0.0
      %1084 = vmatpush1.msra.mxu0 0.0
      %1085 = vmatprep.subr.mxu0 0.0
      %1086 = vmatpush1.msra.mxu0 0.0
      %1087 = vmatprep.subr.mxu0 0.0
      %1088 = vmatpush1.msra.mxu0 0.0
      %1089 = vmatprep.subr.mxu0 0.0
      %1090 = vmatpush1.msra.mxu0 0.0
      %1091 = vmatprep.subr.mxu0 0.0
      %1092 = vmatpush1.msra.mxu0 0.0
      %1093 = vmatprep.subr.mxu0 0.0
      %1094 = vmatpush1.msra.mxu0 0.0
      %1095 = vmatprep.subr.mxu0 0.0
      %1096 = vmatpush1.msra.mxu0 0.0
      %1097 = vmatprep.subr.mxu0 0.0
      %1098 = vmatpush1.msra.mxu0 0.0
      %1099 = vmatprep.subr.mxu0 0.0
      %1100 = vmatpush1.msra.mxu0 %v1067
      %1101 = vmatprep.subr.mxu0 0.0
      %1102 = vmatpush2.msra.mxu0 0.0
      %1103 = vmatprep.subr.mxu0 0.0
      %1104 = vmatpush2.msra.mxu0 0.0
      %1105 = vmatprep.subr.mxu0 0.0
      %1106 = vmatpush2.msra.mxu0 0.0
      %1107 = vmatprep.subr.mxu0 0.0
      %1108 = vmatpush2.msra.mxu0 0.0
      %1109 = vmatprep.subr.mxu0 0.0
      %1110 = vmatpush2.msra.mxu0 0.0
      %1111 = vmatprep.subr.mxu0 0.0
      %1112 = vmatpush2.msra.mxu0 0.0
      %1113 = vmatprep.subr.mxu0 0.0
      %1114 = vmatpush2.msra.mxu0 0.0
      %1115 = vmatprep.subr.mxu0 0.0
      %1116 = vmatpush2.msra.mxu0 0.0
      %1117 = vmatprep.subr.mxu0 0.0
      %1118 = vmatpush2.msra.mxu0 0.0
      %1119 = vmatprep.subr.mxu0 0.0
      %1120 = vmatpush2.msra.mxu0 0.0
      %1121 = vmatprep.subr.mxu0 0.0
      %1122 = vmatpush2.msra.mxu0 0.0
      %1123 = vmatprep.subr.mxu0 0.0
      %1124 = vmatpush2.msra.mxu0 0.0
      %1125 = vmatprep.subr.mxu0 0.0
      %1126 = vmatpush2.msra.mxu0 0.0
      %1127 = vmatprep.subr.mxu0 0.0
      %1128 = vmatpush2.msra.mxu0 0.0
      %1129 = vmatprep.subr.mxu0 0.0
      %1130 = vmatpush2.msra.mxu0 0.0
      %1131 = vmatprep.subr.mxu0 0.0
      %1132 = vmatpush2.msra.mxu0 0.0
      %1133 = vmatprep.mubr.f32.mxu0 0.0
      %1134 = vmatmul.mubr.f32.gmra.mxu0 %v971
      %v1135 = vpop.f32.mrf.mxu0
      %v1136 = vadd.f32 0.0, %v1135
      %v1137 = vpop.f32.mrf.mxu0
      %1138 = vmatprep.mubr.f32.mxu0 0.0
      %1139 = vmatmul.mubr.f32.gmra.mxu0 %v974
      %v1140 = vpop.f32.mrf.mxu0
      %v1141 = vadd.f32 0.0, %v1140
      %v1142 = vpop.f32.mrf.mxu0
      %1143 = vmatprep.mubr.f32.mxu0 0.0
      %1144 = vmatmul.mubr.f32.gmra.mxu0 %v977
      %v1145 = vpop.f32.mrf.mxu0
      %v1146 = vadd.f32 0.0, %v1145
      %v1147 = vpop.f32.mrf.mxu0
      %1148 = vmatprep.mubr.f32.mxu0 0.0
      %1149 = vmatmul.mubr.f32.gmra.mxu0 %v980
      %v1150 = vpop.f32.mrf.mxu0
      %v1151 = vadd.f32 0.0, %v1150
      %v1152 = vpop.f32.mrf.mxu0
      %1153 = vmatprep.mubr.f32.mxu0 0.0
      %1154 = vmatmul.mubr.f32.gmra.mxu0 %v983
      %v1155 = vpop.f32.mrf.mxu0
      %v1156 = vadd.f32 0.0, %v1155
      %v1157 = vpop.f32.mrf.mxu0
      %1158 = vmatprep.mubr.f32.mxu0 0.0
      %1159 = vmatmul.mubr.f32.gmra.mxu0 %v986
      %v1160 = vpop.f32.mrf.mxu0
      %v1161 = vadd.f32 0.0, %v1160
      %v1162 = vpop.f32.mrf.mxu0
      %1163 = vmatprep.mubr.f32.mxu0 0.0
      %1164 = vmatmul.mubr.f32.gmra.mxu0 %v989
      %v1165 = vpop.f32.mrf.mxu0
      %v1166 = vadd.f32 0.0, %v1165
      %v1167 = vpop.f32.mrf.mxu0
      %1168 = vmatprep.mubr.f32.mxu0 0.0
      %1169 = vmatmul.mubr.f32.gmra.mxu0 %v992
      %v1170 = vpop.f32.mrf.mxu0
      %v1171 = vadd.f32 0.0, %v1170
      %v1172 = vpop.f32.mrf.mxu0
      %1173 = vmatprep.mubr.f32.mxu0 0.0
      %1174 = vmatmul.mubr.f32.gmra.mxu0 %v995
      %v1175 = vpop.f32.mrf.mxu0
      %v1176 = vadd.f32 0.0, %v1175
      %v1177 = vpop.f32.mrf.mxu0
      %1178 = vmatprep.mubr.f32.mxu0 0.0
      %1179 = vmatmul.mubr.f32.gmra.mxu0 %v998
      %v1180 = vpop.f32.mrf.mxu0
      %v1181 = vadd.f32 0.0, %v1180
      %v1182 = vpop.f32.mrf.mxu0
      %1183 = vmatprep.mubr.f32.mxu0 0.0
      %1184 = vmatmul.mubr.f32.gmra.mxu0 %v1001
      %v1185 = vpop.f32.mrf.mxu0
      %v1186 = vadd.f32 0.0, %v1185
      %v1187 = vpop.f32.mrf.mxu0
      %1188 = vmatprep.mubr.f32.mxu0 0.0
      %1189 = vmatmul.mubr.f32.gmra.mxu0 %v1004
      %v1190 = vpop.f32.mrf.mxu0
      %v1191 = vadd.f32 0.0, %v1190
      %v1192 = vpop.f32.mrf.mxu0
      %1193 = vmatprep.mubr.f32.mxu0 0.0
      %1194 = vmatmul.mubr.f32.gmra.mxu0 %v1007
      %v1195 = vpop.f32.mrf.mxu0
      %v1196 = vadd.f32 0.0, %v1195
      %v1197 = vpop.f32.mrf.mxu0
      %1198 = vmatprep.mubr.f32.mxu0 0.0
      %1199 = vmatmul.mubr.f32.gmra.mxu0 %v1010
      %v1200 = vpop.f32.mrf.mxu0
      %v1201 = vadd.f32 0.0, %v1200
      %v1202 = vpop.f32.mrf.mxu0
      %1203 = vmatprep.mubr.f32.mxu0 0.0
      %1204 = vmatmul.mubr.f32.gmra.mxu0 %v1013
      %v1205 = vpop.f32.mrf.mxu0
      %v1206 = vadd.f32 0.0, %v1205
      %v1207 = vpop.f32.mrf.mxu0
      %1208 = vmatprep.mubr.f32.mxu0 0.0
      %1209 = vmatmul.mubr.f32.gmra.mxu0 %v1016
      %v1210 = vpop.f32.mrf.mxu0
      %v1211 = vadd.f32 0.0, %v1210
      %v1212 = vpop.f32.mrf.mxu0
      %1213 = vmatprep.mubr.f32.mxu0 0.0
      %1214 = vmatmul.mubr.f32.gmra.mxu0 %v1019
      %v1215 = vpop.f32.mrf.mxu0
      %v1216 = vadd.f32 0.0, %v1215
      %v1217 = vpop.f32.mrf.mxu0
      %1218 = vmatprep.mubr.f32.mxu0 0.0
      %1219 = vmatmul.mubr.f32.gmra.mxu0 %v1022
      %v1220 = vpop.f32.mrf.mxu0
      %v1221 = vadd.f32 0.0, %v1220
      %v1222 = vpop.f32.mrf.mxu0
      %1223 = vmatprep.mubr.f32.mxu0 0.0
      %1224 = vmatmul.mubr.f32.gmra.mxu0 %v1025
      %v1225 = vpop.f32.mrf.mxu0
      %v1226 = vadd.f32 0.0, %v1225
      %v1227 = vpop.f32.mrf.mxu0
      %1228 = vmatprep.mubr.f32.mxu0 0.0
      %1229 = vmatmul.mubr.f32.gmra.mxu0 %v1028
      %v1230 = vpop.f32.mrf.mxu0
      %v1231 = vadd.f32 0.0, %v1230
      %v1232 = vpop.f32.mrf.mxu0
      %1233 = vmatprep.mubr.f32.mxu0 0.0
      %1234 = vmatmul.mubr.f32.gmra.mxu0 %v1031
      %v1235 = vpop.f32.mrf.mxu0
      %v1236 = vadd.f32 0.0, %v1235
      %v1237 = vpop.f32.mrf.mxu0
      %1238 = vmatprep.mubr.f32.mxu0 0.0
      %1239 = vmatmul.mubr.f32.gmra.mxu0 %v1034
      %v1240 = vpop.f32.mrf.mxu0
      %v1241 = vadd.f32 0.0, %v1240
      %v1242 = vpop.f32.mrf.mxu0
      %1243 = vmatprep.mubr.f32.mxu0 0.0
      %1244 = vmatmul.mubr.f32.gmra.mxu0 %v1037
      %v1245 = vpop.f32.mrf.mxu0
      %v1246 = vadd.f32 0.0, %v1245
      %v1247 = vpop.f32.mrf.mxu0
      %1248 = vmatprep.mubr.f32.mxu0 0.0
      %1249 = vmatmul.mubr.f32.gmra.mxu0 %v1040
      %v1250 = vpop.f32.mrf.mxu0
      %v1251 = vadd.f32 0.0, %v1250
      %v1252 = vpop.f32.mrf.mxu0
      %1253 = vmatprep.mubr.f32.mxu0 0.0
      %1254 = vmatmul.mubr.f32.gmra.mxu0 %v1043
      %v1255 = vpop.f32.mrf.mxu0
      %v1256 = vadd.f32 0.0, %v1255
      %v1257 = vpop.f32.mrf.mxu0
      %1258 = vmatprep.mubr.f32.mxu0 0.0
      %1259 = vmatmul.mubr.f32.gmra.mxu0 %v1046
      %v1260 = vpop.f32.mrf.mxu0
      %v1261 = vadd.f32 0.0, %v1260
      %v1262 = vpop.f32.mrf.mxu0
      %1263 = vmatprep.mubr.f32.mxu0 0.0
      %1264 = vmatmul.mubr.f32.gmra.mxu0 %v1049
      %v1265 = vpop.f32.mrf.mxu0
      %v1266 = vadd.f32 0.0, %v1265
      %v1267 = vpop.f32.mrf.mxu0
      %1268 = vmatprep.mubr.f32.mxu0 0.0
      %1269 = vmatmul.mubr.f32.gmra.mxu0 %v1052
      %v1270 = vpop.f32.mrf.mxu0
      %v1271 = vadd.f32 0.0, %v1270
      %v1272 = vpop.f32.mrf.mxu0
      %1273 = vmatprep.mubr.f32.mxu0 0.0
      %1274 = vmatmul.mubr.f32.gmra.mxu0 %v1055
      %v1275 = vpop.f32.mrf.mxu0
      %v1276 = vadd.f32 0.0, %v1275
      %v1277 = vpop.f32.mrf.mxu0
      %1278 = vmatprep.mubr.f32.mxu0 0.0
      %1279 = vmatmul.mubr.f32.gmra.mxu0 %v1058
      %v1280 = vpop.f32.mrf.mxu0
      %v1281 = vadd.f32 0.0, %v1280
      %v1282 = vpop.f32.mrf.mxu0
      %1283 = vmatprep.mubr.f32.mxu0 0.0
      %1284 = vmatmul.mubr.f32.gmra.mxu0 %v1061
      %v1285 = vpop.f32.mrf.mxu0
      %v1286 = vadd.f32 0.0, %v1285
      %v1287 = vpop.f32.mrf.mxu0
      %1288 = vmatprep.mubr.f32.mxu0 0.0
      %1289 = vmatmul.mubr.f32.gmra.mxu0 %v1064
      %v1290 = vpop.f32.mrf.mxu0
      %v1291 = vadd.f32 0.0, %v1290
      %v1292 = vpop.f32.mrf.mxu0
      %1293 = vdwg.mxu0
      %v1294 = vadd.f32 %v778, %v1136
      %v1295 = vadd.f32 %v783, %v1141
      %v1296 = vadd.f32 %v788, %v1146
      %v1297 = vadd.f32 %v793, %v1151
      %v1298 = vadd.f32 %v798, %v1156
      %v1299 = vadd.f32 %v803, %v1161
      %v1300 = vadd.f32 %v808, %v1166
      %v1301 = vadd.f32 %v813, %v1171
      %v1302 = vadd.f32 %v818, %v1176
      %v1303 = vadd.f32 %v823, %v1181
      %v1304 = vadd.f32 %v828, %v1186
      %v1305 = vadd.f32 %v833, %v1191
      %v1306 = vadd.f32 %v838, %v1196
      %v1307 = vadd.f32 %v843, %v1201
      %v1308 = vadd.f32 %v848, %v1206
      %v1309 = vadd.f32 %v853, %v1211
      %v1310 = vadd.f32 %v858, %v1216
      %v1311 = vadd.f32 %v863, %v1221
      %v1312 = vadd.f32 %v868, %v1226
      %v1313 = vadd.f32 %v873, %v1231
      %v1314 = vadd.f32 %v878, %v1236
      %v1315 = vadd.f32 %v883, %v1241
      %v1316 = vadd.f32 %v888, %v1246
      %v1317 = vadd.f32 %v893, %v1251
      %v1318 = vadd.f32 %v898, %v1256
      %v1319 = vadd.f32 %v903, %v1261
      %v1320 = vadd.f32 %v908, %v1266
      %v1321 = vadd.f32 %v913, %v1271
      %v1322 = vadd.f32 %v918, %v1276
      %v1323 = vadd.f32 %v923, %v1281
      %v1324 = vadd.f32 %v928, %v1286
      %v1325 = vadd.f32 %v933, %v1291
      %v1326 = vld [vmem:[%s323 + $0x10] sm:$0xff]
      %v1327 = vld [vmem:[%s323 + $0x18] sm:$0xff]
      %v1328 = vld [vmem:[%s323 + $0x20] sm:$0xff]
      %v1329 = vld [vmem:[%s323 + $0x28] sm:$0xff]
      %v1330 = vld [vmem:[%s323 + $0x30] sm:$0xff]
      %v1331 = vld [vmem:[%s323 + $0x38] sm:$0xff]
      %v1332 = vld [vmem:[%s323 + $0x40] sm:$0xff]
      %v1333 = vld [vmem:[%s323 + $0x48] sm:$0xff]
      %v1334 = vld [vmem:[%s323 + $0x50] sm:$0xff]
      %v1335 = vld [vmem:[%s323 + $0x58] sm:$0xff]
      %v1336 = vld [vmem:[%s323 + $0x60] sm:$0xff]
      %v1337 = vld [vmem:[%s323 + $0x68] sm:$0xff]
      %v1338 = vld [vmem:[%s323 + $0x70] sm:$0xff]
      %v1339 = vld [vmem:[%s323 + $0x78] sm:$0xff]
      %v1340 = vld [vmem:[%s323 + $0x80] sm:$0xff]
      %v1341 = vld [vmem:[%s323 + $0x88] sm:$0xff]
      %v1342 = vld [vmem:[%s323 + $0x90] sm:$0xff]
      %v1343 = vld [vmem:[%s323 + $0x98] sm:$0xff]
      %v1344 = vld [vmem:[%s323 + $0xa0] sm:$0xff]
      %v1345 = vld [vmem:[%s323 + $0xa8] sm:$0xff]
      %v1346 = vld [vmem:[%s323 + $0xb0] sm:$0xff]
      %v1347 = vld [vmem:[%s323 + $0xb8] sm:$0xff]
      %v1348 = vld [vmem:[%s323 + $0xc0] sm:$0xff]
      %v1349 = vld [vmem:[%s323 + $0xc8] sm:$0xff]
      %v1350 = vld [vmem:[%s323 + $0xd0] sm:$0xff]
      %v1351 = vld [vmem:[%s323 + $0xd8] sm:$0xff]
      %v1352 = vld [vmem:[%s323 + $0xe0] sm:$0xff]
      %v1353 = vld [vmem:[%s323 + $0xe8] sm:$0xff]
      %v1354 = vld [vmem:[%s323 + $0xf0] sm:$0xff]
      %v1355 = vld [vmem:[%s323 + $0xf8] sm:$0xff]
      %v1356 = vld [vmem:[%s323 + $0x100] sm:$0xff]
      %v1357 = vld [vmem:[%s323 + $0x108] sm:$0xff]
      %s1358 = scalar_lea.vmem %s4, 24
      %v1359 = vld [vmem:[%s1358] sm:$0x3f]
      %v1361 = vsel %vm376, %v1326, 0
      %v1364 = vsel %vm376, %v1327, 0
      %v1367 = vsel %vm376, %v1328, 0
      %v1370 = vsel %vm376, %v1329, 0
      %v1373 = vsel %vm376, %v1330, 0
      %v1376 = vsel %vm376, %v1331, 0
      %v1379 = vsel %vm376, %v1332, 0
      %v1382 = vsel %vm376, %v1333, 0
      %v1385 = vsel %vm376, %v1334, 0
      %v1388 = vsel %vm376, %v1335, 0
      %v1391 = vsel %vm376, %v1336, 0
      %v1394 = vsel %vm376, %v1337, 0
      %v1397 = vsel %vm376, %v1338, 0
      %v1400 = vsel %vm376, %v1339, 0
      %v1403 = vsel %vm376, %v1340, 0
      %v1406 = vsel %vm376, %v1341, 0
      %v1409 = vsel %vm376, %v1342, 0
      %v1412 = vsel %vm376, %v1343, 0
      %v1415 = vsel %vm376, %v1344, 0
      %v1418 = vsel %vm376, %v1345, 0
      %v1421 = vsel %vm376, %v1346, 0
      %v1424 = vsel %vm376, %v1347, 0
      %v1427 = vsel %vm376, %v1348, 0
      %v1430 = vsel %vm376, %v1349, 0
      %v1433 = vsel %vm376, %v1350, 0
      %v1436 = vsel %vm376, %v1351, 0
      %v1439 = vsel %vm376, %v1352, 0
      %v1442 = vsel %vm376, %v1353, 0
      %v1445 = vsel %vm376, %v1354, 0
      %v1448 = vsel %vm376, %v1355, 0
      %v1451 = vsel %vm376, %v1356, 0
      %v1454 = vsel %vm376, %v1357, 0
      %v1457 = vsel %vm473, %v1359, 0
      %1459 = vmatprep.subr.mxu0 0.0
      %1460 = vmatpush1.msra.mxu0 0.0
      %1461 = vmatprep.subr.mxu0 0.0
      %1462 = vmatpush1.msra.mxu0 0.0
      %1463 = vmatprep.subr.mxu0 0.0
      %1464 = vmatpush1.msra.mxu0 0.0
      %1465 = vmatprep.subr.mxu0 0.0
      %1466 = vmatpush1.msra.mxu0 0.0
      %1467 = vmatprep.subr.mxu0 0.0
      %1468 = vmatpush1.msra.mxu0 0.0
      %1469 = vmatprep.subr.mxu0 0.0
      %1470 = vmatpush1.msra.mxu0 0.0
      %1471 = vmatprep.subr.mxu0 0.0
      %1472 = vmatpush1.msra.mxu0 0.0
      %1473 = vmatprep.subr.mxu0 0.0
      %1474 = vmatpush1.msra.mxu0 0.0
      %1475 = vmatprep.subr.mxu0 0.0
      %1476 = vmatpush1.msra.mxu0 0.0
      %1477 = vmatprep.subr.mxu0 0.0
      %1478 = vmatpush1.msra.mxu0 0.0
      %1479 = vmatprep.subr.mxu0 0.0
      %1480 = vmatpush1.msra.mxu0 0.0
      %1481 = vmatprep.subr.mxu0 0.0
      %1482 = vmatpush1.msra.mxu0 0.0
      %1483 = vmatprep.subr.mxu0 0.0
      %1484 = vmatpush1.msra.mxu0 0.0
      %1485 = vmatprep.subr.mxu0 0.0
      %1486 = vmatpush1.msra.mxu0 0.0
      %1487 = vmatprep.subr.mxu0 0.0
      %1488 = vmatpush1.msra.mxu0 0.0
      %1489 = vmatprep.subr.mxu0 0.0
      %1490 = vmatpush1.msra.mxu0 %v1457
      %1491 = vmatprep.subr.mxu0 0.0
      %1492 = vmatpush2.msra.mxu0 0.0
      %1493 = vmatprep.subr.mxu0 0.0
      %1494 = vmatpush2.msra.mxu0 0.0
      %1495 = vmatprep.subr.mxu0 0.0
      %1496 = vmatpush2.msra.mxu0 0.0
      %1497 = vmatprep.subr.mxu0 0.0
      %1498 = vmatpush2.msra.mxu0 0.0
      %1499 = vmatprep.subr.mxu0 0.0
      %1500 = vmatpush2.msra.mxu0 0.0
      %1501 = vmatprep.subr.mxu0 0.0
      %1502 = vmatpush2.msra.mxu0 0.0
      %1503 = vmatprep.subr.mxu0 0.0
      %1504 = vmatpush2.msra.mxu0 0.0
      %1505 = vmatprep.subr.mxu0 0.0
      %1506 = vmatpush2.msra.mxu0 0.0
      %1507 = vmatprep.subr.mxu0 0.0
      %1508 = vmatpush2.msra.mxu0 0.0
      %1509 = vmatprep.subr.mxu0 0.0
      %1510 = vmatpush2.msra.mxu0 0.0
      %1511 = vmatprep.subr.mxu0 0.0
      %1512 = vmatpush2.msra.mxu0 0.0
      %1513 = vmatprep.subr.mxu0 0.0
      %1514 = vmatpush2.msra.mxu0 0.0
      %1515 = vmatprep.subr.mxu0 0.0
      %1516 = vmatpush2.msra.mxu0 0.0
      %1517 = vmatprep.subr.mxu0 0.0
      %1518 = vmatpush2.msra.mxu0 0.0
      %1519 = vmatprep.subr.mxu0 0.0
      %1520 = vmatpush2.msra.mxu0 0.0
      %1521 = vmatprep.subr.mxu0 0.0
      %1522 = vmatpush2.msra.mxu0 0.0
      %1523 = vmatprep.mubr.f32.mxu0 0.0
      %1524 = vmatmul.mubr.f32.gmra.mxu0 %v1361
      %v1525 = vpop.f32.mrf.mxu0
      %v1526 = vadd.f32 0.0, %v1525
      %v1527 = vpop.f32.mrf.mxu0
      %1528 = vmatprep.mubr.f32.mxu0 0.0
      %1529 = vmatmul.mubr.f32.gmra.mxu0 %v1364
      %v1530 = vpop.f32.mrf.mxu0
      %v1531 = vadd.f32 0.0, %v1530
      %v1532 = vpop.f32.mrf.mxu0
      %1533 = vmatprep.mubr.f32.mxu0 0.0
      %1534 = vmatmul.mubr.f32.gmra.mxu0 %v1367
      %v1535 = vpop.f32.mrf.mxu0
      %v1536 = vadd.f32 0.0, %v1535
      %v1537 = vpop.f32.mrf.mxu0
      %1538 = vmatprep.mubr.f32.mxu0 0.0
      %1539 = vmatmul.mubr.f32.gmra.mxu0 %v1370
      %v1540 = vpop.f32.mrf.mxu0
      %v1541 = vadd.f32 0.0, %v1540
      %v1542 = vpop.f32.mrf.mxu0
      %1543 = vmatprep.mubr.f32.mxu0 0.0
      %1544 = vmatmul.mubr.f32.gmra.mxu0 %v1373
      %v1545 = vpop.f32.mrf.mxu0
      %v1546 = vadd.f32 0.0, %v1545
      %v1547 = vpop.f32.mrf.mxu0
      %1548 = vmatprep.mubr.f32.mxu0 0.0
      %1549 = vmatmul.mubr.f32.gmra.mxu0 %v1376
      %v1550 = vpop.f32.mrf.mxu0
      %v1551 = vadd.f32 0.0, %v1550
      %v1552 = vpop.f32.mrf.mxu0
      %1553 = vmatprep.mubr.f32.mxu0 0.0
      %1554 = vmatmul.mubr.f32.gmra.mxu0 %v1379
      %v1555 = vpop.f32.mrf.mxu0
      %v1556 = vadd.f32 0.0, %v1555
      %v1557 = vpop.f32.mrf.mxu0
      %1558 = vmatprep.mubr.f32.mxu0 0.0
      %1559 = vmatmul.mubr.f32.gmra.mxu0 %v1382
      %v1560 = vpop.f32.mrf.mxu0
      %v1561 = vadd.f32 0.0, %v1560
      %v1562 = vpop.f32.mrf.mxu0
      %1563 = vmatprep.mubr.f32.mxu0 0.0
      %1564 = vmatmul.mubr.f32.gmra.mxu0 %v1385
      %v1565 = vpop.f32.mrf.mxu0
      %v1566 = vadd.f32 0.0, %v1565
      %v1567 = vpop.f32.mrf.mxu0
      %1568 = vmatprep.mubr.f32.mxu0 0.0
      %1569 = vmatmul.mubr.f32.gmra.mxu0 %v1388
      %v1570 = vpop.f32.mrf.mxu0
      %v1571 = vadd.f32 0.0, %v1570
      %v1572 = vpop.f32.mrf.mxu0
      %1573 = vmatprep.mubr.f32.mxu0 0.0
      %1574 = vmatmul.mubr.f32.gmra.mxu0 %v1391
      %v1575 = vpop.f32.mrf.mxu0
      %v1576 = vadd.f32 0.0, %v1575
      %v1577 = vpop.f32.mrf.mxu0
      %1578 = vmatprep.mubr.f32.mxu0 0.0
      %1579 = vmatmul.mubr.f32.gmra.mxu0 %v1394
      %v1580 = vpop.f32.mrf.mxu0
      %v1581 = vadd.f32 0.0, %v1580
      %v1582 = vpop.f32.mrf.mxu0
      %1583 = vmatprep.mubr.f32.mxu0 0.0
      %1584 = vmatmul.mubr.f32.gmra.mxu0 %v1397
      %v1585 = vpop.f32.mrf.mxu0
      %v1586 = vadd.f32 0.0, %v1585
      %v1587 = vpop.f32.mrf.mxu0
      %1588 = vmatprep.mubr.f32.mxu0 0.0
      %1589 = vmatmul.mubr.f32.gmra.mxu0 %v1400
      %v1590 = vpop.f32.mrf.mxu0
      %v1591 = vadd.f32 0.0, %v1590
      %v1592 = vpop.f32.mrf.mxu0
      %1593 = vmatprep.mubr.f32.mxu0 0.0
      %1594 = vmatmul.mubr.f32.gmra.mxu0 %v1403
      %v1595 = vpop.f32.mrf.mxu0
      %v1596 = vadd.f32 0.0, %v1595
      %v1597 = vpop.f32.mrf.mxu0
      %1598 = vmatprep.mubr.f32.mxu0 0.0
      %1599 = vmatmul.mubr.f32.gmra.mxu0 %v1406
      %v1600 = vpop.f32.mrf.mxu0
      %v1601 = vadd.f32 0.0, %v1600
      %v1602 = vpop.f32.mrf.mxu0
      %1603 = vmatprep.mubr.f32.mxu0 0.0
      %1604 = vmatmul.mubr.f32.gmra.mxu0 %v1409
      %v1605 = vpop.f32.mrf.mxu0
      %v1606 = vadd.f32 0.0, %v1605
      %v1607 = vpop.f32.mrf.mxu0
      %1608 = vmatprep.mubr.f32.mxu0 0.0
      %1609 = vmatmul.mubr.f32.gmra.mxu0 %v1412
      %v1610 = vpop.f32.mrf.mxu0
      %v1611 = vadd.f32 0.0, %v1610
      %v1612 = vpop.f32.mrf.mxu0
      %1613 = vmatprep.mubr.f32.mxu0 0.0
      %1614 = vmatmul.mubr.f32.gmra.mxu0 %v1415
      %v1615 = vpop.f32.mrf.mxu0
      %v1616 = vadd.f32 0.0, %v1615
      %v1617 = vpop.f32.mrf.mxu0
      %1618 = vmatprep.mubr.f32.mxu0 0.0
      %1619 = vmatmul.mubr.f32.gmra.mxu0 %v1418
      %v1620 = vpop.f32.mrf.mxu0
      %v1621 = vadd.f32 0.0, %v1620
      %v1622 = vpop.f32.mrf.mxu0
      %1623 = vmatprep.mubr.f32.mxu0 0.0
      %1624 = vmatmul.mubr.f32.gmra.mxu0 %v1421
      %v1625 = vpop.f32.mrf.mxu0
      %v1626 = vadd.f32 0.0, %v1625
      %v1627 = vpop.f32.mrf.mxu0
      %1628 = vmatprep.mubr.f32.mxu0 0.0
      %1629 = vmatmul.mubr.f32.gmra.mxu0 %v1424
      %v1630 = vpop.f32.mrf.mxu0
      %v1631 = vadd.f32 0.0, %v1630
      %v1632 = vpop.f32.mrf.mxu0
      %1633 = vmatprep.mubr.f32.mxu0 0.0
      %1634 = vmatmul.mubr.f32.gmra.mxu0 %v1427
      %v1635 = vpop.f32.mrf.mxu0
      %v1636 = vadd.f32 0.0, %v1635
      %v1637 = vpop.f32.mrf.mxu0
      %1638 = vmatprep.mubr.f32.mxu0 0.0
      %1639 = vmatmul.mubr.f32.gmra.mxu0 %v1430
      %v1640 = vpop.f32.mrf.mxu0
      %v1641 = vadd.f32 0.0, %v1640
      %v1642 = vpop.f32.mrf.mxu0
      %1643 = vmatprep.mubr.f32.mxu0 0.0
      %1644 = vmatmul.mubr.f32.gmra.mxu0 %v1433
      %v1645 = vpop.f32.mrf.mxu0
      %v1646 = vadd.f32 0.0, %v1645
      %v1647 = vpop.f32.mrf.mxu0
      %1648 = vmatprep.mubr.f32.mxu0 0.0
      %1649 = vmatmul.mubr.f32.gmra.mxu0 %v1436
      %v1650 = vpop.f32.mrf.mxu0
      %v1651 = vadd.f32 0.0, %v1650
      %v1652 = vpop.f32.mrf.mxu0
      %1653 = vmatprep.mubr.f32.mxu0 0.0
      %1654 = vmatmul.mubr.f32.gmra.mxu0 %v1439
      %v1655 = vpop.f32.mrf.mxu0
      %v1656 = vadd.f32 0.0, %v1655
      %v1657 = vpop.f32.mrf.mxu0
      %1658 = vmatprep.mubr.f32.mxu0 0.0
      %1659 = vmatmul.mubr.f32.gmra.mxu0 %v1442
      %v1660 = vpop.f32.mrf.mxu0
      %v1661 = vadd.f32 0.0, %v1660
      %v1662 = vpop.f32.mrf.mxu0
      %1663 = vmatprep.mubr.f32.mxu0 0.0
      %1664 = vmatmul.mubr.f32.gmra.mxu0 %v1445
      %v1665 = vpop.f32.mrf.mxu0
      %v1666 = vadd.f32 0.0, %v1665
      %v1667 = vpop.f32.mrf.mxu0
      %1668 = vmatprep.mubr.f32.mxu0 0.0
      %1669 = vmatmul.mubr.f32.gmra.mxu0 %v1448
      %v1670 = vpop.f32.mrf.mxu0
      %v1671 = vadd.f32 0.0, %v1670
      %v1672 = vpop.f32.mrf.mxu0
      %1673 = vmatprep.mubr.f32.mxu0 0.0
      %1674 = vmatmul.mubr.f32.gmra.mxu0 %v1451
      %v1675 = vpop.f32.mrf.mxu0
      %v1676 = vadd.f32 0.0, %v1675
      %v1677 = vpop.f32.mrf.mxu0
      %1678 = vmatprep.mubr.f32.mxu0 0.0
      %1679 = vmatmul.mubr.f32.gmra.mxu0 %v1454
      %v1680 = vpop.f32.mrf.mxu0
      %v1681 = vadd.f32 0.0, %v1680
      %v1682 = vpop.f32.mrf.mxu0
      %1683 = vdwg.mxu0
      %v1684 = vadd.f32 %v1294, %v1526
      %v1685 = vadd.f32 %v1295, %v1531
      %v1686 = vadd.f32 %v1296, %v1536
      %v1687 = vadd.f32 %v1297, %v1541
      %v1688 = vadd.f32 %v1298, %v1546
      %v1689 = vadd.f32 %v1299, %v1551
      %v1690 = vadd.f32 %v1300, %v1556
      %v1691 = vadd.f32 %v1301, %v1561
      %v1692 = vadd.f32 %v1302, %v1566
      %v1693 = vadd.f32 %v1303, %v1571
      %v1694 = vadd.f32 %v1304, %v1576
      %v1695 = vadd.f32 %v1305, %v1581
      %v1696 = vadd.f32 %v1306, %v1586
      %v1697 = vadd.f32 %v1307, %v1591
      %v1698 = vadd.f32 %v1308, %v1596
      %v1699 = vadd.f32 %v1309, %v1601
      %v1700 = vadd.f32 %v1310, %v1606
      %v1701 = vadd.f32 %v1311, %v1611
      %v1702 = vadd.f32 %v1312, %v1616
      %v1703 = vadd.f32 %v1313, %v1621
      %v1704 = vadd.f32 %v1314, %v1626
      %v1705 = vadd.f32 %v1315, %v1631
      %v1706 = vadd.f32 %v1316, %v1636
      %v1707 = vadd.f32 %v1317, %v1641
      %v1708 = vadd.f32 %v1318, %v1646
      %v1709 = vadd.f32 %v1319, %v1651
      %v1710 = vadd.f32 %v1320, %v1656
      %v1711 = vadd.f32 %v1321, %v1661
      %v1712 = vadd.f32 %v1322, %v1666
      %v1713 = vadd.f32 %v1323, %v1671
      %v1714 = vadd.f32 %v1324, %v1676
      %v1715 = vadd.f32 %v1325, %v1681
      %v1716 = vld [vmem:[%s328] sm:$0xff]
      %v1717 = vld [vmem:[%s328 + $0x8] sm:$0xff]
      %v1718 = vld [vmem:[%s328 + $0x10] sm:$0xff]
      %v1719 = vld [vmem:[%s328 + $0x18] sm:$0xff]
      %v1720 = vld [vmem:[%s328 + $0x20] sm:$0xff]
      %v1721 = vld [vmem:[%s328 + $0x28] sm:$0xff]
      %v1722 = vld [vmem:[%s328 + $0x30] sm:$0xff]
      %v1723 = vld [vmem:[%s328 + $0x38] sm:$0xff]
      %v1724 = vld [vmem:[%s328 + $0x40] sm:$0xff]
      %v1725 = vld [vmem:[%s328 + $0x48] sm:$0xff]
      %v1726 = vld [vmem:[%s328 + $0x50] sm:$0xff]
      %v1727 = vld [vmem:[%s328 + $0x58] sm:$0xff]
      %v1728 = vld [vmem:[%s328 + $0x60] sm:$0xff]
      %v1729 = vld [vmem:[%s328 + $0x68] sm:$0xff]
      %v1730 = vld [vmem:[%s328 + $0x70] sm:$0xff]
      %v1731 = vld [vmem:[%s328 + $0x78] sm:$0xff]
      %v1732 = vld [vmem:[%s328 + $0x80] sm:$0xff]
      %v1733 = vld [vmem:[%s328 + $0x88] sm:$0xff]
      %v1734 = vld [vmem:[%s328 + $0x90] sm:$0xff]
      %v1735 = vld [vmem:[%s328 + $0x98] sm:$0xff]
      %v1736 = vld [vmem:[%s328 + $0xa0] sm:$0xff]
      %v1737 = vld [vmem:[%s328 + $0xa8] sm:$0xff]
      %v1738 = vld [vmem:[%s328 + $0xb0] sm:$0xff]
      %v1739 = vld [vmem:[%s328 + $0xb8] sm:$0xff]
      %v1740 = vld [vmem:[%s328 + $0xc0] sm:$0xff]
      %v1741 = vld [vmem:[%s328 + $0xc8] sm:$0xff]
      %v1742 = vld [vmem:[%s328 + $0xd0] sm:$0xff]
      %v1743 = vld [vmem:[%s328 + $0xd8] sm:$0xff]
      %v1744 = vld [vmem:[%s328 + $0xe0] sm:$0xff]
      %v1745 = vld [vmem:[%s328 + $0xe8] sm:$0xff]
      %v1746 = vld [vmem:[%s328 + $0xf0] sm:$0xff]
      %v1747 = vld [vmem:[%s328 + $0xf8] sm:$0xff]
      %s1748 = scalar_lea.vmem %s4, 32
      %v1749 = vld [vmem:[%s1748] sm:$0x3f]
      %v1751 = vsel %vm376, %v1716, 0
      %v1754 = vsel %vm376, %v1717, 0
      %v1757 = vsel %vm376, %v1718, 0
      %v1760 = vsel %vm376, %v1719, 0
      %v1763 = vsel %vm376, %v1720, 0
      %v1766 = vsel %vm376, %v1721, 0
      %v1769 = vsel %vm376, %v1722, 0
      %v1772 = vsel %vm376, %v1723, 0
      %v1775 = vsel %vm376, %v1724, 0
      %v1778 = vsel %vm376, %v1725, 0
      %v1781 = vsel %vm376, %v1726, 0
      %v1784 = vsel %vm376, %v1727, 0
      %v1787 = vsel %vm376, %v1728, 0
      %v1790 = vsel %vm376, %v1729, 0
      %v1793 = vsel %vm376, %v1730, 0
      %v1796 = vsel %vm376, %v1731, 0
      %v1799 = vsel %vm376, %v1732, 0
      %v1802 = vsel %vm376, %v1733, 0
      %v1805 = vsel %vm376, %v1734, 0
      %v1808 = vsel %vm376, %v1735, 0
      %v1811 = vsel %vm376, %v1736, 0
      %v1814 = vsel %vm376, %v1737, 0
      %v1817 = vsel %vm376, %v1738, 0
      %v1820 = vsel %vm376, %v1739, 0
      %v1823 = vsel %vm376, %v1740, 0
      %v1826 = vsel %vm376, %v1741, 0
      %v1829 = vsel %vm376, %v1742, 0
      %v1832 = vsel %vm376, %v1743, 0
      %v1835 = vsel %vm376, %v1744, 0
      %v1838 = vsel %vm376, %v1745, 0
      %v1841 = vsel %vm376, %v1746, 0
      %v1844 = vsel %vm376, %v1747, 0
      %v1847 = vsel %vm473, %v1749, 0
      %1849 = vmatprep.subr.mxu0 0.0
      %1850 = vmatpush1.msra.mxu0 0.0
      %1851 = vmatprep.subr.mxu0 0.0
      %1852 = vmatpush1.msra.mxu0 0.0
      %1853 = vmatprep.subr.mxu0 0.0
      %1854 = vmatpush1.msra.mxu0 0.0
      %1855 = vmatprep.subr.mxu0 0.0
      %1856 = vmatpush1.msra.mxu0 0.0
      %1857 = vmatprep.subr.mxu0 0.0
      %1858 = vmatpush1.msra.mxu0 0.0
      %1859 = vmatprep.subr.mxu0 0.0
      %1860 = vmatpush1.msra.mxu0 0.0
      %1861 = vmatprep.subr.mxu0 0.0
      %1862 = vmatpush1.msra.mxu0 0.0
      %1863 = vmatprep.subr.mxu0 0.0
      %1864 = vmatpush1.msra.mxu0 0.0
      %1865 = vmatprep.subr.mxu0 0.0
      %1866 = vmatpush1.msra.mxu0 0.0
      %1867 = vmatprep.subr.mxu0 0.0
      %1868 = vmatpush1.msra.mxu0 0.0
      %1869 = vmatprep.subr.mxu0 0.0
      %1870 = vmatpush1.msra.mxu0 0.0
      %1871 = vmatprep.subr.mxu0 0.0
      %1872 = vmatpush1.msra.mxu0 0.0
      %1873 = vmatprep.subr.mxu0 0.0
      %1874 = vmatpush1.msra.mxu0 0.0
      %1875 = vmatprep.subr.mxu0 0.0
      %1876 = vmatpush1.msra.mxu0 0.0
      %1877 = vmatprep.subr.mxu0 0.0
      %1878 = vmatpush1.msra.mxu0 0.0
      %1879 = vmatprep.subr.mxu0 0.0
      %1880 = vmatpush1.msra.mxu0 %v1847
      %1881 = vmatprep.subr.mxu0 0.0
      %1882 = vmatpush2.msra.mxu0 0.0
      %1883 = vmatprep.subr.mxu0 0.0
      %1884 = vmatpush2.msra.mxu0 0.0
      %1885 = vmatprep.subr.mxu0 0.0
      %1886 = vmatpush2.msra.mxu0 0.0
      %1887 = vmatprep.subr.mxu0 0.0
      %1888 = vmatpush2.msra.mxu0 0.0
      %1889 = vmatprep.subr.mxu0 0.0
      %1890 = vmatpush2.msra.mxu0 0.0
      %1891 = vmatprep.subr.mxu0 0.0
      %1892 = vmatpush2.msra.mxu0 0.0
      %1893 = vmatprep.subr.mxu0 0.0
      %1894 = vmatpush2.msra.mxu0 0.0
      %1895 = vmatprep.subr.mxu0 0.0
      %1896 = vmatpush2.msra.mxu0 0.0
      %1897 = vmatprep.subr.mxu0 0.0
      %1898 = vmatpush2.msra.mxu0 0.0
      %1899 = vmatprep.subr.mxu0 0.0
      %1900 = vmatpush2.msra.mxu0 0.0
      %1901 = vmatprep.subr.mxu0 0.0
      %1902 = vmatpush2.msra.mxu0 0.0
      %1903 = vmatprep.subr.mxu0 0.0
      %1904 = vmatpush2.msra.mxu0 0.0
      %1905 = vmatprep.subr.mxu0 0.0
      %1906 = vmatpush2.msra.mxu0 0.0
      %1907 = vmatprep.subr.mxu0 0.0
      %1908 = vmatpush2.msra.mxu0 0.0
      %1909 = vmatprep.subr.mxu0 0.0
      %1910 = vmatpush2.msra.mxu0 0.0
      %1911 = vmatprep.subr.mxu0 0.0
      %1912 = vmatpush2.msra.mxu0 0.0
      %1913 = vmatprep.mubr.f32.mxu0 0.0
      %1914 = vmatmul.mubr.f32.gmra.mxu0 %v1751
      %v1915 = vpop.f32.mrf.mxu0
      %v1916 = vadd.f32 0.0, %v1915
      %v1917 = vpop.f32.mrf.mxu0
      %1918 = vmatprep.mubr.f32.mxu0 0.0
      %1919 = vmatmul.mubr.f32.gmra.mxu0 %v1754
      %v1920 = vpop.f32.mrf.mxu0
      %v1921 = vadd.f32 0.0, %v1920
      %v1922 = vpop.f32.mrf.mxu0
      %1923 = vmatprep.mubr.f32.mxu0 0.0
      %1924 = vmatmul.mubr.f32.gmra.mxu0 %v1757
      %v1925 = vpop.f32.mrf.mxu0
      %v1926 = vadd.f32 0.0, %v1925
      %v1927 = vpop.f32.mrf.mxu0
      %1928 = vmatprep.mubr.f32.mxu0 0.0
      %1929 = vmatmul.mubr.f32.gmra.mxu0 %v1760
      %v1930 = vpop.f32.mrf.mxu0
      %v1931 = vadd.f32 0.0, %v1930
      %v1932 = vpop.f32.mrf.mxu0
      %1933 = vmatprep.mubr.f32.mxu0 0.0
      %1934 = vmatmul.mubr.f32.gmra.mxu0 %v1763
      %v1935 = vpop.f32.mrf.mxu0
      %v1936 = vadd.f32 0.0, %v1935
      %v1937 = vpop.f32.mrf.mxu0
      %1938 = vmatprep.mubr.f32.mxu0 0.0
      %1939 = vmatmul.mubr.f32.gmra.mxu0 %v1766
      %v1940 = vpop.f32.mrf.mxu0
      %v1941 = vadd.f32 0.0, %v1940
      %v1942 = vpop.f32.mrf.mxu0
      %1943 = vmatprep.mubr.f32.mxu0 0.0
      %1944 = vmatmul.mubr.f32.gmra.mxu0 %v1769
      %v1945 = vpop.f32.mrf.mxu0
      %v1946 = vadd.f32 0.0, %v1945
      %v1947 = vpop.f32.mrf.mxu0
      %1948 = vmatprep.mubr.f32.mxu0 0.0
      %1949 = vmatmul.mubr.f32.gmra.mxu0 %v1772
      %v1950 = vpop.f32.mrf.mxu0
      %v1951 = vadd.f32 0.0, %v1950
      %v1952 = vpop.f32.mrf.mxu0
      %1953 = vmatprep.mubr.f32.mxu0 0.0
      %1954 = vmatmul.mubr.f32.gmra.mxu0 %v1775
      %v1955 = vpop.f32.mrf.mxu0
      %v1956 = vadd.f32 0.0, %v1955
      %v1957 = vpop.f32.mrf.mxu0
      %1958 = vmatprep.mubr.f32.mxu0 0.0
      %1959 = vmatmul.mubr.f32.gmra.mxu0 %v1778
      %v1960 = vpop.f32.mrf.mxu0
      %v1961 = vadd.f32 0.0, %v1960
      %v1962 = vpop.f32.mrf.mxu0
      %1963 = vmatprep.mubr.f32.mxu0 0.0
      %1964 = vmatmul.mubr.f32.gmra.mxu0 %v1781
      %v1965 = vpop.f32.mrf.mxu0
      %v1966 = vadd.f32 0.0, %v1965
      %v1967 = vpop.f32.mrf.mxu0
      %1968 = vmatprep.mubr.f32.mxu0 0.0
      %1969 = vmatmul.mubr.f32.gmra.mxu0 %v1784
      %v1970 = vpop.f32.mrf.mxu0
      %v1971 = vadd.f32 0.0, %v1970
      %v1972 = vpop.f32.mrf.mxu0
      %1973 = vmatprep.mubr.f32.mxu0 0.0
      %1974 = vmatmul.mubr.f32.gmra.mxu0 %v1787
      %v1975 = vpop.f32.mrf.mxu0
      %v1976 = vadd.f32 0.0, %v1975
      %v1977 = vpop.f32.mrf.mxu0
      %1978 = vmatprep.mubr.f32.mxu0 0.0
      %1979 = vmatmul.mubr.f32.gmra.mxu0 %v1790
      %v1980 = vpop.f32.mrf.mxu0
      %v1981 = vadd.f32 0.0, %v1980
      %v1982 = vpop.f32.mrf.mxu0
      %1983 = vmatprep.mubr.f32.mxu0 0.0
      %1984 = vmatmul.mubr.f32.gmra.mxu0 %v1793
      %v1985 = vpop.f32.mrf.mxu0
      %v1986 = vadd.f32 0.0, %v1985
      %v1987 = vpop.f32.mrf.mxu0
      %1988 = vmatprep.mubr.f32.mxu0 0.0
      %1989 = vmatmul.mubr.f32.gmra.mxu0 %v1796
      %v1990 = vpop.f32.mrf.mxu0
      %v1991 = vadd.f32 0.0, %v1990
      %v1992 = vpop.f32.mrf.mxu0
      %1993 = vmatprep.mubr.f32.mxu0 0.0
      %1994 = vmatmul.mubr.f32.gmra.mxu0 %v1799
      %v1995 = vpop.f32.mrf.mxu0
      %v1996 = vadd.f32 0.0, %v1995
      %v1997 = vpop.f32.mrf.mxu0
      %1998 = vmatprep.mubr.f32.mxu0 0.0
      %1999 = vmatmul.mubr.f32.gmra.mxu0 %v1802
      %v2000 = vpop.f32.mrf.mxu0
      %v2001 = vadd.f32 0.0, %v2000
      %v2002 = vpop.f32.mrf.mxu0
      %2003 = vmatprep.mubr.f32.mxu0 0.0
      %2004 = vmatmul.mubr.f32.gmra.mxu0 %v1805
      %v2005 = vpop.f32.mrf.mxu0
      %v2006 = vadd.f32 0.0, %v2005
      %v2007 = vpop.f32.mrf.mxu0
      %2008 = vmatprep.mubr.f32.mxu0 0.0
      %2009 = vmatmul.mubr.f32.gmra.mxu0 %v1808
      %v2010 = vpop.f32.mrf.mxu0
      %v2011 = vadd.f32 0.0, %v2010
      %v2012 = vpop.f32.mrf.mxu0
      %2013 = vmatprep.mubr.f32.mxu0 0.0
      %2014 = vmatmul.mubr.f32.gmra.mxu0 %v1811
      %v2015 = vpop.f32.mrf.mxu0
      %v2016 = vadd.f32 0.0, %v2015
      %v2017 = vpop.f32.mrf.mxu0
      %2018 = vmatprep.mubr.f32.mxu0 0.0
      %2019 = vmatmul.mubr.f32.gmra.mxu0 %v1814
      %v2020 = vpop.f32.mrf.mxu0
      %v2021 = vadd.f32 0.0, %v2020
      %v2022 = vpop.f32.mrf.mxu0
      %2023 = vmatprep.mubr.f32.mxu0 0.0
      %2024 = vmatmul.mubr.f32.gmra.mxu0 %v1817
      %v2025 = vpop.f32.mrf.mxu0
      %v2026 = vadd.f32 0.0, %v2025
      %v2027 = vpop.f32.mrf.mxu0
      %2028 = vmatprep.mubr.f32.mxu0 0.0
      %2029 = vmatmul.mubr.f32.gmra.mxu0 %v1820
      %v2030 = vpop.f32.mrf.mxu0
      %v2031 = vadd.f32 0.0, %v2030
      %v2032 = vpop.f32.mrf.mxu0
      %2033 = vmatprep.mubr.f32.mxu0 0.0
      %2034 = vmatmul.mubr.f32.gmra.mxu0 %v1823
      %v2035 = vpop.f32.mrf.mxu0
      %v2036 = vadd.f32 0.0, %v2035
      %v2037 = vpop.f32.mrf.mxu0
      %2038 = vmatprep.mubr.f32.mxu0 0.0
      %2039 = vmatmul.mubr.f32.gmra.mxu0 %v1826
      %v2040 = vpop.f32.mrf.mxu0
      %v2041 = vadd.f32 0.0, %v2040
      %v2042 = vpop.f32.mrf.mxu0
      %2043 = vmatprep.mubr.f32.mxu0 0.0
      %2044 = vmatmul.mubr.f32.gmra.mxu0 %v1829
      %v2045 = vpop.f32.mrf.mxu0
      %v2046 = vadd.f32 0.0, %v2045
      %v2047 = vpop.f32.mrf.mxu0
      %2048 = vmatprep.mubr.f32.mxu0 0.0
      %2049 = vmatmul.mubr.f32.gmra.mxu0 %v1832
      %v2050 = vpop.f32.mrf.mxu0
      %v2051 = vadd.f32 0.0, %v2050
      %v2052 = vpop.f32.mrf.mxu0
      %2053 = vmatprep.mubr.f32.mxu0 0.0
      %2054 = vmatmul.mubr.f32.gmra.mxu0 %v1835
      %v2055 = vpop.f32.mrf.mxu0
      %v2056 = vadd.f32 0.0, %v2055
      %v2057 = vpop.f32.mrf.mxu0
      %2058 = vmatprep.mubr.f32.mxu0 0.0
      %2059 = vmatmul.mubr.f32.gmra.mxu0 %v1838
      %v2060 = vpop.f32.mrf.mxu0
      %v2061 = vadd.f32 0.0, %v2060
      %v2062 = vpop.f32.mrf.mxu0
      %2063 = vmatprep.mubr.f32.mxu0 0.0
      %2064 = vmatmul.mubr.f32.gmra.mxu0 %v1841
      %v2065 = vpop.f32.mrf.mxu0
      %v2066 = vadd.f32 0.0, %v2065
      %v2067 = vpop.f32.mrf.mxu0
      %2068 = vmatprep.mubr.f32.mxu0 0.0
      %2069 = vmatmul.mubr.f32.gmra.mxu0 %v1844
      %v2070 = vpop.f32.mrf.mxu0
      %v2071 = vadd.f32 0.0, %v2070
      %v2072 = vpop.f32.mrf.mxu0
      %2073 = vdwg.mxu0
      %v2074 = vadd.f32 %v1684, %v1916
      %v2075 = vadd.f32 %v1685, %v1921
      %v2076 = vadd.f32 %v1686, %v1926
      %v2077 = vadd.f32 %v1687, %v1931
      %v2078 = vadd.f32 %v1688, %v1936
      %v2079 = vadd.f32 %v1689, %v1941
      %v2080 = vadd.f32 %v1690, %v1946
      %v2081 = vadd.f32 %v1691, %v1951
      %v2082 = vadd.f32 %v1692, %v1956
      %v2083 = vadd.f32 %v1693, %v1961
      %v2084 = vadd.f32 %v1694, %v1966
      %v2085 = vadd.f32 %v1695, %v1971
      %v2086 = vadd.f32 %v1696, %v1976
      %v2087 = vadd.f32 %v1697, %v1981
      %v2088 = vadd.f32 %v1698, %v1986
      %v2089 = vadd.f32 %v1699, %v1991
      %v2090 = vadd.f32 %v1700, %v1996
      %v2091 = vadd.f32 %v1701, %v2001
      %v2092 = vadd.f32 %v1702, %v2006
      %v2093 = vadd.f32 %v1703, %v2011
      %v2094 = vadd.f32 %v1704, %v2016
      %v2095 = vadd.f32 %v1705, %v2021
      %v2096 = vadd.f32 %v1706, %v2026
      %v2097 = vadd.f32 %v1707, %v2031
      %v2098 = vadd.f32 %v1708, %v2036
      %v2099 = vadd.f32 %v1709, %v2041
      %v2100 = vadd.f32 %v1710, %v2046
      %v2101 = vadd.f32 %v1711, %v2051
      %v2102 = vadd.f32 %v1712, %v2056
      %v2103 = vadd.f32 %v1713, %v2061
      %v2104 = vadd.f32 %v1714, %v2066
      %v2105 = vadd.f32 %v1715, %v2071
      %v2106 = vld [vmem:[%s328 + $0x10] sm:$0xff]
      %v2107 = vld [vmem:[%s328 + $0x18] sm:$0xff]
      %v2108 = vld [vmem:[%s328 + $0x20] sm:$0xff]
      %v2109 = vld [vmem:[%s328 + $0x28] sm:$0xff]
      %v2110 = vld [vmem:[%s328 + $0x30] sm:$0xff]
      %v2111 = vld [vmem:[%s328 + $0x38] sm:$0xff]
      %v2112 = vld [vmem:[%s328 + $0x40] sm:$0xff]
      %v2113 = vld [vmem:[%s328 + $0x48] sm:$0xff]
      %v2114 = vld [vmem:[%s328 + $0x50] sm:$0xff]
      %v2115 = vld [vmem:[%s328 + $0x58] sm:$0xff]
      %v2116 = vld [vmem:[%s328 + $0x60] sm:$0xff]
      %v2117 = vld [vmem:[%s328 + $0x68] sm:$0xff]
      %v2118 = vld [vmem:[%s328 + $0x70] sm:$0xff]
      %v2119 = vld [vmem:[%s328 + $0x78] sm:$0xff]
      %v2120 = vld [vmem:[%s328 + $0x80] sm:$0xff]
      %v2121 = vld [vmem:[%s328 + $0x88] sm:$0xff]
      %v2122 = vld [vmem:[%s328 + $0x90] sm:$0xff]
      %v2123 = vld [vmem:[%s328 + $0x98] sm:$0xff]
      %v2124 = vld [vmem:[%s328 + $0xa0] sm:$0xff]
      %v2125 = vld [vmem:[%s328 + $0xa8] sm:$0xff]
      %v2126 = vld [vmem:[%s328 + $0xb0] sm:$0xff]
      %v2127 = vld [vmem:[%s328 + $0xb8] sm:$0xff]
      %v2128 = vld [vmem:[%s328 + $0xc0] sm:$0xff]
      %v2129 = vld [vmem:[%s328 + $0xc8] sm:$0xff]
      %v2130 = vld [vmem:[%s328 + $0xd0] sm:$0xff]
      %v2131 = vld [vmem:[%s328 + $0xd8] sm:$0xff]
      %v2132 = vld [vmem:[%s328 + $0xe0] sm:$0xff]
      %v2133 = vld [vmem:[%s328 + $0xe8] sm:$0xff]
      %v2134 = vld [vmem:[%s328 + $0xf0] sm:$0xff]
      %v2135 = vld [vmem:[%s328 + $0xf8] sm:$0xff]
      %v2136 = vld [vmem:[%s328 + $0x100] sm:$0xff]
      %v2137 = vld [vmem:[%s328 + $0x108] sm:$0xff]
      %s2138 = scalar_lea.vmem %s4, 40
      %v2139 = vld [vmem:[%s2138] sm:$0x3f]
      %v2141 = vsel %vm376, %v2106, 0
      %v2144 = vsel %vm376, %v2107, 0
      %v2147 = vsel %vm376, %v2108, 0
      %v2150 = vsel %vm376, %v2109, 0
      %v2153 = vsel %vm376, %v2110, 0
      %v2156 = vsel %vm376, %v2111, 0
      %v2159 = vsel %vm376, %v2112, 0
      %v2162 = vsel %vm376, %v2113, 0
      %v2165 = vsel %vm376, %v2114, 0
      %v2168 = vsel %vm376, %v2115, 0
      %v2171 = vsel %vm376, %v2116, 0
      %v2174 = vsel %vm376, %v2117, 0
      %v2177 = vsel %vm376, %v2118, 0
      %v2180 = vsel %vm376, %v2119, 0
      %v2183 = vsel %vm376, %v2120, 0
      %v2186 = vsel %vm376, %v2121, 0
      %v2189 = vsel %vm376, %v2122, 0
      %v2192 = vsel %vm376, %v2123, 0
      %v2195 = vsel %vm376, %v2124, 0
      %v2198 = vsel %vm376, %v2125, 0
      %v2201 = vsel %vm376, %v2126, 0
      %v2204 = vsel %vm376, %v2127, 0
      %v2207 = vsel %vm376, %v2128, 0
      %v2210 = vsel %vm376, %v2129, 0
      %v2213 = vsel %vm376, %v2130, 0
      %v2216 = vsel %vm376, %v2131, 0
      %v2219 = vsel %vm376, %v2132, 0
      %v2222 = vsel %vm376, %v2133, 0
      %v2225 = vsel %vm376, %v2134, 0
      %v2228 = vsel %vm376, %v2135, 0
      %v2231 = vsel %vm376, %v2136, 0
      %v2234 = vsel %vm376, %v2137, 0
      %v2237 = vsel %vm473, %v2139, 0
      %2239 = vmatprep.subr.mxu0 0.0
      %2240 = vmatpush1.msra.mxu0 0.0
      %2241 = vmatprep.subr.mxu0 0.0
      %2242 = vmatpush1.msra.mxu0 0.0
      %2243 = vmatprep.subr.mxu0 0.0
      %2244 = vmatpush1.msra.mxu0 0.0
      %2245 = vmatprep.subr.mxu0 0.0
      %2246 = vmatpush1.msra.mxu0 0.0
      %2247 = vmatprep.subr.mxu0 0.0
      %2248 = vmatpush1.msra.mxu0 0.0
      %2249 = vmatprep.subr.mxu0 0.0
      %2250 = vmatpush1.msra.mxu0 0.0
      %2251 = vmatprep.subr.mxu0 0.0
      %2252 = vmatpush1.msra.mxu0 0.0
      %2253 = vmatprep.subr.mxu0 0.0
      %2254 = vmatpush1.msra.mxu0 0.0
      %2255 = vmatprep.subr.mxu0 0.0
      %2256 = vmatpush1.msra.mxu0 0.0
      %2257 = vmatprep.subr.mxu0 0.0
      %2258 = vmatpush1.msra.mxu0 0.0
      %2259 = vmatprep.subr.mxu0 0.0
      %2260 = vmatpush1.msra.mxu0 0.0
      %2261 = vmatprep.subr.mxu0 0.0
      %2262 = vmatpush1.msra.mxu0 0.0
      %2263 = vmatprep.subr.mxu0 0.0
      %2264 = vmatpush1.msra.mxu0 0.0
      %2265 = vmatprep.subr.mxu0 0.0
      %2266 = vmatpush1.msra.mxu0 0.0
      %2267 = vmatprep.subr.mxu0 0.0
      %2268 = vmatpush1.msra.mxu0 0.0
      %2269 = vmatprep.subr.mxu0 0.0
      %2270 = vmatpush1.msra.mxu0 %v2237
      %2271 = vmatprep.subr.mxu0 0.0
      %2272 = vmatpush2.msra.mxu0 0.0
      %2273 = vmatprep.subr.mxu0 0.0
      %2274 = vmatpush2.msra.mxu0 0.0
      %2275 = vmatprep.subr.mxu0 0.0
      %2276 = vmatpush2.msra.mxu0 0.0
      %2277 = vmatprep.subr.mxu0 0.0
      %2278 = vmatpush2.msra.mxu0 0.0
      %2279 = vmatprep.subr.mxu0 0.0
      %2280 = vmatpush2.msra.mxu0 0.0
      %2281 = vmatprep.subr.mxu0 0.0
      %2282 = vmatpush2.msra.mxu0 0.0
      %2283 = vmatprep.subr.mxu0 0.0
      %2284 = vmatpush2.msra.mxu0 0.0
      %2285 = vmatprep.subr.mxu0 0.0
      %2286 = vmatpush2.msra.mxu0 0.0
      %2287 = vmatprep.subr.mxu0 0.0
      %2288 = vmatpush2.msra.mxu0 0.0
      %2289 = vmatprep.subr.mxu0 0.0
      %2290 = vmatpush2.msra.mxu0 0.0
      %2291 = vmatprep.subr.mxu0 0.0
      %2292 = vmatpush2.msra.mxu0 0.0
      %2293 = vmatprep.subr.mxu0 0.0
      %2294 = vmatpush2.msra.mxu0 0.0
      %2295 = vmatprep.subr.mxu0 0.0
      %2296 = vmatpush2.msra.mxu0 0.0
      %2297 = vmatprep.subr.mxu0 0.0
      %2298 = vmatpush2.msra.mxu0 0.0
      %2299 = vmatprep.subr.mxu0 0.0
      %2300 = vmatpush2.msra.mxu0 0.0
      %2301 = vmatprep.subr.mxu0 0.0
      %2302 = vmatpush2.msra.mxu0 0.0
      %2303 = vmatprep.mubr.f32.mxu0 0.0
      %2304 = vmatmul.mubr.f32.gmra.mxu0 %v2141
      %v2305 = vpop.f32.mrf.mxu0
      %v2306 = vadd.f32 0.0, %v2305
      %v2307 = vpop.f32.mrf.mxu0
      %2308 = vmatprep.mubr.f32.mxu0 0.0
      %2309 = vmatmul.mubr.f32.gmra.mxu0 %v2144
      %v2310 = vpop.f32.mrf.mxu0
      %v2311 = vadd.f32 0.0, %v2310
      %v2312 = vpop.f32.mrf.mxu0
      %2313 = vmatprep.mubr.f32.mxu0 0.0
      %2314 = vmatmul.mubr.f32.gmra.mxu0 %v2147
      %v2315 = vpop.f32.mrf.mxu0
      %v2316 = vadd.f32 0.0, %v2315
      %v2317 = vpop.f32.mrf.mxu0
      %2318 = vmatprep.mubr.f32.mxu0 0.0
      %2319 = vmatmul.mubr.f32.gmra.mxu0 %v2150
      %v2320 = vpop.f32.mrf.mxu0
      %v2321 = vadd.f32 0.0, %v2320
      %v2322 = vpop.f32.mrf.mxu0
      %2323 = vmatprep.mubr.f32.mxu0 0.0
      %2324 = vmatmul.mubr.f32.gmra.mxu0 %v2153
      %v2325 = vpop.f32.mrf.mxu0
      %v2326 = vadd.f32 0.0, %v2325
      %v2327 = vpop.f32.mrf.mxu0
      %2328 = vmatprep.mubr.f32.mxu0 0.0
      %2329 = vmatmul.mubr.f32.gmra.mxu0 %v2156
      %v2330 = vpop.f32.mrf.mxu0
      %v2331 = vadd.f32 0.0, %v2330
      %v2332 = vpop.f32.mrf.mxu0
      %2333 = vmatprep.mubr.f32.mxu0 0.0
      %2334 = vmatmul.mubr.f32.gmra.mxu0 %v2159
      %v2335 = vpop.f32.mrf.mxu0
      %v2336 = vadd.f32 0.0, %v2335
      %v2337 = vpop.f32.mrf.mxu0
      %2338 = vmatprep.mubr.f32.mxu0 0.0
      %2339 = vmatmul.mubr.f32.gmra.mxu0 %v2162
      %v2340 = vpop.f32.mrf.mxu0
      %v2341 = vadd.f32 0.0, %v2340
      %v2342 = vpop.f32.mrf.mxu0
      %2343 = vmatprep.mubr.f32.mxu0 0.0
      %2344 = vmatmul.mubr.f32.gmra.mxu0 %v2165
      %v2345 = vpop.f32.mrf.mxu0
      %v2346 = vadd.f32 0.0, %v2345
      %v2347 = vpop.f32.mrf.mxu0
      %2348 = vmatprep.mubr.f32.mxu0 0.0
      %2349 = vmatmul.mubr.f32.gmra.mxu0 %v2168
      %v2350 = vpop.f32.mrf.mxu0
      %v2351 = vadd.f32 0.0, %v2350
      %v2352 = vpop.f32.mrf.mxu0
      %2353 = vmatprep.mubr.f32.mxu0 0.0
      %2354 = vmatmul.mubr.f32.gmra.mxu0 %v2171
      %v2355 = vpop.f32.mrf.mxu0
      %v2356 = vadd.f32 0.0, %v2355
      %v2357 = vpop.f32.mrf.mxu0
      %2358 = vmatprep.mubr.f32.mxu0 0.0
      %2359 = vmatmul.mubr.f32.gmra.mxu0 %v2174
      %v2360 = vpop.f32.mrf.mxu0
      %v2361 = vadd.f32 0.0, %v2360
      %v2362 = vpop.f32.mrf.mxu0
      %2363 = vmatprep.mubr.f32.mxu0 0.0
      %2364 = vmatmul.mubr.f32.gmra.mxu0 %v2177
      %v2365 = vpop.f32.mrf.mxu0
      %v2366 = vadd.f32 0.0, %v2365
      %v2367 = vpop.f32.mrf.mxu0
      %2368 = vmatprep.mubr.f32.mxu0 0.0
      %2369 = vmatmul.mubr.f32.gmra.mxu0 %v2180
      %v2370 = vpop.f32.mrf.mxu0
      %v2371 = vadd.f32 0.0, %v2370
      %v2372 = vpop.f32.mrf.mxu0
      %2373 = vmatprep.mubr.f32.mxu0 0.0
      %2374 = vmatmul.mubr.f32.gmra.mxu0 %v2183
      %v2375 = vpop.f32.mrf.mxu0
      %v2376 = vadd.f32 0.0, %v2375
      %v2377 = vpop.f32.mrf.mxu0
      %2378 = vmatprep.mubr.f32.mxu0 0.0
      %2379 = vmatmul.mubr.f32.gmra.mxu0 %v2186
      %v2380 = vpop.f32.mrf.mxu0
      %v2381 = vadd.f32 0.0, %v2380
      %v2382 = vpop.f32.mrf.mxu0
      %2383 = vmatprep.mubr.f32.mxu0 0.0
      %2384 = vmatmul.mubr.f32.gmra.mxu0 %v2189
      %v2385 = vpop.f32.mrf.mxu0
      %v2386 = vadd.f32 0.0, %v2385
      %v2387 = vpop.f32.mrf.mxu0
      %2388 = vmatprep.mubr.f32.mxu0 0.0
      %2389 = vmatmul.mubr.f32.gmra.mxu0 %v2192
      %v2390 = vpop.f32.mrf.mxu0
      %v2391 = vadd.f32 0.0, %v2390
      %v2392 = vpop.f32.mrf.mxu0
      %2393 = vmatprep.mubr.f32.mxu0 0.0
      %2394 = vmatmul.mubr.f32.gmra.mxu0 %v2195
      %v2395 = vpop.f32.mrf.mxu0
      %v2396 = vadd.f32 0.0, %v2395
      %v2397 = vpop.f32.mrf.mxu0
      %2398 = vmatprep.mubr.f32.mxu0 0.0
      %2399 = vmatmul.mubr.f32.gmra.mxu0 %v2198
      %v2400 = vpop.f32.mrf.mxu0
      %v2401 = vadd.f32 0.0, %v2400
      %v2402 = vpop.f32.mrf.mxu0
      %2403 = vmatprep.mubr.f32.mxu0 0.0
      %2404 = vmatmul.mubr.f32.gmra.mxu0 %v2201
      %v2405 = vpop.f32.mrf.mxu0
      %v2406 = vadd.f32 0.0, %v2405
      %v2407 = vpop.f32.mrf.mxu0
      %2408 = vmatprep.mubr.f32.mxu0 0.0
      %2409 = vmatmul.mubr.f32.gmra.mxu0 %v2204
      %v2410 = vpop.f32.mrf.mxu0
      %v2411 = vadd.f32 0.0, %v2410
      %v2412 = vpop.f32.mrf.mxu0
      %2413 = vmatprep.mubr.f32.mxu0 0.0
      %2414 = vmatmul.mubr.f32.gmra.mxu0 %v2207
      %v2415 = vpop.f32.mrf.mxu0
      %v2416 = vadd.f32 0.0, %v2415
      %v2417 = vpop.f32.mrf.mxu0
      %2418 = vmatprep.mubr.f32.mxu0 0.0
      %2419 = vmatmul.mubr.f32.gmra.mxu0 %v2210
      %v2420 = vpop.f32.mrf.mxu0
      %v2421 = vadd.f32 0.0, %v2420
      %v2422 = vpop.f32.mrf.mxu0
      %2423 = vmatprep.mubr.f32.mxu0 0.0
      %2424 = vmatmul.mubr.f32.gmra.mxu0 %v2213
      %v2425 = vpop.f32.mrf.mxu0
      %v2426 = vadd.f32 0.0, %v2425
      %v2427 = vpop.f32.mrf.mxu0
      %2428 = vmatprep.mubr.f32.mxu0 0.0
      %2429 = vmatmul.mubr.f32.gmra.mxu0 %v2216
      %v2430 = vpop.f32.mrf.mxu0
      %v2431 = vadd.f32 0.0, %v2430
      %v2432 = vpop.f32.mrf.mxu0
      %2433 = vmatprep.mubr.f32.mxu0 0.0
      %2434 = vmatmul.mubr.f32.gmra.mxu0 %v2219
      %v2435 = vpop.f32.mrf.mxu0
      %v2436 = vadd.f32 0.0, %v2435
      %v2437 = vpop.f32.mrf.mxu0
      %2438 = vmatprep.mubr.f32.mxu0 0.0
      %2439 = vmatmul.mubr.f32.gmra.mxu0 %v2222
      %v2440 = vpop.f32.mrf.mxu0
      %v2441 = vadd.f32 0.0, %v2440
      %v2442 = vpop.f32.mrf.mxu0
      %2443 = vmatprep.mubr.f32.mxu0 0.0
      %2444 = vmatmul.mubr.f32.gmra.mxu0 %v2225
      %v2445 = vpop.f32.mrf.mxu0
      %v2446 = vadd.f32 0.0, %v2445
      %v2447 = vpop.f32.mrf.mxu0
      %2448 = vmatprep.mubr.f32.mxu0 0.0
      %2449 = vmatmul.mubr.f32.gmra.mxu0 %v2228
      %v2450 = vpop.f32.mrf.mxu0
      %v2451 = vadd.f32 0.0, %v2450
      %v2452 = vpop.f32.mrf.mxu0
      %2453 = vmatprep.mubr.f32.mxu0 0.0
      %2454 = vmatmul.mubr.f32.gmra.mxu0 %v2231
      %v2455 = vpop.f32.mrf.mxu0
      %v2456 = vadd.f32 0.0, %v2455
      %v2457 = vpop.f32.mrf.mxu0
      %2458 = vmatprep.mubr.f32.mxu0 0.0
      %2459 = vmatmul.mubr.f32.gmra.mxu0 %v2234
      %v2460 = vpop.f32.mrf.mxu0
      %v2461 = vadd.f32 0.0, %v2460
      %v2462 = vpop.f32.mrf.mxu0
      %2463 = vdwg.mxu0
      %v2464 = vadd.f32 %v2074, %v2306
      %v2465 = vadd.f32 %v2075, %v2311
      %v2466 = vadd.f32 %v2076, %v2316
      %v2467 = vadd.f32 %v2077, %v2321
      %v2468 = vadd.f32 %v2078, %v2326
      %v2469 = vadd.f32 %v2079, %v2331
      %v2470 = vadd.f32 %v2080, %v2336
      %v2471 = vadd.f32 %v2081, %v2341
      %v2472 = vadd.f32 %v2082, %v2346
      %v2473 = vadd.f32 %v2083, %v2351
      %v2474 = vadd.f32 %v2084, %v2356
      %v2475 = vadd.f32 %v2085, %v2361
      %v2476 = vadd.f32 %v2086, %v2366
      %v2477 = vadd.f32 %v2087, %v2371
      %v2478 = vadd.f32 %v2088, %v2376
      %v2479 = vadd.f32 %v2089, %v2381
      %v2480 = vadd.f32 %v2090, %v2386
      %v2481 = vadd.f32 %v2091, %v2391
      %v2482 = vadd.f32 %v2092, %v2396
      %v2483 = vadd.f32 %v2093, %v2401
      %v2484 = vadd.f32 %v2094, %v2406
      %v2485 = vadd.f32 %v2095, %v2411
      %v2486 = vadd.f32 %v2096, %v2416
      %v2487 = vadd.f32 %v2097, %v2421
      %v2488 = vadd.f32 %v2098, %v2426
      %v2489 = vadd.f32 %v2099, %v2431
      %v2490 = vadd.f32 %v2100, %v2436
      %v2491 = vadd.f32 %v2101, %v2441
      %v2492 = vadd.f32 %v2102, %v2446
      %v2493 = vadd.f32 %v2103, %v2451
      %v2494 = vadd.f32 %v2104, %v2456
      %v2495 = vadd.f32 %v2105, %v2461
      %v2496 = vld [vmem:[%s333] sm:$0xff]
      %v2497 = vld [vmem:[%s333 + $0x8] sm:$0xff]
      %v2498 = vld [vmem:[%s333 + $0x10] sm:$0xff]
      %v2499 = vld [vmem:[%s333 + $0x18] sm:$0xff]
      %v2500 = vld [vmem:[%s333 + $0x20] sm:$0xff]
      %v2501 = vld [vmem:[%s333 + $0x28] sm:$0xff]
      %v2502 = vld [vmem:[%s333 + $0x30] sm:$0xff]
      %v2503 = vld [vmem:[%s333 + $0x38] sm:$0xff]
      %v2504 = vld [vmem:[%s333 + $0x40] sm:$0xff]
      %v2505 = vld [vmem:[%s333 + $0x48] sm:$0xff]
      %v2506 = vld [vmem:[%s333 + $0x50] sm:$0xff]
      %v2507 = vld [vmem:[%s333 + $0x58] sm:$0xff]
      %v2508 = vld [vmem:[%s333 + $0x60] sm:$0xff]
      %v2509 = vld [vmem:[%s333 + $0x68] sm:$0xff]
      %v2510 = vld [vmem:[%s333 + $0x70] sm:$0xff]
      %v2511 = vld [vmem:[%s333 + $0x78] sm:$0xff]
      %v2512 = vld [vmem:[%s333 + $0x80] sm:$0xff]
      %v2513 = vld [vmem:[%s333 + $0x88] sm:$0xff]
      %v2514 = vld [vmem:[%s333 + $0x90] sm:$0xff]
      %v2515 = vld [vmem:[%s333 + $0x98] sm:$0xff]
      %v2516 = vld [vmem:[%s333 + $0xa0] sm:$0xff]
      %v2517 = vld [vmem:[%s333 + $0xa8] sm:$0xff]
      %v2518 = vld [vmem:[%s333 + $0xb0] sm:$0xff]
      %v2519 = vld [vmem:[%s333 + $0xb8] sm:$0xff]
      %v2520 = vld [vmem:[%s333 + $0xc0] sm:$0xff]
      %v2521 = vld [vmem:[%s333 + $0xc8] sm:$0xff]
      %v2522 = vld [vmem:[%s333 + $0xd0] sm:$0xff]
      %v2523 = vld [vmem:[%s333 + $0xd8] sm:$0xff]
      %v2524 = vld [vmem:[%s333 + $0xe0] sm:$0xff]
      %v2525 = vld [vmem:[%s333 + $0xe8] sm:$0xff]
      %v2526 = vld [vmem:[%s333 + $0xf0] sm:$0xff]
      %v2527 = vld [vmem:[%s333 + $0xf8] sm:$0xff]
      %s2528 = scalar_lea.vmem %s4, 48
      %v2529 = vld [vmem:[%s2528] sm:$0x3f]
      %v2531 = vsel %vm376, %v2496, 0
      %v2534 = vsel %vm376, %v2497, 0
      %v2537 = vsel %vm376, %v2498, 0
      %v2540 = vsel %vm376, %v2499, 0
      %v2543 = vsel %vm376, %v2500, 0
      %v2546 = vsel %vm376, %v2501, 0
      %v2549 = vsel %vm376, %v2502, 0
      %v2552 = vsel %vm376, %v2503, 0
      %v2555 = vsel %vm376, %v2504, 0
      %v2558 = vsel %vm376, %v2505, 0
      %v2561 = vsel %vm376, %v2506, 0
      %v2564 = vsel %vm376, %v2507, 0
      %v2567 = vsel %vm376, %v2508, 0
      %v2570 = vsel %vm376, %v2509, 0
      %v2573 = vsel %vm376, %v2510, 0
      %v2576 = vsel %vm376, %v2511, 0
      %v2579 = vsel %vm376, %v2512, 0
      %v2582 = vsel %vm376, %v2513, 0
      %v2585 = vsel %vm376, %v2514, 0
      %v2588 = vsel %vm376, %v2515, 0
      %v2591 = vsel %vm376, %v2516, 0
      %v2594 = vsel %vm376, %v2517, 0
      %v2597 = vsel %vm376, %v2518, 0
      %v2600 = vsel %vm376, %v2519, 0
      %v2603 = vsel %vm376, %v2520, 0
      %v2606 = vsel %vm376, %v2521, 0
      %v2609 = vsel %vm376, %v2522, 0
      %v2612 = vsel %vm376, %v2523, 0
      %v2615 = vsel %vm376, %v2524, 0
      %v2618 = vsel %vm376, %v2525, 0
      %v2621 = vsel %vm376, %v2526, 0
      %v2624 = vsel %vm376, %v2527, 0
      %v2627 = vsel %vm473, %v2529, 0
      %2629 = vmatprep.subr.mxu0 0.0
      %2630 = vmatpush1.msra.mxu0 0.0
      %2631 = vmatprep.subr.mxu0 0.0
      %2632 = vmatpush1.msra.mxu0 0.0
      %2633 = vmatprep.subr.mxu0 0.0
      %2634 = vmatpush1.msra.mxu0 0.0
      %2635 = vmatprep.subr.mxu0 0.0
      %2636 = vmatpush1.msra.mxu0 0.0
      %2637 = vmatprep.subr.mxu0 0.0
      %2638 = vmatpush1.msra.mxu0 0.0
      %2639 = vmatprep.subr.mxu0 0.0
      %2640 = vmatpush1.msra.mxu0 0.0
      %2641 = vmatprep.subr.mxu0 0.0
      %2642 = vmatpush1.msra.mxu0 0.0
      %2643 = vmatprep.subr.mxu0 0.0
      %2644 = vmatpush1.msra.mxu0 0.0
      %2645 = vmatprep.subr.mxu0 0.0
      %2646 = vmatpush1.msra.mxu0 0.0
      %2647 = vmatprep.subr.mxu0 0.0
      %2648 = vmatpush1.msra.mxu0 0.0
      %2649 = vmatprep.subr.mxu0 0.0
      %2650 = vmatpush1.msra.mxu0 0.0
      %2651 = vmatprep.subr.mxu0 0.0
      %2652 = vmatpush1.msra.mxu0 0.0
      %2653 = vmatprep.subr.mxu0 0.0
      %2654 = vmatpush1.msra.mxu0 0.0
      %2655 = vmatprep.subr.mxu0 0.0
      %2656 = vmatpush1.msra.mxu0 0.0
      %2657 = vmatprep.subr.mxu0 0.0
      %2658 = vmatpush1.msra.mxu0 0.0
      %2659 = vmatprep.subr.mxu0 0.0
      %2660 = vmatpush1.msra.mxu0 %v2627
      %2661 = vmatprep.subr.mxu0 0.0
      %2662 = vmatpush2.msra.mxu0 0.0
      %2663 = vmatprep.subr.mxu0 0.0
      %2664 = vmatpush2.msra.mxu0 0.0
      %2665 = vmatprep.subr.mxu0 0.0
      %2666 = vmatpush2.msra.mxu0 0.0
      %2667 = vmatprep.subr.mxu0 0.0
      %2668 = vmatpush2.msra.mxu0 0.0
      %2669 = vmatprep.subr.mxu0 0.0
      %2670 = vmatpush2.msra.mxu0 0.0
      %2671 = vmatprep.subr.mxu0 0.0
      %2672 = vmatpush2.msra.mxu0 0.0
      %2673 = vmatprep.subr.mxu0 0.0
      %2674 = vmatpush2.msra.mxu0 0.0
      %2675 = vmatprep.subr.mxu0 0.0
      %2676 = vmatpush2.msra.mxu0 0.0
      %2677 = vmatprep.subr.mxu0 0.0
      %2678 = vmatpush2.msra.mxu0 0.0
      %2679 = vmatprep.subr.mxu0 0.0
      %2680 = vmatpush2.msra.mxu0 0.0
      %2681 = vmatprep.subr.mxu0 0.0
      %2682 = vmatpush2.msra.mxu0 0.0
      %2683 = vmatprep.subr.mxu0 0.0
      %2684 = vmatpush2.msra.mxu0 0.0
      %2685 = vmatprep.subr.mxu0 0.0
      %2686 = vmatpush2.msra.mxu0 0.0
      %2687 = vmatprep.subr.mxu0 0.0
      %2688 = vmatpush2.msra.mxu0 0.0
      %2689 = vmatprep.subr.mxu0 0.0
      %2690 = vmatpush2.msra.mxu0 0.0
      %2691 = vmatprep.subr.mxu0 0.0
      %2692 = vmatpush2.msra.mxu0 0.0
      %2693 = vmatprep.mubr.f32.mxu0 0.0
      %2694 = vmatmul.mubr.f32.gmra.mxu0 %v2531
      %v2695 = vpop.f32.mrf.mxu0
      %v2696 = vadd.f32 0.0, %v2695
      %v2697 = vpop.f32.mrf.mxu0
      %2698 = vmatprep.mubr.f32.mxu0 0.0
      %2699 = vmatmul.mubr.f32.gmra.mxu0 %v2534
      %v2700 = vpop.f32.mrf.mxu0
      %v2701 = vadd.f32 0.0, %v2700
      %v2702 = vpop.f32.mrf.mxu0
      %2703 = vmatprep.mubr.f32.mxu0 0.0
      %2704 = vmatmul.mubr.f32.gmra.mxu0 %v2537
      %v2705 = vpop.f32.mrf.mxu0
      %v2706 = vadd.f32 0.0, %v2705
      %v2707 = vpop.f32.mrf.mxu0
      %2708 = vmatprep.mubr.f32.mxu0 0.0
      %2709 = vmatmul.mubr.f32.gmra.mxu0 %v2540
      %v2710 = vpop.f32.mrf.mxu0
      %v2711 = vadd.f32 0.0, %v2710
      %v2712 = vpop.f32.mrf.mxu0
      %2713 = vmatprep.mubr.f32.mxu0 0.0
      %2714 = vmatmul.mubr.f32.gmra.mxu0 %v2543
      %v2715 = vpop.f32.mrf.mxu0
      %v2716 = vadd.f32 0.0, %v2715
      %v2717 = vpop.f32.mrf.mxu0
      %2718 = vmatprep.mubr.f32.mxu0 0.0
      %2719 = vmatmul.mubr.f32.gmra.mxu0 %v2546
      %v2720 = vpop.f32.mrf.mxu0
      %v2721 = vadd.f32 0.0, %v2720
      %v2722 = vpop.f32.mrf.mxu0
      %2723 = vmatprep.mubr.f32.mxu0 0.0
      %2724 = vmatmul.mubr.f32.gmra.mxu0 %v2549
      %v2725 = vpop.f32.mrf.mxu0
      %v2726 = vadd.f32 0.0, %v2725
      %v2727 = vpop.f32.mrf.mxu0
      %2728 = vmatprep.mubr.f32.mxu0 0.0
      %2729 = vmatmul.mubr.f32.gmra.mxu0 %v2552
      %v2730 = vpop.f32.mrf.mxu0
      %v2731 = vadd.f32 0.0, %v2730
      %v2732 = vpop.f32.mrf.mxu0
      %2733 = vmatprep.mubr.f32.mxu0 0.0
      %2734 = vmatmul.mubr.f32.gmra.mxu0 %v2555
      %v2735 = vpop.f32.mrf.mxu0
      %v2736 = vadd.f32 0.0, %v2735
      %v2737 = vpop.f32.mrf.mxu0
      %2738 = vmatprep.mubr.f32.mxu0 0.0
      %2739 = vmatmul.mubr.f32.gmra.mxu0 %v2558
      %v2740 = vpop.f32.mrf.mxu0
      %v2741 = vadd.f32 0.0, %v2740
      %v2742 = vpop.f32.mrf.mxu0
      %2743 = vmatprep.mubr.f32.mxu0 0.0
      %2744 = vmatmul.mubr.f32.gmra.mxu0 %v2561
      %v2745 = vpop.f32.mrf.mxu0
      %v2746 = vadd.f32 0.0, %v2745
      %v2747 = vpop.f32.mrf.mxu0
      %2748 = vmatprep.mubr.f32.mxu0 0.0
      %2749 = vmatmul.mubr.f32.gmra.mxu0 %v2564
      %v2750 = vpop.f32.mrf.mxu0
      %v2751 = vadd.f32 0.0, %v2750
      %v2752 = vpop.f32.mrf.mxu0
      %2753 = vmatprep.mubr.f32.mxu0 0.0
      %2754 = vmatmul.mubr.f32.gmra.mxu0 %v2567
      %v2755 = vpop.f32.mrf.mxu0
      %v2756 = vadd.f32 0.0, %v2755
      %v2757 = vpop.f32.mrf.mxu0
      %2758 = vmatprep.mubr.f32.mxu0 0.0
      %2759 = vmatmul.mubr.f32.gmra.mxu0 %v2570
      %v2760 = vpop.f32.mrf.mxu0
      %v2761 = vadd.f32 0.0, %v2760
      %v2762 = vpop.f32.mrf.mxu0
      %2763 = vmatprep.mubr.f32.mxu0 0.0
      %2764 = vmatmul.mubr.f32.gmra.mxu0 %v2573
      %v2765 = vpop.f32.mrf.mxu0
      %v2766 = vadd.f32 0.0, %v2765
      %v2767 = vpop.f32.mrf.mxu0
      %2768 = vmatprep.mubr.f32.mxu0 0.0
      %2769 = vmatmul.mubr.f32.gmra.mxu0 %v2576
      %v2770 = vpop.f32.mrf.mxu0
      %v2771 = vadd.f32 0.0, %v2770
      %v2772 = vpop.f32.mrf.mxu0
      %2773 = vmatprep.mubr.f32.mxu0 0.0
      %2774 = vmatmul.mubr.f32.gmra.mxu0 %v2579
      %v2775 = vpop.f32.mrf.mxu0
      %v2776 = vadd.f32 0.0, %v2775
      %v2777 = vpop.f32.mrf.mxu0
      %2778 = vmatprep.mubr.f32.mxu0 0.0
      %2779 = vmatmul.mubr.f32.gmra.mxu0 %v2582
      %v2780 = vpop.f32.mrf.mxu0
      %v2781 = vadd.f32 0.0, %v2780
      %v2782 = vpop.f32.mrf.mxu0
      %2783 = vmatprep.mubr.f32.mxu0 0.0
      %2784 = vmatmul.mubr.f32.gmra.mxu0 %v2585
      %v2785 = vpop.f32.mrf.mxu0
      %v2786 = vadd.f32 0.0, %v2785
      %v2787 = vpop.f32.mrf.mxu0
      %2788 = vmatprep.mubr.f32.mxu0 0.0
      %2789 = vmatmul.mubr.f32.gmra.mxu0 %v2588
      %v2790 = vpop.f32.mrf.mxu0
      %v2791 = vadd.f32 0.0, %v2790
      %v2792 = vpop.f32.mrf.mxu0
      %2793 = vmatprep.mubr.f32.mxu0 0.0
      %2794 = vmatmul.mubr.f32.gmra.mxu0 %v2591
      %v2795 = vpop.f32.mrf.mxu0
      %v2796 = vadd.f32 0.0, %v2795
      %v2797 = vpop.f32.mrf.mxu0
      %2798 = vmatprep.mubr.f32.mxu0 0.0
      %2799 = vmatmul.mubr.f32.gmra.mxu0 %v2594
      %v2800 = vpop.f32.mrf.mxu0
      %v2801 = vadd.f32 0.0, %v2800
      %v2802 = vpop.f32.mrf.mxu0
      %2803 = vmatprep.mubr.f32.mxu0 0.0
      %2804 = vmatmul.mubr.f32.gmra.mxu0 %v2597
      %v2805 = vpop.f32.mrf.mxu0
      %v2806 = vadd.f32 0.0, %v2805
      %v2807 = vpop.f32.mrf.mxu0
      %2808 = vmatprep.mubr.f32.mxu0 0.0
      %2809 = vmatmul.mubr.f32.gmra.mxu0 %v2600
      %v2810 = vpop.f32.mrf.mxu0
      %v2811 = vadd.f32 0.0, %v2810
      %v2812 = vpop.f32.mrf.mxu0
      %2813 = vmatprep.mubr.f32.mxu0 0.0
      %2814 = vmatmul.mubr.f32.gmra.mxu0 %v2603
      %v2815 = vpop.f32.mrf.mxu0
      %v2816 = vadd.f32 0.0, %v2815
      %v2817 = vpop.f32.mrf.mxu0
      %2818 = vmatprep.mubr.f32.mxu0 0.0
      %2819 = vmatmul.mubr.f32.gmra.mxu0 %v2606
      %v2820 = vpop.f32.mrf.mxu0
      %v2821 = vadd.f32 0.0, %v2820
      %v2822 = vpop.f32.mrf.mxu0
      %2823 = vmatprep.mubr.f32.mxu0 0.0
      %2824 = vmatmul.mubr.f32.gmra.mxu0 %v2609
      %v2825 = vpop.f32.mrf.mxu0
      %v2826 = vadd.f32 0.0, %v2825
      %v2827 = vpop.f32.mrf.mxu0
      %2828 = vmatprep.mubr.f32.mxu0 0.0
      %2829 = vmatmul.mubr.f32.gmra.mxu0 %v2612
      %v2830 = vpop.f32.mrf.mxu0
      %v2831 = vadd.f32 0.0, %v2830
      %v2832 = vpop.f32.mrf.mxu0
      %2833 = vmatprep.mubr.f32.mxu0 0.0
      %2834 = vmatmul.mubr.f32.gmra.mxu0 %v2615
      %v2835 = vpop.f32.mrf.mxu0
      %v2836 = vadd.f32 0.0, %v2835
      %v2837 = vpop.f32.mrf.mxu0
      %2838 = vmatprep.mubr.f32.mxu0 0.0
      %2839 = vmatmul.mubr.f32.gmra.mxu0 %v2618
      %v2840 = vpop.f32.mrf.mxu0
      %v2841 = vadd.f32 0.0, %v2840
      %v2842 = vpop.f32.mrf.mxu0
      %2843 = vmatprep.mubr.f32.mxu0 0.0
      %2844 = vmatmul.mubr.f32.gmra.mxu0 %v2621
      %v2845 = vpop.f32.mrf.mxu0
      %v2846 = vadd.f32 0.0, %v2845
      %v2847 = vpop.f32.mrf.mxu0
      %2848 = vmatprep.mubr.f32.mxu0 0.0
      %2849 = vmatmul.mubr.f32.gmra.mxu0 %v2624
      %v2850 = vpop.f32.mrf.mxu0
      %v2851 = vadd.f32 0.0, %v2850
      %v2852 = vpop.f32.mrf.mxu0
      %2853 = vdwg.mxu0
      %v2854 = vadd.f32 %v2464, %v2696
      %v2855 = vadd.f32 %v2465, %v2701
      %v2856 = vadd.f32 %v2466, %v2706
      %v2857 = vadd.f32 %v2467, %v2711
      %v2858 = vadd.f32 %v2468, %v2716
      %v2859 = vadd.f32 %v2469, %v2721
      %v2860 = vadd.f32 %v2470, %v2726
      %v2861 = vadd.f32 %v2471, %v2731
      %v2862 = vadd.f32 %v2472, %v2736
      %v2863 = vadd.f32 %v2473, %v2741
      %v2864 = vadd.f32 %v2474, %v2746
      %v2865 = vadd.f32 %v2475, %v2751
      %v2866 = vadd.f32 %v2476, %v2756
      %v2867 = vadd.f32 %v2477, %v2761
      %v2868 = vadd.f32 %v2478, %v2766
      %v2869 = vadd.f32 %v2479, %v2771
      %v2870 = vadd.f32 %v2480, %v2776
      %v2871 = vadd.f32 %v2481, %v2781
      %v2872 = vadd.f32 %v2482, %v2786
      %v2873 = vadd.f32 %v2483, %v2791
      %v2874 = vadd.f32 %v2484, %v2796
      %v2875 = vadd.f32 %v2485, %v2801
      %v2876 = vadd.f32 %v2486, %v2806
      %v2877 = vadd.f32 %v2487, %v2811
      %v2878 = vadd.f32 %v2488, %v2816
      %v2879 = vadd.f32 %v2489, %v2821
      %v2880 = vadd.f32 %v2490, %v2826
      %v2881 = vadd.f32 %v2491, %v2831
      %v2882 = vadd.f32 %v2492, %v2836
      %v2883 = vadd.f32 %v2493, %v2841
      %v2884 = vadd.f32 %v2494, %v2846
      %v2885 = vadd.f32 %v2495, %v2851
      %v2886 = vld [vmem:[%s333 + $0x10] sm:$0xff]
      %v2887 = vld [vmem:[%s333 + $0x18] sm:$0xff]
      %v2888 = vld [vmem:[%s333 + $0x20] sm:$0xff]
      %v2889 = vld [vmem:[%s333 + $0x28] sm:$0xff]
      %v2890 = vld [vmem:[%s333 + $0x30] sm:$0xff]
      %v2891 = vld [vmem:[%s333 + $0x38] sm:$0xff]
      %v2892 = vld [vmem:[%s333 + $0x40] sm:$0xff]
      %v2893 = vld [vmem:[%s333 + $0x48] sm:$0xff]
      %v2894 = vld [vmem:[%s333 + $0x50] sm:$0xff]
      %v2895 = vld [vmem:[%s333 + $0x58] sm:$0xff]
      %v2896 = vld [vmem:[%s333 + $0x60] sm:$0xff]
      %v2897 = vld [vmem:[%s333 + $0x68] sm:$0xff]
      %v2898 = vld [vmem:[%s333 + $0x70] sm:$0xff]
      %v2899 = vld [vmem:[%s333 + $0x78] sm:$0xff]
      %v2900 = vld [vmem:[%s333 + $0x80] sm:$0xff]
      %v2901 = vld [vmem:[%s333 + $0x88] sm:$0xff]
      %v2902 = vld [vmem:[%s333 + $0x90] sm:$0xff]
      %v2903 = vld [vmem:[%s333 + $0x98] sm:$0xff]
      %v2904 = vld [vmem:[%s333 + $0xa0] sm:$0xff]
      %v2905 = vld [vmem:[%s333 + $0xa8] sm:$0xff]
      %v2906 = vld [vmem:[%s333 + $0xb0] sm:$0xff]
      %v2907 = vld [vmem:[%s333 + $0xb8] sm:$0xff]
      %v2908 = vld [vmem:[%s333 + $0xc0] sm:$0xff]
      %v2909 = vld [vmem:[%s333 + $0xc8] sm:$0xff]
      %v2910 = vld [vmem:[%s333 + $0xd0] sm:$0xff]
      %v2911 = vld [vmem:[%s333 + $0xd8] sm:$0xff]
      %v2912 = vld [vmem:[%s333 + $0xe0] sm:$0xff]
      %v2913 = vld [vmem:[%s333 + $0xe8] sm:$0xff]
      %v2914 = vld [vmem:[%s333 + $0xf0] sm:$0xff]
      %v2915 = vld [vmem:[%s333 + $0xf8] sm:$0xff]
      %v2916 = vld [vmem:[%s333 + $0x100] sm:$0xff]
      %v2917 = vld [vmem:[%s333 + $0x108] sm:$0xff]
      %s2918 = scalar_lea.vmem %s4, 56
      %v2919 = vld [vmem:[%s2918] sm:$0x3f]
      %v2921 = vsel %vm376, %v2886, 0
      %v2924 = vsel %vm376, %v2887, 0
      %v2927 = vsel %vm376, %v2888, 0
      %v2930 = vsel %vm376, %v2889, 0
      %v2933 = vsel %vm376, %v2890, 0
      %v2936 = vsel %vm376, %v2891, 0
      %v2939 = vsel %vm376, %v2892, 0
      %v2942 = vsel %vm376, %v2893, 0
      %v2945 = vsel %vm376, %v2894, 0
      %v2948 = vsel %vm376, %v2895, 0
      %v2951 = vsel %vm376, %v2896, 0
      %v2954 = vsel %vm376, %v2897, 0
      %v2957 = vsel %vm376, %v2898, 0
      %v2960 = vsel %vm376, %v2899, 0
      %v2963 = vsel %vm376, %v2900, 0
      %v2966 = vsel %vm376, %v2901, 0
      %v2969 = vsel %vm376, %v2902, 0
      %v2972 = vsel %vm376, %v2903, 0
      %v2975 = vsel %vm376, %v2904, 0
      %v2978 = vsel %vm376, %v2905, 0
      %v2981 = vsel %vm376, %v2906, 0
      %v2984 = vsel %vm376, %v2907, 0
      %v2987 = vsel %vm376, %v2908, 0
      %v2990 = vsel %vm376, %v2909, 0
      %v2993 = vsel %vm376, %v2910, 0
      %v2996 = vsel %vm376, %v2911, 0
      %v2999 = vsel %vm376, %v2912, 0
      %v3002 = vsel %vm376, %v2913, 0
      %v3005 = vsel %vm376, %v2914, 0
      %v3008 = vsel %vm376, %v2915, 0
      %v3011 = vsel %vm376, %v2916, 0
      %v3014 = vsel %vm376, %v2917, 0
      %v3017 = vsel %vm473, %v2919, 0
      %3019 = vmatprep.subr.mxu0 0.0
      %3020 = vmatpush1.msra.mxu0 0.0
      %3021 = vmatprep.subr.mxu0 0.0
      %3022 = vmatpush1.msra.mxu0 0.0
      %3023 = vmatprep.subr.mxu0 0.0
      %3024 = vmatpush1.msra.mxu0 0.0
      %3025 = vmatprep.subr.mxu0 0.0
      %3026 = vmatpush1.msra.mxu0 0.0
      %3027 = vmatprep.subr.mxu0 0.0
      %3028 = vmatpush1.msra.mxu0 0.0
      %3029 = vmatprep.subr.mxu0 0.0
      %3030 = vmatpush1.msra.mxu0 0.0
      %3031 = vmatprep.subr.mxu0 0.0
      %3032 = vmatpush1.msra.mxu0 0.0
      %3033 = vmatprep.subr.mxu0 0.0
      %3034 = vmatpush1.msra.mxu0 0.0
      %3035 = vmatprep.subr.mxu0 0.0
      %3036 = vmatpush1.msra.mxu0 0.0
      %3037 = vmatprep.subr.mxu0 0.0
      %3038 = vmatpush1.msra.mxu0 0.0
      %3039 = vmatprep.subr.mxu0 0.0
      %3040 = vmatpush1.msra.mxu0 0.0
      %3041 = vmatprep.subr.mxu0 0.0
      %3042 = vmatpush1.msra.mxu0 0.0
      %3043 = vmatprep.subr.mxu0 0.0
      %3044 = vmatpush1.msra.mxu0 0.0
      %3045 = vmatprep.subr.mxu0 0.0
      %3046 = vmatpush1.msra.mxu0 0.0
      %3047 = vmatprep.subr.mxu0 0.0
      %3048 = vmatpush1.msra.mxu0 0.0
      %3049 = vmatprep.subr.mxu0 0.0
      %3050 = vmatpush1.msra.mxu0 %v3017
      %3051 = vmatprep.subr.mxu0 0.0
      %3052 = vmatpush2.msra.mxu0 0.0
      %3053 = vmatprep.subr.mxu0 0.0
      %3054 = vmatpush2.msra.mxu0 0.0
      %3055 = vmatprep.subr.mxu0 0.0
      %3056 = vmatpush2.msra.mxu0 0.0
      %3057 = vmatprep.subr.mxu0 0.0
      %3058 = vmatpush2.msra.mxu0 0.0
      %3059 = vmatprep.subr.mxu0 0.0
      %3060 = vmatpush2.msra.mxu0 0.0
      %3061 = vmatprep.subr.mxu0 0.0
      %3062 = vmatpush2.msra.mxu0 0.0
      %3063 = vmatprep.subr.mxu0 0.0
      %3064 = vmatpush2.msra.mxu0 0.0
      %3065 = vmatprep.subr.mxu0 0.0
      %3066 = vmatpush2.msra.mxu0 0.0
      %3067 = vmatprep.subr.mxu0 0.0
      %3068 = vmatpush2.msra.mxu0 0.0
      %3069 = vmatprep.subr.mxu0 0.0
      %3070 = vmatpush2.msra.mxu0 0.0
      %3071 = vmatprep.subr.mxu0 0.0
      %3072 = vmatpush2.msra.mxu0 0.0
      %3073 = vmatprep.subr.mxu0 0.0
      %3074 = vmatpush2.msra.mxu0 0.0
      %3075 = vmatprep.subr.mxu0 0.0
      %3076 = vmatpush2.msra.mxu0 0.0
      %3077 = vmatprep.subr.mxu0 0.0
      %3078 = vmatpush2.msra.mxu0 0.0
      %3079 = vmatprep.subr.mxu0 0.0
      %3080 = vmatpush2.msra.mxu0 0.0
      %3081 = vmatprep.subr.mxu0 0.0
      %3082 = vmatpush2.msra.mxu0 0.0
      %3083 = vmatprep.mubr.f32.mxu0 0.0
      %3084 = vmatmul.mubr.f32.gmra.mxu0 %v2921
      %v3085 = vpop.f32.mrf.mxu0
      %v3086 = vadd.f32 0.0, %v3085
      %v3087 = vpop.f32.mrf.mxu0
      %3088 = vmatprep.mubr.f32.mxu0 0.0
      %3089 = vmatmul.mubr.f32.gmra.mxu0 %v2924
      %v3090 = vpop.f32.mrf.mxu0
      %v3091 = vadd.f32 0.0, %v3090
      %v3092 = vpop.f32.mrf.mxu0
      %3093 = vmatprep.mubr.f32.mxu0 0.0
      %3094 = vmatmul.mubr.f32.gmra.mxu0 %v2927
      %v3095 = vpop.f32.mrf.mxu0
      %v3096 = vadd.f32 0.0, %v3095
      %v3097 = vpop.f32.mrf.mxu0
      %3098 = vmatprep.mubr.f32.mxu0 0.0
      %3099 = vmatmul.mubr.f32.gmra.mxu0 %v2930
      %v3100 = vpop.f32.mrf.mxu0
      %v3101 = vadd.f32 0.0, %v3100
      %v3102 = vpop.f32.mrf.mxu0
      %3103 = vmatprep.mubr.f32.mxu0 0.0
      %3104 = vmatmul.mubr.f32.gmra.mxu0 %v2933
      %v3105 = vpop.f32.mrf.mxu0
      %v3106 = vadd.f32 0.0, %v3105
      %v3107 = vpop.f32.mrf.mxu0
      %3108 = vmatprep.mubr.f32.mxu0 0.0
      %3109 = vmatmul.mubr.f32.gmra.mxu0 %v2936
      %v3110 = vpop.f32.mrf.mxu0
      %v3111 = vadd.f32 0.0, %v3110
      %v3112 = vpop.f32.mrf.mxu0
      %3113 = vmatprep.mubr.f32.mxu0 0.0
      %3114 = vmatmul.mubr.f32.gmra.mxu0 %v2939
      %v3115 = vpop.f32.mrf.mxu0
      %v3116 = vadd.f32 0.0, %v3115
      %v3117 = vpop.f32.mrf.mxu0
      %3118 = vmatprep.mubr.f32.mxu0 0.0
      %3119 = vmatmul.mubr.f32.gmra.mxu0 %v2942
      %v3120 = vpop.f32.mrf.mxu0
      %v3121 = vadd.f32 0.0, %v3120
      %v3122 = vpop.f32.mrf.mxu0
      %3123 = vmatprep.mubr.f32.mxu0 0.0
      %3124 = vmatmul.mubr.f32.gmra.mxu0 %v2945
      %v3125 = vpop.f32.mrf.mxu0
      %v3126 = vadd.f32 0.0, %v3125
      %v3127 = vpop.f32.mrf.mxu0
      %3128 = vmatprep.mubr.f32.mxu0 0.0
      %3129 = vmatmul.mubr.f32.gmra.mxu0 %v2948
      %v3130 = vpop.f32.mrf.mxu0
      %v3131 = vadd.f32 0.0, %v3130
      %v3132 = vpop.f32.mrf.mxu0
      %3133 = vmatprep.mubr.f32.mxu0 0.0
      %3134 = vmatmul.mubr.f32.gmra.mxu0 %v2951
      %v3135 = vpop.f32.mrf.mxu0
      %v3136 = vadd.f32 0.0, %v3135
      %v3137 = vpop.f32.mrf.mxu0
      %3138 = vmatprep.mubr.f32.mxu0 0.0
      %3139 = vmatmul.mubr.f32.gmra.mxu0 %v2954
      %v3140 = vpop.f32.mrf.mxu0
      %v3141 = vadd.f32 0.0, %v3140
      %v3142 = vpop.f32.mrf.mxu0
      %3143 = vmatprep.mubr.f32.mxu0 0.0
      %3144 = vmatmul.mubr.f32.gmra.mxu0 %v2957
      %v3145 = vpop.f32.mrf.mxu0
      %v3146 = vadd.f32 0.0, %v3145
      %v3147 = vpop.f32.mrf.mxu0
      %3148 = vmatprep.mubr.f32.mxu0 0.0
      %3149 = vmatmul.mubr.f32.gmra.mxu0 %v2960
      %v3150 = vpop.f32.mrf.mxu0
      %v3151 = vadd.f32 0.0, %v3150
      %v3152 = vpop.f32.mrf.mxu0
      %3153 = vmatprep.mubr.f32.mxu0 0.0
      %3154 = vmatmul.mubr.f32.gmra.mxu0 %v2963
      %v3155 = vpop.f32.mrf.mxu0
      %v3156 = vadd.f32 0.0, %v3155
      %v3157 = vpop.f32.mrf.mxu0
      %3158 = vmatprep.mubr.f32.mxu0 0.0
      %3159 = vmatmul.mubr.f32.gmra.mxu0 %v2966
      %v3160 = vpop.f32.mrf.mxu0
      %v3161 = vadd.f32 0.0, %v3160
      %v3162 = vpop.f32.mrf.mxu0
      %3163 = vmatprep.mubr.f32.mxu0 0.0
      %3164 = vmatmul.mubr.f32.gmra.mxu0 %v2969
      %v3165 = vpop.f32.mrf.mxu0
      %v3166 = vadd.f32 0.0, %v3165
      %v3167 = vpop.f32.mrf.mxu0
      %3168 = vmatprep.mubr.f32.mxu0 0.0
      %3169 = vmatmul.mubr.f32.gmra.mxu0 %v2972
      %v3170 = vpop.f32.mrf.mxu0
      %v3171 = vadd.f32 0.0, %v3170
      %v3172 = vpop.f32.mrf.mxu0
      %3173 = vmatprep.mubr.f32.mxu0 0.0
      %3174 = vmatmul.mubr.f32.gmra.mxu0 %v2975
      %v3175 = vpop.f32.mrf.mxu0
      %v3176 = vadd.f32 0.0, %v3175
      %v3177 = vpop.f32.mrf.mxu0
      %3178 = vmatprep.mubr.f32.mxu0 0.0
      %3179 = vmatmul.mubr.f32.gmra.mxu0 %v2978
      %v3180 = vpop.f32.mrf.mxu0
      %v3181 = vadd.f32 0.0, %v3180
      %v3182 = vpop.f32.mrf.mxu0
      %3183 = vmatprep.mubr.f32.mxu0 0.0
      %3184 = vmatmul.mubr.f32.gmra.mxu0 %v2981
      %v3185 = vpop.f32.mrf.mxu0
      %v3186 = vadd.f32 0.0, %v3185
      %v3187 = vpop.f32.mrf.mxu0
      %3188 = vmatprep.mubr.f32.mxu0 0.0
      %3189 = vmatmul.mubr.f32.gmra.mxu0 %v2984
      %v3190 = vpop.f32.mrf.mxu0
      %v3191 = vadd.f32 0.0, %v3190
      %v3192 = vpop.f32.mrf.mxu0
      %3193 = vmatprep.mubr.f32.mxu0 0.0
      %3194 = vmatmul.mubr.f32.gmra.mxu0 %v2987
      %v3195 = vpop.f32.mrf.mxu0
      %v3196 = vadd.f32 0.0, %v3195
      %v3197 = vpop.f32.mrf.mxu0
      %3198 = vmatprep.mubr.f32.mxu0 0.0
      %3199 = vmatmul.mubr.f32.gmra.mxu0 %v2990
      %v3200 = vpop.f32.mrf.mxu0
      %v3201 = vadd.f32 0.0, %v3200
      %v3202 = vpop.f32.mrf.mxu0
      %3203 = vmatprep.mubr.f32.mxu0 0.0
      %3204 = vmatmul.mubr.f32.gmra.mxu0 %v2993
      %v3205 = vpop.f32.mrf.mxu0
      %v3206 = vadd.f32 0.0, %v3205
      %v3207 = vpop.f32.mrf.mxu0
      %3208 = vmatprep.mubr.f32.mxu0 0.0
      %3209 = vmatmul.mubr.f32.gmra.mxu0 %v2996
      %v3210 = vpop.f32.mrf.mxu0
      %v3211 = vadd.f32 0.0, %v3210
      %v3212 = vpop.f32.mrf.mxu0
      %3213 = vmatprep.mubr.f32.mxu0 0.0
      %3214 = vmatmul.mubr.f32.gmra.mxu0 %v2999
      %v3215 = vpop.f32.mrf.mxu0
      %v3216 = vadd.f32 0.0, %v3215
      %v3217 = vpop.f32.mrf.mxu0
      %3218 = vmatprep.mubr.f32.mxu0 0.0
      %3219 = vmatmul.mubr.f32.gmra.mxu0 %v3002
      %v3220 = vpop.f32.mrf.mxu0
      %v3221 = vadd.f32 0.0, %v3220
      %v3222 = vpop.f32.mrf.mxu0
      %3223 = vmatprep.mubr.f32.mxu0 0.0
      %3224 = vmatmul.mubr.f32.gmra.mxu0 %v3005
      %v3225 = vpop.f32.mrf.mxu0
      %v3226 = vadd.f32 0.0, %v3225
      %v3227 = vpop.f32.mrf.mxu0
      %3228 = vmatprep.mubr.f32.mxu0 0.0
      %3229 = vmatmul.mubr.f32.gmra.mxu0 %v3008
      %v3230 = vpop.f32.mrf.mxu0
      %v3231 = vadd.f32 0.0, %v3230
      %v3232 = vpop.f32.mrf.mxu0
      %3233 = vmatprep.mubr.f32.mxu0 0.0
      %3234 = vmatmul.mubr.f32.gmra.mxu0 %v3011
      %v3235 = vpop.f32.mrf.mxu0
      %v3236 = vadd.f32 0.0, %v3235
      %v3237 = vpop.f32.mrf.mxu0
      %3238 = vmatprep.mubr.f32.mxu0 0.0
      %3239 = vmatmul.mubr.f32.gmra.mxu0 %v3014
      %v3240 = vpop.f32.mrf.mxu0
      %v3241 = vadd.f32 0.0, %v3240
      %v3242 = vpop.f32.mrf.mxu0
      %3243 = vdwg.mxu0
      %v3244 = vadd.f32 %v2854, %v3086
      %v3245 = vadd.f32 %v2855, %v3091
      %v3246 = vadd.f32 %v2856, %v3096
      %v3247 = vadd.f32 %v2857, %v3101
      %v3248 = vadd.f32 %v2858, %v3106
      %v3249 = vadd.f32 %v2859, %v3111
      %v3250 = vadd.f32 %v2860, %v3116
      %v3251 = vadd.f32 %v2861, %v3121
      %v3252 = vadd.f32 %v2862, %v3126
      %v3253 = vadd.f32 %v2863, %v3131
      %v3254 = vadd.f32 %v2864, %v3136
      %v3255 = vadd.f32 %v2865, %v3141
      %v3256 = vadd.f32 %v2866, %v3146
      %v3257 = vadd.f32 %v2867, %v3151
      %v3258 = vadd.f32 %v2868, %v3156
      %v3259 = vadd.f32 %v2869, %v3161
      %v3260 = vadd.f32 %v2870, %v3166
      %v3261 = vadd.f32 %v2871, %v3171
      %v3262 = vadd.f32 %v2872, %v3176
      %v3263 = vadd.f32 %v2873, %v3181
      %v3264 = vadd.f32 %v2874, %v3186
      %v3265 = vadd.f32 %v2875, %v3191
      %v3266 = vadd.f32 %v2876, %v3196
      %v3267 = vadd.f32 %v2877, %v3201
      %v3268 = vadd.f32 %v2878, %v3206
      %v3269 = vadd.f32 %v2879, %v3211
      %v3270 = vadd.f32 %v2880, %v3216
      %v3271 = vadd.f32 %v2881, %v3221
      %v3272 = vadd.f32 %v2882, %v3226
      %v3273 = vadd.f32 %v2883, %v3231
      %v3274 = vadd.f32 %v2884, %v3236
      %v3275 = vadd.f32 %v2885, %v3241
      %v3276 = vld [vmem:[%s5] sm:$0x1]
      %v3278 = vlaneseq
      %v3279 = vshrl.u32 %v3278, 7
      %v3280 = vsub.s32 0, %v3279
      %v3281 = vrot.slane %v3276, %v3280
      %v3283 = vmul.f32 %v3244, %v3281
      %v3284 = vmul.f32 %v3245, %v3281
      %v3285 = vmul.f32 %v3246, %v3281
      %v3286 = vmul.f32 %v3247, %v3281
      %v3287 = vmul.f32 %v3248, %v3281
      %v3288 = vmul.f32 %v3249, %v3281
      %v3289 = vmul.f32 %v3250, %v3281
      %v3290 = vmul.f32 %v3251, %v3281
      %v3291 = vmul.f32 %v3252, %v3281
      %v3292 = vmul.f32 %v3253, %v3281
      %v3293 = vmul.f32 %v3254, %v3281
      %v3294 = vmul.f32 %v3255, %v3281
      %v3295 = vmul.f32 %v3256, %v3281
      %v3296 = vmul.f32 %v3257, %v3281
      %v3297 = vmul.f32 %v3258, %v3281
      %v3298 = vmul.f32 %v3259, %v3281
      %v3299 = vmul.f32 %v3260, %v3281
      %v3300 = vmul.f32 %v3261, %v3281
      %v3301 = vmul.f32 %v3262, %v3281
      %v3302 = vmul.f32 %v3263, %v3281
      %v3303 = vmul.f32 %v3264, %v3281
      %v3304 = vmul.f32 %v3265, %v3281
      %v3305 = vmul.f32 %v3266, %v3281
      %v3306 = vmul.f32 %v3267, %v3281
      %v3307 = vmul.f32 %v3268, %v3281
      %v3308 = vmul.f32 %v3269, %v3281
      %v3309 = vmul.f32 %v3270, %v3281
      %v3310 = vmul.f32 %v3271, %v3281
      %v3311 = vmul.f32 %v3272, %v3281
      %v3312 = vmul.f32 %v3273, %v3281
      %v3313 = vmul.f32 %v3274, %v3281
      %v3314 = vmul.f32 %v3275, %v3281
      %v3315 = vld [vmem:[%s6] sm:$0x1]
      %v3317 = vlaneseq
      %v3318 = vshrl.u32 %v3317, 7
      %v3319 = vsub.s32 0, %v3318
      %v3320 = vrot.slane %v3315, %v3319
      %v3322 = vadd.f32 %v3283, %v3320
      %v3323 = vadd.f32 %v3284, %v3320
      %v3324 = vadd.f32 %v3285, %v3320
      %v3325 = vadd.f32 %v3286, %v3320
      %v3326 = vadd.f32 %v3287, %v3320
      %v3327 = vadd.f32 %v3288, %v3320
      %v3328 = vadd.f32 %v3289, %v3320
      %v3329 = vadd.f32 %v3290, %v3320
      %v3330 = vadd.f32 %v3291, %v3320
      %v3331 = vadd.f32 %v3292, %v3320
      %v3332 = vadd.f32 %v3293, %v3320
      %v3333 = vadd.f32 %v3294, %v3320
      %v3334 = vadd.f32 %v3295, %v3320
      %v3335 = vadd.f32 %v3296, %v3320
      %v3336 = vadd.f32 %v3297, %v3320
      %v3337 = vadd.f32 %v3298, %v3320
      %v3338 = vadd.f32 %v3299, %v3320
      %v3339 = vadd.f32 %v3300, %v3320
      %v3340 = vadd.f32 %v3301, %v3320
      %v3341 = vadd.f32 %v3302, %v3320
      %v3342 = vadd.f32 %v3303, %v3320
      %v3343 = vadd.f32 %v3304, %v3320
      %v3344 = vadd.f32 %v3305, %v3320
      %v3345 = vadd.f32 %v3306, %v3320
      %v3346 = vadd.f32 %v3307, %v3320
      %v3347 = vadd.f32 %v3308, %v3320
      %v3348 = vadd.f32 %v3309, %v3320
      %v3349 = vadd.f32 %v3310, %v3320
      %v3350 = vadd.f32 %v3311, %v3320
      %v3351 = vadd.f32 %v3312, %v3320
      %v3352 = vadd.f32 %v3313, %v3320
      %v3353 = vadd.f32 %v3314, %v3320
      %vm3354 = vcmp.ge.f32.partialorder %v3322, 0.0
      %vm3355 = vcmp.ge.f32.partialorder %v3323, 0.0
      %vm3356 = vcmp.ge.f32.partialorder %v3324, 0.0
      %vm3357 = vcmp.ge.f32.partialorder %v3325, 0.0
      %vm3358 = vcmp.ge.f32.partialorder %v3326, 0.0
      %vm3359 = vcmp.ge.f32.partialorder %v3327, 0.0
      %vm3360 = vcmp.ge.f32.partialorder %v3328, 0.0
      %vm3361 = vcmp.ge.f32.partialorder %v3329, 0.0
      %vm3362 = vcmp.ge.f32.partialorder %v3330, 0.0
      %vm3363 = vcmp.ge.f32.partialorder %v3331, 0.0
      %vm3364 = vcmp.ge.f32.partialorder %v3332, 0.0
      %vm3365 = vcmp.ge.f32.partialorder %v3333, 0.0
      %vm3366 = vcmp.ge.f32.partialorder %v3334, 0.0
      %vm3367 = vcmp.ge.f32.partialorder %v3335, 0.0
      %vm3368 = vcmp.ge.f32.partialorder %v3336, 0.0
      %vm3369 = vcmp.ge.f32.partialorder %v3337, 0.0
      %vm3370 = vcmp.ge.f32.partialorder %v3338, 0.0
      %vm3371 = vcmp.ge.f32.partialorder %v3339, 0.0
      %vm3372 = vcmp.ge.f32.partialorder %v3340, 0.0
      %vm3373 = vcmp.ge.f32.partialorder %v3341, 0.0
      %vm3374 = vcmp.ge.f32.partialorder %v3342, 0.0
      %vm3375 = vcmp.ge.f32.partialorder %v3343, 0.0
      %vm3376 = vcmp.ge.f32.partialorder %v3344, 0.0
      %vm3377 = vcmp.ge.f32.partialorder %v3345, 0.0
      %vm3378 = vcmp.ge.f32.partialorder %v3346, 0.0
      %vm3379 = vcmp.ge.f32.partialorder %v3347, 0.0
      %vm3380 = vcmp.ge.f32.partialorder %v3348, 0.0
      %vm3381 = vcmp.ge.f32.partialorder %v3349, 0.0
      %vm3382 = vcmp.ge.f32.partialorder %v3350, 0.0
      %vm3383 = vcmp.ge.f32.partialorder %v3351, 0.0
      %vm3384 = vcmp.ge.f32.partialorder %v3352, 0.0
      %vm3385 = vcmp.ge.f32.partialorder %v3353, 0.0
      %v3386 = vmul.f32 %v3322, 0.2
      %v3387 = vmul.f32 %v3323, 0.2
      %v3388 = vmul.f32 %v3324, 0.2
      %v3389 = vmul.f32 %v3325, 0.2
      %v3390 = vmul.f32 %v3326, 0.2
      %v3391 = vmul.f32 %v3327, 0.2
      %v3392 = vmul.f32 %v3328, 0.2
      %v3393 = vmul.f32 %v3329, 0.2
      %v3394 = vmul.f32 %v3330, 0.2
      %v3395 = vmul.f32 %v3331, 0.2
      %v3396 = vmul.f32 %v3332, 0.2
      %v3397 = vmul.f32 %v3333, 0.2
      %v3398 = vmul.f32 %v3334, 0.2
      %v3399 = vmul.f32 %v3335, 0.2
      %v3400 = vmul.f32 %v3336, 0.2
      %v3401 = vmul.f32 %v3337, 0.2
      %v3402 = vmul.f32 %v3338, 0.2
      %v3403 = vmul.f32 %v3339, 0.2
      %v3404 = vmul.f32 %v3340, 0.2
      %v3405 = vmul.f32 %v3341, 0.2
      %v3406 = vmul.f32 %v3342, 0.2
      %v3407 = vmul.f32 %v3343, 0.2
      %v3408 = vmul.f32 %v3344, 0.2
      %v3409 = vmul.f32 %v3345, 0.2
      %v3410 = vmul.f32 %v3346, 0.2
      %v3411 = vmul.f32 %v3347, 0.2
      %v3412 = vmul.f32 %v3348, 0.2
      %v3413 = vmul.f32 %v3349, 0.2
      %v3414 = vmul.f32 %v3350, 0.2
      %v3415 = vmul.f32 %v3351, 0.2
      %v3416 = vmul.f32 %v3352, 0.2
      %v3417 = vmul.f32 %v3353, 0.2
      %v3418 = vsel %vm3354, %v3322, %v3386
      %v3419 = vsel %vm3355, %v3323, %v3387
      %v3420 = vsel %vm3356, %v3324, %v3388
      %v3421 = vsel %vm3357, %v3325, %v3389
      %v3422 = vsel %vm3358, %v3326, %v3390
      %v3423 = vsel %vm3359, %v3327, %v3391
      %v3424 = vsel %vm3360, %v3328, %v3392
      %v3425 = vsel %vm3361, %v3329, %v3393
      %v3426 = vsel %vm3362, %v3330, %v3394
      %v3427 = vsel %vm3363, %v3331, %v3395
      %v3428 = vsel %vm3364, %v3332, %v3396
      %v3429 = vsel %vm3365, %v3333, %v3397
      %v3430 = vsel %vm3366, %v3334, %v3398
      %v3431 = vsel %vm3367, %v3335, %v3399
      %v3432 = vsel %vm3368, %v3336, %v3400
      %v3433 = vsel %vm3369, %v3337, %v3401
      %v3434 = vsel %vm3370, %v3338, %v3402
      %v3435 = vsel %vm3371, %v3339, %v3403
      %v3436 = vsel %vm3372, %v3340, %v3404
      %v3437 = vsel %vm3373, %v3341, %v3405
      %v3438 = vsel %vm3374, %v3342, %v3406
      %v3439 = vsel %vm3375, %v3343, %v3407
      %v3440 = vsel %vm3376, %v3344, %v3408
      %v3441 = vsel %vm3377, %v3345, %v3409
      %v3442 = vsel %vm3378, %v3346, %v3410
      %v3443 = vsel %vm3379, %v3347, %v3411
      %v3444 = vsel %vm3380, %v3348, %v3412
      %v3445 = vsel %vm3381, %v3349, %v3413
      %v3446 = vsel %vm3382, %v3350, %v3414
      %v3447 = vsel %vm3383, %v3351, %v3415
      %v3448 = vsel %vm3384, %v3352, %v3416
      %v3449 = vsel %vm3385, %v3353, %v3417
      %vm3450 = vcmask 64512
      %3451 = vst.msk [vmem:[%s338] sm:$0xff] %vm3450, %v3418
      %3452 = vst.msk [vmem:[%s338 + $0x8] sm:$0xff] %vm3450, %v3419
      %3453 = vst.msk [vmem:[%s338 + $0x10] sm:$0xff] %vm3450, %v3420
      %3454 = vst.msk [vmem:[%s338 + $0x18] sm:$0xff] %vm3450, %v3421
      %3455 = vst.msk [vmem:[%s338 + $0x20] sm:$0xff] %vm3450, %v3422
      %3456 = vst.msk [vmem:[%s338 + $0x28] sm:$0xff] %vm3450, %v3423
      %3457 = vst.msk [vmem:[%s338 + $0x30] sm:$0xff] %vm3450, %v3424
      %3458 = vst.msk [vmem:[%s338 + $0x38] sm:$0xff] %vm3450, %v3425
      %3459 = vst.msk [vmem:[%s338 + $0x40] sm:$0xff] %vm3450, %v3426
      %3460 = vst.msk [vmem:[%s338 + $0x48] sm:$0xff] %vm3450, %v3427
      %3461 = vst.msk [vmem:[%s338 + $0x50] sm:$0xff] %vm3450, %v3428
      %3462 = vst.msk [vmem:[%s338 + $0x58] sm:$0xff] %vm3450, %v3429
      %3463 = vst.msk [vmem:[%s338 + $0x60] sm:$0xff] %vm3450, %v3430
      %3464 = vst.msk [vmem:[%s338 + $0x68] sm:$0xff] %vm3450, %v3431
      %3465 = vst.msk [vmem:[%s338 + $0x70] sm:$0xff] %vm3450, %v3432
      %3466 = vst.msk [vmem:[%s338 + $0x78] sm:$0xff] %vm3450, %v3433
      %3467 = vst.msk [vmem:[%s338 + $0x80] sm:$0xff] %vm3450, %v3434
      %3468 = vst.msk [vmem:[%s338 + $0x88] sm:$0xff] %vm3450, %v3435
      %3469 = vst.msk [vmem:[%s338 + $0x90] sm:$0xff] %vm3450, %v3436
      %3470 = vst.msk [vmem:[%s338 + $0x98] sm:$0xff] %vm3450, %v3437
      %3471 = vst.msk [vmem:[%s338 + $0xa0] sm:$0xff] %vm3450, %v3438
      %3472 = vst.msk [vmem:[%s338 + $0xa8] sm:$0xff] %vm3450, %v3439
      %3473 = vst.msk [vmem:[%s338 + $0xb0] sm:$0xff] %vm3450, %v3440
      %3474 = vst.msk [vmem:[%s338 + $0xb8] sm:$0xff] %vm3450, %v3441
      %3475 = vst.msk [vmem:[%s338 + $0xc0] sm:$0xff] %vm3450, %v3442
      %3476 = vst.msk [vmem:[%s338 + $0xc8] sm:$0xff] %vm3450, %v3443
      %3477 = vst.msk [vmem:[%s338 + $0xd0] sm:$0xff] %vm3450, %v3444
      %3478 = vst.msk [vmem:[%s338 + $0xd8] sm:$0xff] %vm3450, %v3445
      %3479 = vst.msk [vmem:[%s338 + $0xe0] sm:$0xff] %vm3450, %v3446
      %3480 = vst.msk [vmem:[%s338 + $0xe8] sm:$0xff] %vm3450, %v3447
      %3481 = vst.msk [vmem:[%s338 + $0xf0] sm:$0xff] %vm3450, %v3448
      %3482 = vst.msk [vmem:[%s338 + $0xf8] sm:$0xff] %vm3450, %v3449
      %p3483 = scmp.lt.s32.totalorder %s18, 1
      %s3484 = scalar_select %p3483, %s18, 1
      %s3485 = smul.addr %s3484, 32
      %s3486 = smul.addr %s3485, 8
      %s3487 = scalar_lea.vmem %s7, %s3486
      // Predicated region
      $region49: #{tpu_custom_call.1} parent=47 // pred_check
        %p3488 = pneg %p203
      $region50: #{tpu_custom_call.1} parent=47 // pred_check_branch
        %3490 = sbr.rel (%p3488) target = $region52
      $region51: #{tpu_custom_call.1} parent=47 // pred_region
        _
      $region52: #{tpu_custom_call.1} parent=47 // pred_fallthru
        _
    $region48: #{tpu_custom_call.1} parent=5 // pred_fallthru
      _
    %p3491 = scmp.le.s32.totalorder 2, %s13
    // Predicated region
    $region53: #{tpu_custom_call.1} parent=5 // pred_check
      %p3492 = pneg %p3491
    $region54: #{tpu_custom_call.1} parent=5 // pred_check_branch
      %3494 = sbr.rel (%p3492) target = $region56
    $region55: #{tpu_custom_call.1} parent=5 // pred_region
      %s3495 = ssub.s32 %s13, 2
      // Predicated region
      $region57: #{tpu_custom_call.1} parent=55 // pred_check
        %p3496 = pneg %p209
      $region58: #{tpu_custom_call.1} parent=55 // pred_check_branch
        %3498 = sbr.rel (%p3496) target = $region60
      $region59: #{tpu_custom_call.1} parent=55 // pred_region
        %p3499 = scmp.lt.s32.totalorder %s19, 1
        %s3500 = scalar_select %p3499, %s19, 1
        %s3501 = smul.addr %s3500, 32
        %s3502 = smul.addr %s3501, 8
        %s3503 = scalar_lea.vmem %s7, %s3502
      $region60: #{tpu_custom_call.1} parent=55 // pred_fallthru
        _
    $region56: #{tpu_custom_call.1} parent=5 // pred_fallthru
      _
  $region6: #{tpu_custom_call.1} parent=0 // loop_footer
    %s17 = sadd.s32 1, %s13
  $region7: #{tpu_custom_call.1} parent=0 // loop_footer_branch
    %12 = sbr.rel target = $region3
  $region8: #{tpu_custom_call.1} parent=0 // loop_exit
    _

</llo_original>
